<compile_context>
chip_gen: v5e
topology: v5e:2x2
jax: 0.10.0
libtpu: 0.0.40
codegen_flags: <defaults>
</compile_context>

<pallas_src>
import functools

import jax
import jax.numpy as jnp
from jax import lax
from jax.experimental import pallas as pl
from jax.experimental.pallas import tpu as pltpu

LANE = 128


def _pad_dim(c):
    """Lane-dense channel padding: at least 128, 256-aligned beyond that (v6e/v7x MXU K)."""
    return LANE if c <= LANE else -(-c // 256) * 256


def bottleneck_kernel(x_ref, w1_ref, s1_ref, b1_ref,
                      w2_ref, s2_ref, b2_ref,
                      w3_ref, s3_ref, b3_ref,
                      o_ref, pad_ref, *, H, W, Pp):
    # x_ref block: (1, H*W, Cp) f32 ; o_ref block: (1, H*W, Cp) f32
    # pad_ref: persistent VMEM scratch (H+2, W+2, Pp) f32
    HW = H * W
    x = x_ref[0]                                                      # [HW, Cp] f32

    # ---- conv_a1 (1x1) + bn_a1 + relu  (bf16 operands, f32 accumulate) -----
    a1 = jnp.dot(x.astype(jnp.bfloat16), w1_ref[...],
                 preferred_element_type=jnp.float32)                  # [HW, Pp]
    a1 = jnp.maximum(a1 * s1_ref[...] + b1_ref[...], 0.0)

    # ---- conv_a2 (3x3, pad=1, stride=1) as ONE im2col matmul ---------------
    # Write a1 into the interior of the padded scratch using only aligned,
    # full-row stores; borders are re-zeroed every step (megacore-safe: every
    # element read below is written in the same grid step).
    a1_img = a1.reshape(H, W, Pp)
    zcol = jnp.zeros((H, 1, Pp), jnp.float32)
    zrow = jnp.zeros((W + 2, Pp), jnp.float32)
    pad_ref[0] = zrow
    pad_ref[H + 1] = zrow
    pad_ref[1:H + 1] = jnp.concatenate([zcol, a1_img, zcol], axis=1)  # [H, W+2, Pp]

    # Build the im2col slab [HW, 9*Pp] from 3 aligned row-band loads + value
    # slices (no per-tap matmuls, no unaligned ref accesses).
    cols = []
    for dy in range(3):
        band = pad_ref[dy:dy + H]                                     # [H, W+2, Pp]
        for dx in range(3):
            cols.append(band[:, dx:dx + W, :]
                        .astype(jnp.bfloat16).reshape(HW, Pp))
    col = jnp.concatenate(cols, axis=-1)                              # [HW, 9*Pp] bf16

    a2 = jnp.dot(col, w2_ref[...], preferred_element_type=jnp.float32)  # [HW, Pp]
    a2 = jnp.maximum(a2 * s2_ref[...] + b2_ref[...], 0.0)

    # ---- conv_a3 (1x1) + bn_a3 ---------------------------------------------
    a3 = jnp.dot(a2.astype(jnp.bfloat16), w3_ref[...],
                 preferred_element_type=jnp.float32)                  # [HW, Cp]
    a3 = a3 * s3_ref[...] + b3_ref[...]

    # ---- identity residual + relu ------------------------------------------
    o_ref[0] = jnp.maximum(x + a3, 0.0).astype(o_ref.dtype)


def _make_call(N, H, W, Cp, Pp, cost, single_buffer_weights):
    HW = H * W
    kern = functools.partial(bottleneck_kernel, H=H, W=W, Pp=Pp)

    def const_spec(shape):
        idx = lambda n: (0,) * len(shape)
        if single_buffer_weights:
            # Grid-invariant operands: one VMEM buffer instead of two.
            return pl.BlockSpec(shape, idx,
                                pipeline_mode=pl.Buffered(buffer_count=1))
        return pl.BlockSpec(shape, idx)

    return pl.pallas_call(
        kern,
        out_shape=jax.ShapeDtypeStruct((N, HW, Cp), jnp.float32),
        grid_spec=pltpu.PrefetchScalarGridSpec(
            num_scalar_prefetch=0,
            grid=(N,),
            in_specs=[
                pl.BlockSpec((1, HW, Cp), lambda n: (n, 0, 0)),
                const_spec((Cp, Pp)), const_spec((1, Pp)), const_spec((1, Pp)),
                const_spec((9 * Pp, Pp)), const_spec((1, Pp)), const_spec((1, Pp)),
                const_spec((Pp, Cp)), const_spec((1, Cp)), const_spec((1, Cp)),
            ],
            out_specs=pl.BlockSpec((1, HW, Cp), lambda n: (n, 0, 0)),
            scratch_shapes=[pltpu.VMEM((H + 2, W + 2, Pp), jnp.float32)],
        ),
        compiler_params=pltpu.CompilerParams(
            dimension_semantics=("parallel",),
            vmem_limit_bytes=48 * 1024 * 1024,
        ),
        cost_estimate=cost,
    )


def bottleneck_block(x_nchw, params):
    """x_nchw: [N, Cin, H, W] f32 (PyTorch layout). Returns [N, Cout, H, W] f32."""
    N, Cin, H, W = x_nchw.shape
    w1, s1, b1, w2, s2, b2, w3, s3, b3 = params
    P = w1.shape[1]
    Cout = w3.shape[1]
    assert Cout == Cin, "identity residual requires inplanes == out_channels"

    Cp = _pad_dim(Cin)
    Pp = _pad_dim(P)
    HW = H * W
    bf16 = jnp.bfloat16

    # Lane-dense, channel-padded, pre-flattened input: NCHW -> (N, H*W, Cp).
    x_nhwc = jnp.transpose(x_nchw, (0, 2, 3, 1)).reshape(N, HW, Cin)
    x_flat = jnp.zeros((N, HW, Cp), jnp.float32).at[:, :, :Cin].set(x_nhwc)

    # Zero-padded bf16 weights; 3x3 conv weights concatenated tap-major to [9*Pp, Pp].
    w1p = jnp.zeros((Cp, Pp), bf16).at[:Cin, :P].set(w1.astype(bf16))
    w2p = (jnp.zeros((9, Pp, Pp), bf16).at[:, :P, :P].set(w2.astype(bf16))
           .reshape(9 * Pp, Pp))
    w3p = jnp.zeros((Pp, Cp), bf16).at[:P, :Cout].set(w3.astype(bf16))
    s1p = jnp.zeros((1, Pp), jnp.float32).at[:, :P].set(s1)
    b1p = jnp.zeros((1, Pp), jnp.float32).at[:, :P].set(b1)
    s2p = jnp.zeros((1, Pp), jnp.float32).at[:, :P].set(s2)
    b2p = jnp.zeros((1, Pp), jnp.float32).at[:, :P].set(b2)
    s3p = jnp.zeros((1, Cp), jnp.float32).at[:, :Cout].set(s3)
    b3p = jnp.zeros((1, Cp), jnp.float32).at[:, :Cout].set(b3)

    flops = int(2 * N * HW * (Cp * Pp + 9 * Pp * Pp + Pp * Cp))
    bytes_accessed = int(4 * x_flat.size + 4 * N * HW * Cp
                         + 2 * (w1p.size + w2p.size + w3p.size)
                         + 4 * (s1p.size + b1p.size + s2p.size + b2p.size
                                + s3p.size + b3p.size))
    cost = pl.CostEstimate(flops=flops, transcendentals=0,
                           bytes_accessed=bytes_accessed)

    args = (x_flat, w1p, s1p, b1p, w2p, s2p, b2p, w3p, s3p, b3p)
    try:
        call = _make_call(N, H, W, Cp, Pp, cost, single_buffer_weights=True)
        out_flat = jax.block_until_ready(call(*args))
    except Exception:
        # TODO(synk): pl.Buffered(1) single-buffering of grid-invariant weights is
        # not supported on this jax version; fall back to default double buffering.
        call = _make_call(N, H, W, Cp, Pp, cost, single_buffer_weights=False)
        out_flat = call(*args)

    out = out_flat[:, :, :Cout].reshape(N, H, W, Cout)
    return jnp.transpose(out, (0, 3, 1, 2))


def make_params(key, inplanes, planes, groups=1):
    """Deterministic weights + folded (eval-mode) batchnorm scale/bias."""
    assert groups == 1
    cout = 4 * planes
    keys = jax.random.split(key, 6)
    eps = 1e-5

    def bn(k, c):
        kg, kb, km, kv = jax.random.split(k, 4)
        gamma = 1.0 + 0.1 * jax.random.normal(kg, (c,), jnp.float32)
        beta = 0.1 * jax.random.normal(kb, (c,), jnp.float32)
        mean = 0.1 * jax.random.normal(km, (c,), jnp.float32)
        var = jax.nn.softplus(jax.random.normal(kv, (c,), jnp.float32)) + 0.1
        scale = gamma / jnp.sqrt(var + eps)
        bias = beta - mean * scale
        return scale.reshape(1, c), bias.reshape(1, c)

    # 1x1 convs stored as [Cin, Cout]; 3x3 conv stored as [9, Cin, Cout], k = dy*3+dx.
    w1 = 0.2 * jax.random.normal(keys[0], (inplanes, planes), jnp.float32)
    w2 = 0.2 * jax.random.normal(keys[1], (9, planes, planes), jnp.float32)
    w3 = 0.2 * jax.random.normal(keys[2], (planes, cout), jnp.float32)
    s1, b1 = bn(keys[3], planes)
    s2, b2 = bn(keys[4], planes)
    s3, b3 = bn(keys[5], cout)
    return (w1, s1, b1, w2, s2, b2, w3, s3, b3)


def reference_nchw(x_nchw, params):
    """Plain-JAX reference (same bf16-operand / f32-accumulate numerics)."""
    w1, s1, b1, w2, s2, b2, w3, s3, b3 = params
    P = w1.shape[1]
    bf16 = jnp.bfloat16
    x = jnp.transpose(x_nchw, (0, 2, 3, 1))                     # NHWC f32
    a = jnp.einsum('nhwc,cp->nhwp', x.astype(bf16), w1.astype(bf16),
                   preferred_element_type=jnp.float32)
    a = jnp.maximum(a * s1[0] + b1[0], 0.0)
    k = w2.astype(bf16).reshape(3, 3, P, P)
    a = lax.conv_general_dilated(a.astype(bf16), k, window_strides=(1, 1),
                                 padding=((1, 1), (1, 1)),
                                 dimension_numbers=('NHWC', 'HWIO', 'NHWC'),
                                 preferred_element_type=jnp.float32)
    a = jnp.maximum(a * s2[0] + b2[0], 0.0)
    a = jnp.einsum('nhwp,pc->nhwc', a.astype(bf16), w3.astype(bf16),
                   preferred_element_type=jnp.float32)
    a = a * s3[0] + b3[0]
    out = jnp.maximum(x + a, 0.0)
    return jnp.transpose(out, (0, 3, 1, 2))


if __name__ == "__main__":
    key = jax.random.PRNGKey(0)
    kx, kp = jax.random.split(key)

    N, planes, H, W = 2, 8, 8, 8
    inplanes = 4 * planes            # == BottleneckBlock.out_channels(planes, 1)

    x_nchw = jax.random.normal(kx, (N, inplanes, H, W), jnp.float32)
    params = make_params(kp, inplanes, planes, groups=1)

    out = bottleneck_block(x_nchw, params)
    out = jax.block_until_ready(out)

    ref = reference_nchw(x_nchw, params)
    if not jnp.allclose(out, ref, atol=2e-2, rtol=2e-2):
        err = float(jnp.max(jnp.abs(out - ref)))
        raise AssertionError(
            f"Pallas kernel does not match JAX reference (max abs err {err:.3e})")

    print("KERNEL_OK")
</pallas_src>

<mosaic_0001>
module attributes {stable_mosaic.version = 11 : i64} {
  func.func @bottleneck_kernel(%arg0: i32, %arg1: memref<1x64x128xf32, #tpu.memory_space<vmem>>, %arg2: memref<128x128xbf16, #tpu.memory_space<vmem>>, %arg3: memref<1x128xf32, #tpu.memory_space<vmem>>, %arg4: memref<1x128xf32, #tpu.memory_space<vmem>>, %arg5: memref<1152x128xbf16, #tpu.memory_space<vmem>>, %arg6: memref<1x128xf32, #tpu.memory_space<vmem>>, %arg7: memref<1x128xf32, #tpu.memory_space<vmem>>, %arg8: memref<128x128xbf16, #tpu.memory_space<vmem>>, %arg9: memref<1x128xf32, #tpu.memory_space<vmem>>, %arg10: memref<1x128xf32, #tpu.memory_space<vmem>>, %arg11: memref<1x64x128xf32, #tpu.memory_space<vmem>>, %arg12: memref<10x10x128xf32, #tpu.memory_space<vmem>>) attributes {dimension_semantics = [#tpu.dimension_semantics<parallel>], iteration_bounds = array<i64: 2>, scalar_prefetch = 0 : i64, scratch_operands = 1 : i64, tpu.core_type = #tpu.core_type<tc>, window_params = [{transform_indices = @transform_0, window_bounds = array<i64: 1, 64, 128>}, {pipeline_mode = #tpu.pipeline_mode<synchronous>, transform_indices = @transform_1, window_bounds = array<i64: 128, 128>}, {pipeline_mode = #tpu.pipeline_mode<synchronous>, transform_indices = @transform_2, window_bounds = array<i64: 1, 128>}, {pipeline_mode = #tpu.pipeline_mode<synchronous>, transform_indices = @transform_3, window_bounds = array<i64: 1, 128>}, {pipeline_mode = #tpu.pipeline_mode<synchronous>, transform_indices = @transform_4, window_bounds = array<i64: 1152, 128>}, {pipeline_mode = #tpu.pipeline_mode<synchronous>, transform_indices = @transform_5, window_bounds = array<i64: 1, 128>}, {pipeline_mode = #tpu.pipeline_mode<synchronous>, transform_indices = @transform_6, window_bounds = array<i64: 1, 128>}, {pipeline_mode = #tpu.pipeline_mode<synchronous>, transform_indices = @transform_7, window_bounds = array<i64: 128, 128>}, {pipeline_mode = #tpu.pipeline_mode<synchronous>, transform_indices = @transform_8, window_bounds = array<i64: 1, 128>}, {pipeline_mode = #tpu.pipeline_mode<synchronous>, transform_indices = @transform_9, window_bounds = array<i64: 1, 128>}, {transform_indices = @transform_10, window_bounds = array<i64: 1, 64, 128>}]} {
    %c0 = arith.constant 0 : index
    %c0_0 = arith.constant 0 : index
    %c0_1 = arith.constant 0 : index
    %0 = vector.load %arg1[%c0, %c0_0, %c0_1] : memref<1x64x128xf32, #tpu.memory_space<vmem>>, vector<1x64x128xf32>
    %1 = vector.shape_cast %0 : vector<1x64x128xf32> to vector<64x128xf32>
    %2 = arith.truncf %1 : vector<64x128xf32> to vector<64x128xbf16>
    %c0_2 = arith.constant 0 : index
    %c0_3 = arith.constant 0 : index
    %3 = vector.load %arg2[%c0_2, %c0_3] : memref<128x128xbf16, #tpu.memory_space<vmem>>, vector<128x128xbf16>
    %cst = arith.constant dense<0.000000e+00> : vector<64x128xf32>
    %4 = tpu.matmul %2, %3, %cst {dimension_numbers = #tpu.dot_dimension_numbers<[1], [0], [0], [1], [0, 0, 1, 1], [], []>} : vector<64x128xbf16>, vector<128x128xbf16>, vector<64x128xf32> -> vector<64x128xf32>
    %c0_4 = arith.constant 0 : index
    %c0_5 = arith.constant 0 : index
    %5 = vector.load %arg3[%c0_4, %c0_5] : memref<1x128xf32, #tpu.memory_space<vmem>>, vector<1x128xf32>
    %6 = vector.broadcast %5 : vector<1x128xf32> to vector<64x128xf32>
    %7 = arith.mulf %4, %6 : vector<64x128xf32>
    %c0_6 = arith.constant 0 : index
    %c0_7 = arith.constant 0 : index
    %8 = vector.load %arg4[%c0_6, %c0_7] : memref<1x128xf32, #tpu.memory_space<vmem>>, vector<1x128xf32>
    %9 = vector.broadcast %8 : vector<1x128xf32> to vector<64x128xf32>
    %10 = arith.addf %7, %9 : vector<64x128xf32>
    %cst_8 = arith.constant 0.000000e+00 : f32
    %11 = vector.broadcast %cst_8 : f32 to vector<64x128xf32>
    %12 = arith.maximumf %10, %11 : vector<64x128xf32>
    %13 = vector.shape_cast %12 : vector<64x128xf32> to vector<8x8x128xf32>
    %cst_9 = arith.constant 0.000000e+00 : f32
    %14 = vector.broadcast %cst_9 : f32 to vector<8x1x128xf32>
    %cst_10 = arith.constant 0.000000e+00 : f32
    %15 = vector.broadcast %cst_10 : f32 to vector<10x128xf32>
    %c0_11 = arith.constant 0 : index
    %c0_12 = arith.constant 0 : index
    %c0_13 = arith.constant 0 : index
    %16 = vector.load %arg12[%c0_11, %c0_12, %c0_13] : memref<10x10x128xf32, #tpu.memory_space<vmem>>, vector<1x10x128xf32>
    %17 = vector.shape_cast %16 : vector<1x10x128xf32> to vector<10x128xf32>
    %18 = vector.shape_cast %15 : vector<10x128xf32> to vector<1x10x128xf32>
    tpu.vector_store %arg12[%c0_11, %c0_12, %c0_13], %18 {strides = array<i32>} : memref<10x10x128xf32, #tpu.memory_space<vmem>>, vector<1x10x128xf32>,
    %c9 = arith.constant 9 : index
    %c0_14 = arith.constant 0 : index
    %c0_15 = arith.constant 0 : index
    %19 = vector.load %arg12[%c9, %c0_14, %c0_15] : memref<10x10x128xf32, #tpu.memory_space<vmem>>, vector<1x10x128xf32>
    %20 = vector.shape_cast %19 : vector<1x10x128xf32> to vector<10x128xf32>
    %21 = vector.shape_cast %15 : vector<10x128xf32> to vector<1x10x128xf32>
    tpu.vector_store %arg12[%c9, %c0_14, %c0_15], %21 {strides = array<i32>} : memref<10x10x128xf32, #tpu.memory_space<vmem>>, vector<1x10x128xf32>,
    %22 = tpu.concatenate %14, %13, %14 in 1 : vector<8x1x128xf32>, vector<8x8x128xf32>, vector<8x1x128xf32> -> vector<8x10x128xf32>
    %c1 = arith.constant 1 : index
    %c0_16 = arith.constant 0 : index
    %c0_17 = arith.constant 0 : index
    %23 = vector.load %arg12[%c1, %c0_16, %c0_17] : memref<10x10x128xf32, #tpu.memory_space<vmem>>, vector<8x10x128xf32>
    tpu.vector_store %arg12[%c1, %c0_16, %c0_17], %22 {strides = array<i32>} : memref<10x10x128xf32, #tpu.memory_space<vmem>>, vector<8x10x128xf32>,
    %c0_18 = arith.constant 0 : index
    %c0_19 = arith.constant 0 : index
    %c0_20 = arith.constant 0 : index
    %24 = vector.load %arg12[%c0_18, %c0_19, %c0_20] : memref<10x10x128xf32, #tpu.memory_space<vmem>>, vector<8x10x128xf32>
    %25 = vector.extract_strided_slice %24 {offsets = [0, 0, 0], sizes = [8, 8, 128], strides = [1, 1, 1]} : vector<8x10x128xf32> to vector<8x8x128xf32>
    %26 = arith.truncf %25 : vector<8x8x128xf32> to vector<8x8x128xbf16>
    %27 = vector.shape_cast %26 : vector<8x8x128xbf16> to vector<64x128xbf16>
    %28 = vector.extract_strided_slice %24 {offsets = [0, 1, 0], sizes = [8, 8, 128], strides = [1, 1, 1]} : vector<8x10x128xf32> to vector<8x8x128xf32>
    %29 = arith.truncf %28 : vector<8x8x128xf32> to vector<8x8x128xbf16>
    %30 = vector.shape_cast %29 : vector<8x8x128xbf16> to vector<64x128xbf16>
    %31 = vector.extract_strided_slice %24 {offsets = [0, 2, 0], sizes = [8, 8, 128], strides = [1, 1, 1]} : vector<8x10x128xf32> to vector<8x8x128xf32>
    %32 = arith.truncf %31 : vector<8x8x128xf32> to vector<8x8x128xbf16>
    %33 = vector.shape_cast %32 : vector<8x8x128xbf16> to vector<64x128xbf16>
    %c1_21 = arith.constant 1 : index
    %c0_22 = arith.constant 0 : index
    %c0_23 = arith.constant 0 : index
    %34 = vector.load %arg12[%c1_21, %c0_22, %c0_23] : memref<10x10x128xf32, #tpu.memory_space<vmem>>, vector<8x10x128xf32>
    %35 = vector.extract_strided_slice %34 {offsets = [0, 0, 0], sizes = [8, 8, 128], strides = [1, 1, 1]} : vector<8x10x128xf32> to vector<8x8x128xf32>
    %36 = arith.truncf %35 : vector<8x8x128xf32> to vector<8x8x128xbf16>
    %37 = vector.shape_cast %36 : vector<8x8x128xbf16> to vector<64x128xbf16>
    %38 = vector.extract_strided_slice %34 {offsets = [0, 1, 0], sizes = [8, 8, 128], strides = [1, 1, 1]} : vector<8x10x128xf32> to vector<8x8x128xf32>
    %39 = arith.truncf %38 : vector<8x8x128xf32> to vector<8x8x128xbf16>
    %40 = vector.shape_cast %39 : vector<8x8x128xbf16> to vector<64x128xbf16>
    %41 = vector.extract_strided_slice %34 {offsets = [0, 2, 0], sizes = [8, 8, 128], strides = [1, 1, 1]} : vector<8x10x128xf32> to vector<8x8x128xf32>
    %42 = arith.truncf %41 : vector<8x8x128xf32> to vector<8x8x128xbf16>
    %43 = vector.shape_cast %42 : vector<8x8x128xbf16> to vector<64x128xbf16>
    %c2 = arith.constant 2 : index
    %c0_24 = arith.constant 0 : index
    %c0_25 = arith.constant 0 : index
    %44 = vector.load %arg12[%c2, %c0_24, %c0_25] : memref<10x10x128xf32, #tpu.memory_space<vmem>>, vector<8x10x128xf32>
    %45 = vector.extract_strided_slice %44 {offsets = [0, 0, 0], sizes = [8, 8, 128], strides = [1, 1, 1]} : vector<8x10x128xf32> to vector<8x8x128xf32>
    %46 = arith.truncf %45 : vector<8x8x128xf32> to vector<8x8x128xbf16>
    %47 = vector.shape_cast %46 : vector<8x8x128xbf16> to vector<64x128xbf16>
    %48 = vector.extract_strided_slice %44 {offsets = [0, 1, 0], sizes = [8, 8, 128], strides = [1, 1, 1]} : vector<8x10x128xf32> to vector<8x8x128xf32>
    %49 = arith.truncf %48 : vector<8x8x128xf32> to vector<8x8x128xbf16>
    %50 = vector.shape_cast %49 : vector<8x8x128xbf16> to vector<64x128xbf16>
    %51 = vector.extract_strided_slice %44 {offsets = [0, 2, 0], sizes = [8, 8, 128], strides = [1, 1, 1]} : vector<8x10x128xf32> to vector<8x8x128xf32>
    %52 = arith.truncf %51 : vector<8x8x128xf32> to vector<8x8x128xbf16>
    %53 = vector.shape_cast %52 : vector<8x8x128xbf16> to vector<64x128xbf16>
    %54 = tpu.concatenate %27, %30, %33, %37, %40, %43, %47, %50, %53 in 1 : vector<64x128xbf16>, vector<64x128xbf16>, vector<64x128xbf16>, vector<64x128xbf16>, vector<64x128xbf16>, vector<64x128xbf16>, vector<64x128xbf16>, vector<64x128xbf16>, vector<64x128xbf16> -> vector<64x1152xbf16>
    %c0_26 = arith.constant 0 : index
    %c0_27 = arith.constant 0 : index
    %55 = vector.load %arg5[%c0_26, %c0_27] : memref<1152x128xbf16, #tpu.memory_space<vmem>>, vector<1152x128xbf16>
    %cst_28 = arith.constant dense<0.000000e+00> : vector<64x128xf32>
    %56 = tpu.matmul %54, %55, %cst_28 {dimension_numbers = #tpu.dot_dimension_numbers<[1], [0], [0], [1], [0, 0, 1, 1], [], []>} : vector<64x1152xbf16>, vector<1152x128xbf16>, vector<64x128xf32> -> vector<64x128xf32>
    %c0_29 = arith.constant 0 : index
    %c0_30 = arith.constant 0 : index
    %57 = vector.load %arg6[%c0_29, %c0_30] : memref<1x128xf32, #tpu.memory_space<vmem>>, vector<1x128xf32>
    %58 = vector.broadcast %57 : vector<1x128xf32> to vector<64x128xf32>
    %59 = arith.mulf %56, %58 : vector<64x128xf32>
    %c0_31 = arith.constant 0 : index
    %c0_32 = arith.constant 0 : index
    %60 = vector.load %arg7[%c0_31, %c0_32] : memref<1x128xf32, #tpu.memory_space<vmem>>, vector<1x128xf32>
    %61 = vector.broadcast %60 : vector<1x128xf32> to vector<64x128xf32>
    %62 = arith.addf %59, %61 : vector<64x128xf32>
    %cst_33 = arith.constant 0.000000e+00 : f32
    %63 = vector.broadcast %cst_33 : f32 to vector<64x128xf32>
    %64 = arith.maximumf %62, %63 : vector<64x128xf32>
    %65 = arith.truncf %64 : vector<64x128xf32> to vector<64x128xbf16>
    %c0_34 = arith.constant 0 : index
    %c0_35 = arith.constant 0 : index
    %66 = vector.load %arg8[%c0_34, %c0_35] : memref<128x128xbf16, #tpu.memory_space<vmem>>, vector<128x128xbf16>
    %cst_36 = arith.constant dense<0.000000e+00> : vector<64x128xf32>
    %67 = tpu.matmul %65, %66, %cst_36 {dimension_numbers = #tpu.dot_dimension_numbers<[1], [0], [0], [1], [0, 0, 1, 1], [], []>} : vector<64x128xbf16>, vector<128x128xbf16>, vector<64x128xf32> -> vector<64x128xf32>
    %c0_37 = arith.constant 0 : index
    %c0_38 = arith.constant 0 : index
    %68 = vector.load %arg9[%c0_37, %c0_38] : memref<1x128xf32, #tpu.memory_space<vmem>>, vector<1x128xf32>
    %69 = vector.broadcast %68 : vector<1x128xf32> to vector<64x128xf32>
    %70 = arith.mulf %67, %69 : vector<64x128xf32>
    %c0_39 = arith.constant 0 : index
    %c0_40 = arith.constant 0 : index
    %71 = vector.load %arg10[%c0_39, %c0_40] : memref<1x128xf32, #tpu.memory_space<vmem>>, vector<1x128xf32>
    %72 = vector.broadcast %71 : vector<1x128xf32> to vector<64x128xf32>
    %73 = arith.addf %70, %72 : vector<64x128xf32>
    %74 = arith.addf %1, %73 : vector<64x128xf32>
    %cst_41 = arith.constant 0.000000e+00 : f32
    %75 = vector.broadcast %cst_41 : f32 to vector<64x128xf32>
    %76 = arith.maximumf %74, %75 : vector<64x128xf32>
    %c0_42 = arith.constant 0 : index
    %c0_43 = arith.constant 0 : index
    %c0_44 = arith.constant 0 : index
    %77 = vector.load %arg11[%c0_42, %c0_43, %c0_44] : memref<1x64x128xf32, #tpu.memory_space<vmem>>, vector<1x64x128xf32>
    %78 = vector.shape_cast %77 : vector<1x64x128xf32> to vector<64x128xf32>
    %79 = vector.shape_cast %76 : vector<64x128xf32> to vector<1x64x128xf32>
    tpu.vector_store %arg11[%c0_42, %c0_43, %c0_44], %79 {strides = array<i32>} : memref<1x64x128xf32, #tpu.memory_space<vmem>>, vector<1x64x128xf32>,
    return
  }
  func.func @transform_0(%arg0: i32) -> (i32, i32, i32) {
    %c0_i32 = arith.constant 0 : i32
    %c0_i32_0 = arith.constant 0 : i32
    %c0_i32_1 = arith.constant 0 : i32
    return %arg0, %c0_i32, %c0_i32_0 : i32, i32, i32
  }
  func.func @transform_1(%arg0: i32) -> (i32, i32) {
    %c0_i32 = arith.constant 0 : i32
    %c0_i32_0 = arith.constant 0 : i32
    %c0_i32_1 = arith.constant 0 : i32
    return %c0_i32, %c0_i32_0 : i32, i32
  }
  func.func @transform_2(%arg0: i32) -> (i32, i32) {
    %c0_i32 = arith.constant 0 : i32
    %c0_i32_0 = arith.constant 0 : i32
    %c0_i32_1 = arith.constant 0 : i32
    return %c0_i32, %c0_i32_0 : i32, i32
  }
  func.func @transform_3(%arg0: i32) -> (i32, i32) {
    %c0_i32 = arith.constant 0 : i32
    %c0_i32_0 = arith.constant 0 : i32
    %c0_i32_1 = arith.constant 0 : i32
    return %c0_i32, %c0_i32_0 : i32, i32
  }
  func.func @transform_4(%arg0: i32) -> (i32, i32) {
    %c0_i32 = arith.constant 0 : i32
    %c0_i32_0 = arith.constant 0 : i32
    %c0_i32_1 = arith.constant 0 : i32
    return %c0_i32, %c0_i32_0 : i32, i32
  }
  func.func @transform_5(%arg0: i32) -> (i32, i32) {
    %c0_i32 = arith.constant 0 : i32
    %c0_i32_0 = arith.constant 0 : i32
    %c0_i32_1 = arith.constant 0 : i32
    return %c0_i32, %c0_i32_0 : i32, i32
  }
  func.func @transform_6(%arg0: i32) -> (i32, i32) {
    %c0_i32 = arith.constant 0 : i32
    %c0_i32_0 = arith.constant 0 : i32
    %c0_i32_1 = arith.constant 0 : i32
    return %c0_i32, %c0_i32_0 : i32, i32
  }
  func.func @transform_7(%arg0: i32) -> (i32, i32) {
    %c0_i32 = arith.constant 0 : i32
    %c0_i32_0 = arith.constant 0 : i32
    %c0_i32_1 = arith.constant 0 : i32
    return %c0_i32, %c0_i32_0 : i32, i32
  }
  func.func @transform_8(%arg0: i32) -> (i32, i32) {
    %c0_i32 = arith.constant 0 : i32
    %c0_i32_0 = arith.constant 0 : i32
    %c0_i32_1 = arith.constant 0 : i32
    return %c0_i32, %c0_i32_0 : i32, i32
  }
  func.func @transform_9(%arg0: i32) -> (i32, i32) {
    %c0_i32 = arith.constant 0 : i32
    %c0_i32_0 = arith.constant 0 : i32
    %c0_i32_1 = arith.constant 0 : i32
    return %c0_i32, %c0_i32_0 : i32, i32
  }
  func.func @transform_10(%arg0: i32) -> (i32, i32, i32) {
    %c0_i32 = arith.constant 0 : i32
    %c0_i32_0 = arith.constant 0 : i32
    %c0_i32_1 = arith.constant 0 : i32
    return %arg0, %c0_i32, %c0_i32_0 : i32, i32, i32
  }
}

module attributes {stable_mosaic.version = 11 : i64} {
  func.func @bottleneck_kernel(%arg0: i32, %arg1: memref<1x64x128xf32, #tpu.memory_space<vmem>>, %arg2: memref<128x128xbf16, #tpu.memory_space<vmem>>, %arg3: memref<1x128xf32, #tpu.memory_space<vmem>>, %arg4: memref<1x128xf32, #tpu.memory_space<vmem>>, %arg5: memref<1152x128xbf16, #tpu.memory_space<vmem>>, %arg6: memref<1x128xf32, #tpu.memory_space<vmem>>, %arg7: memref<1x128xf32, #tpu.memory_space<vmem>>, %arg8: memref<128x128xbf16, #tpu.memory_space<vmem>>, %arg9: memref<1x128xf32, #tpu.memory_space<vmem>>, %arg10: memref<1x128xf32, #tpu.memory_space<vmem>>, %arg11: memref<1x64x128xf32, #tpu.memory_space<vmem>>, %arg12: memref<10x10x128xf32, #tpu.memory_space<vmem>>) attributes {dimension_semantics = [#tpu.dimension_semantics<parallel>], iteration_bounds = array<i64: 2>, scalar_prefetch = 0 : i64, scratch_operands = 1 : i64, tpu.core_type = #tpu.core_type<tc>, window_params = [{transform_indices = @transform_0, window_bounds = array<i64: 1, 64, 128>}, {pipeline_mode = #tpu.pipeline_mode<synchronous>, transform_indices = @transform_1, window_bounds = array<i64: 128, 128>}, {pipeline_mode = #tpu.pipeline_mode<synchronous>, transform_indices = @transform_2, window_bounds = array<i64: 1, 128>}, {pipeline_mode = #tpu.pipeline_mode<synchronous>, transform_indices = @transform_3, window_bounds = array<i64: 1, 128>}, {pipeline_mode = #tpu.pipeline_mode<synchronous>, transform_indices = @transform_4, window_bounds = array<i64: 1152, 128>}, {pipeline_mode = #tpu.pipeline_mode<synchronous>, transform_indices = @transform_5, window_bounds = array<i64: 1, 128>}, {pipeline_mode = #tpu.pipeline_mode<synchronous>, transform_indices = @transform_6, window_bounds = array<i64: 1, 128>}, {pipeline_mode = #tpu.pipeline_mode<synchronous>, transform_indices = @transform_7, window_bounds = array<i64: 128, 128>}, {pipeline_mode = #tpu.pipeline_mode<synchronous>, transform_indices = @transform_8, window_bounds = array<i64: 1, 128>}, {pipeline_mode = #tpu.pipeline_mode<synchronous>, transform_indices = @transform_9, window_bounds = array<i64: 1, 128>}, {transform_indices = @transform_10, window_bounds = array<i64: 1, 64, 128>}]} {
    %c0 = arith.constant 0 : index
    %c0_0 = arith.constant 0 : index
    %c0_1 = arith.constant 0 : index
    %0 = vector.load %arg1[%c0, %c0_0, %c0_1] : memref<1x64x128xf32, #tpu.memory_space<vmem>>, vector<1x64x128xf32>
    %1 = vector.shape_cast %0 : vector<1x64x128xf32> to vector<64x128xf32>
    %2 = arith.truncf %1 : vector<64x128xf32> to vector<64x128xbf16>
    %c0_2 = arith.constant 0 : index
    %c0_3 = arith.constant 0 : index
    %3 = vector.load %arg2[%c0_2, %c0_3] : memref<128x128xbf16, #tpu.memory_space<vmem>>, vector<128x128xbf16>
    %cst = arith.constant dense<0.000000e+00> : vector<64x128xf32>
    %4 = tpu.matmul %2, %3, %cst {dimension_numbers = #tpu.dot_dimension_numbers<[1], [0], [0], [1], [0, 0, 1, 1], [], []>} : vector<64x128xbf16>, vector<128x128xbf16>, vector<64x128xf32> -> vector<64x128xf32>
    %c0_4 = arith.constant 0 : index
    %c0_5 = arith.constant 0 : index
    %5 = vector.load %arg3[%c0_4, %c0_5] : memref<1x128xf32, #tpu.memory_space<vmem>>, vector<1x128xf32>
    %6 = vector.broadcast %5 : vector<1x128xf32> to vector<64x128xf32>
    %7 = arith.mulf %4, %6 : vector<64x128xf32>
    %c0_6 = arith.constant 0 : index
    %c0_7 = arith.constant 0 : index
    %8 = vector.load %arg4[%c0_6, %c0_7] : memref<1x128xf32, #tpu.memory_space<vmem>>, vector<1x128xf32>
    %9 = vector.broadcast %8 : vector<1x128xf32> to vector<64x128xf32>
    %10 = arith.addf %7, %9 : vector<64x128xf32>
    %cst_8 = arith.constant 0.000000e+00 : f32
    %11 = vector.broadcast %cst_8 : f32 to vector<64x128xf32>
    %12 = arith.maximumf %10, %11 : vector<64x128xf32>
    %13 = vector.shape_cast %12 : vector<64x128xf32> to vector<8x8x128xf32>
    %cst_9 = arith.constant 0.000000e+00 : f32
    %14 = vector.broadcast %cst_9 : f32 to vector<8x1x128xf32>
    %cst_10 = arith.constant 0.000000e+00 : f32
    %15 = vector.broadcast %cst_10 : f32 to vector<10x128xf32>
    %c0_11 = arith.constant 0 : index
    %c0_12 = arith.constant 0 : index
    %c0_13 = arith.constant 0 : index
    %16 = vector.load %arg12[%c0_11, %c0_12, %c0_13] : memref<10x10x128xf32, #tpu.memory_space<vmem>>, vector<1x10x128xf32>
    %17 = vector.shape_cast %16 : vector<1x10x128xf32> to vector<10x128xf32>
    %18 = vector.shape_cast %15 : vector<10x128xf32> to vector<1x10x128xf32>
    tpu.vector_store %arg12[%c0_11, %c0_12, %c0_13], %18 {strides = array<i32>} : memref<10x10x128xf32, #tpu.memory_space<vmem>>, vector<1x10x128xf32>,
    %c9 = arith.constant 9 : index
    %c0_14 = arith.constant 0 : index
    %c0_15 = arith.constant 0 : index
    %19 = vector.load %arg12[%c9, %c0_14, %c0_15] : memref<10x10x128xf32, #tpu.memory_space<vmem>>, vector<1x10x128xf32>
    %20 = vector.shape_cast %19 : vector<1x10x128xf32> to vector<10x128xf32>
    %21 = vector.shape_cast %15 : vector<10x128xf32> to vector<1x10x128xf32>
    tpu.vector_store %arg12[%c9, %c0_14, %c0_15], %21 {strides = array<i32>} : memref<10x10x128xf32, #tpu.memory_space<vmem>>, vector<1x10x128xf32>,
    %22 = tpu.concatenate %14, %13, %14 in 1 : vector<8x1x128xf32>, vector<8x8x128xf32>, vector<8x1x128xf32> -> vector<8x10x128xf32>
    %c1 = arith.constant 1 : index
    %c0_16 = arith.constant 0 : index
    %c0_17 = arith.constant 0 : index
    %23 = vector.load %arg12[%c1, %c0_16, %c0_17] : memref<10x10x128xf32, #tpu.memory_space<vmem>>, vector<8x10x128xf32>
    tpu.vector_store %arg12[%c1, %c0_16, %c0_17], %22 {strides = array<i32>} : memref<10x10x128xf32, #tpu.memory_space<vmem>>, vector<8x10x128xf32>,
    %c0_18 = arith.constant 0 : index
    %c0_19 = arith.constant 0 : index
    %c0_20 = arith.constant 0 : index
    %24 = vector.load %arg12[%c0_18, %c0_19, %c0_20] : memref<10x10x128xf32, #tpu.memory_space<vmem>>, vector<8x10x128xf32>
    %25 = vector.extract_strided_slice %24 {offsets = [0, 0, 0], sizes = [8, 8, 128], strides = [1, 1, 1]} : vector<8x10x128xf32> to vector<8x8x128xf32>
    %26 = arith.truncf %25 : vector<8x8x128xf32> to vector<8x8x128xbf16>
    %27 = vector.shape_cast %26 : vector<8x8x128xbf16> to vector<64x128xbf16>
    %28 = vector.extract_strided_slice %24 {offsets = [0, 1, 0], sizes = [8, 8, 128], strides = [1, 1, 1]} : vector<8x10x128xf32> to vector<8x8x128xf32>
    %29 = arith.truncf %28 : vector<8x8x128xf32> to vector<8x8x128xbf16>
    %30 = vector.shape_cast %29 : vector<8x8x128xbf16> to vector<64x128xbf16>
    %31 = vector.extract_strided_slice %24 {offsets = [0, 2, 0], sizes = [8, 8, 128], strides = [1, 1, 1]} : vector<8x10x128xf32> to vector<8x8x128xf32>
    %32 = arith.truncf %31 : vector<8x8x128xf32> to vector<8x8x128xbf16>
    %33 = vector.shape_cast %32 : vector<8x8x128xbf16> to vector<64x128xbf16>
    %c1_21 = arith.constant 1 : index
    %c0_22 = arith.constant 0 : index
    %c0_23 = arith.constant 0 : index
    %34 = vector.load %arg12[%c1_21, %c0_22, %c0_23] : memref<10x10x128xf32, #tpu.memory_space<vmem>>, vector<8x10x128xf32>
    %35 = vector.extract_strided_slice %34 {offsets = [0, 0, 0], sizes = [8, 8, 128], strides = [1, 1, 1]} : vector<8x10x128xf32> to vector<8x8x128xf32>
    %36 = arith.truncf %35 : vector<8x8x128xf32> to vector<8x8x128xbf16>
    %37 = vector.shape_cast %36 : vector<8x8x128xbf16> to vector<64x128xbf16>
    %38 = vector.extract_strided_slice %34 {offsets = [0, 1, 0], sizes = [8, 8, 128], strides = [1, 1, 1]} : vector<8x10x128xf32> to vector<8x8x128xf32>
    %39 = arith.truncf %38 : vector<8x8x128xf32> to vector<8x8x128xbf16>
    %40 = vector.shape_cast %39 : vector<8x8x128xbf16> to vector<64x128xbf16>
    %41 = vector.extract_strided_slice %34 {offsets = [0, 2, 0], sizes = [8, 8, 128], strides = [1, 1, 1]} : vector<8x10x128xf32> to vector<8x8x128xf32>
    %42 = arith.truncf %41 : vector<8x8x128xf32> to vector<8x8x128xbf16>
    %43 = vector.shape_cast %42 : vector<8x8x128xbf16> to vector<64x128xbf16>
    %c2 = arith.constant 2 : index
    %c0_24 = arith.constant 0 : index
    %c0_25 = arith.constant 0 : index
    %44 = vector.load %arg12[%c2, %c0_24, %c0_25] : memref<10x10x128xf32, #tpu.memory_space<vmem>>, vector<8x10x128xf32>
    %45 = vector.extract_strided_slice %44 {offsets = [0, 0, 0], sizes = [8, 8, 128], strides = [1, 1, 1]} : vector<8x10x128xf32> to vector<8x8x128xf32>
    %46 = arith.truncf %45 : vector<8x8x128xf32> to vector<8x8x128xbf16>
    %47 = vector.shape_cast %46 : vector<8x8x128xbf16> to vector<64x128xbf16>
    %48 = vector.extract_strided_slice %44 {offsets = [0, 1, 0], sizes = [8, 8, 128], strides = [1, 1, 1]} : vector<8x10x128xf32> to vector<8x8x128xf32>
    %49 = arith.truncf %48 : vector<8x8x128xf32> to vector<8x8x128xbf16>
    %50 = vector.shape_cast %49 : vector<8x8x128xbf16> to vector<64x128xbf16>
    %51 = vector.extract_strided_slice %44 {offsets = [0, 2, 0], sizes = [8, 8, 128], strides = [1, 1, 1]} : vector<8x10x128xf32> to vector<8x8x128xf32>
    %52 = arith.truncf %51 : vector<8x8x128xf32> to vector<8x8x128xbf16>
    %53 = vector.shape_cast %52 : vector<8x8x128xbf16> to vector<64x128xbf16>
    %54 = tpu.concatenate %27, %30, %33, %37, %40, %43, %47, %50, %53 in 1 : vector<64x128xbf16>, vector<64x128xbf16>, vector<64x128xbf16>, vector<64x128xbf16>, vector<64x128xbf16>, vector<64x128xbf16>, vector<64x128xbf16>, vector<64x128xbf16>, vector<64x128xbf16> -> vector<64x1152xbf16>
    %c0_26 = arith.constant 0 : index
    %c0_27 = arith.constant 0 : index
    %55 = vector.load %arg5[%c0_26, %c0_27] : memref<1152x128xbf16, #tpu.memory_space<vmem>>, vector<1152x128xbf16>
    %cst_28 = arith.constant dense<0.000000e+00> : vector<64x128xf32>
    %56 = tpu.matmul %54, %55, %cst_28 {dimension_numbers = #tpu.dot_dimension_numbers<[1], [0], [0], [1], [0, 0, 1, 1], [], []>} : vector<64x1152xbf16>, vector<1152x128xbf16>, vector<64x128xf32> -> vector<64x128xf32>
    %c0_29 = arith.constant 0 : index
    %c0_30 = arith.constant 0 : index
    %57 = vector.load %arg6[%c0_29, %c0_30] : memref<1x128xf32, #tpu.memory_space<vmem>>, vector<1x128xf32>
    %58 = vector.broadcast %57 : vector<1x128xf32> to vector<64x128xf32>
    %59 = arith.mulf %56, %58 : vector<64x128xf32>
    %c0_31 = arith.constant 0 : index
    %c0_32 = arith.constant 0 : index
    %60 = vector.load %arg7[%c0_31, %c0_32] : memref<1x128xf32, #tpu.memory_space<vmem>>, vector<1x128xf32>
    %61 = vector.broadcast %60 : vector<1x128xf32> to vector<64x128xf32>
    %62 = arith.addf %59, %61 : vector<64x128xf32>
    %cst_33 = arith.constant 0.000000e+00 : f32
    %63 = vector.broadcast %cst_33 : f32 to vector<64x128xf32>
    %64 = arith.maximumf %62, %63 : vector<64x128xf32>
    %65 = arith.truncf %64 : vector<64x128xf32> to vector<64x128xbf16>
    %c0_34 = arith.constant 0 : index
    %c0_35 = arith.constant 0 : index
    %66 = vector.load %arg8[%c0_34, %c0_35] : memref<128x128xbf16, #tpu.memory_space<vmem>>, vector<128x128xbf16>
    %cst_36 = arith.constant dense<0.000000e+00> : vector<64x128xf32>
    %67 = tpu.matmul %65, %66, %cst_36 {dimension_numbers = #tpu.dot_dimension_numbers<[1], [0], [0], [1], [0, 0, 1, 1], [], []>} : vector<64x128xbf16>, vector<128x128xbf16>, vector<64x128xf32> -> vector<64x128xf32>
    %c0_37 = arith.constant 0 : index
    %c0_38 = arith.constant 0 : index
    %68 = vector.load %arg9[%c0_37, %c0_38] : memref<1x128xf32, #tpu.memory_space<vmem>>, vector<1x128xf32>
    %69 = vector.broadcast %68 : vector<1x128xf32> to vector<64x128xf32>
    %70 = arith.mulf %67, %69 : vector<64x128xf32>
    %c0_39 = arith.constant 0 : index
    %c0_40 = arith.constant 0 : index
    %71 = vector.load %arg10[%c0_39, %c0_40] : memref<1x128xf32, #tpu.memory_space<vmem>>, vector<1x128xf32>
    %72 = vector.broadcast %71 : vector<1x128xf32> to vector<64x128xf32>
    %73 = arith.addf %70, %72 : vector<64x128xf32>
    %74 = arith.addf %1, %73 : vector<64x128xf32>
    %cst_41 = arith.constant 0.000000e+00 : f32
    %75 = vector.broadcast %cst_41 : f32 to vector<64x128xf32>
    %76 = arith.maximumf %74, %75 : vector<64x128xf32>
    %c0_42 = arith.constant 0 : index
    %c0_43 = arith.constant 0 : index
    %c0_44 = arith.constant 0 : index
    %77 = vector.load %arg11[%c0_42, %c0_43, %c0_44] : memref<1x64x128xf32, #tpu.memory_space<vmem>>, vector<1x64x128xf32>
    %78 = vector.shape_cast %77 : vector<1x64x128xf32> to vector<64x128xf32>
    %79 = vector.shape_cast %76 : vector<64x128xf32> to vector<1x64x128xf32>
    tpu.vector_store %arg11[%c0_42, %c0_43, %c0_44], %79 {strides = array<i32>} : memref<1x64x128xf32, #tpu.memory_space<vmem>>, vector<1x64x128xf32>,
    return
  }
  func.func @transform_0(%arg0: i32) -> (i32, i32, i32) {
    %c0_i32 = arith.constant 0 : i32
    %c0_i32_0 = arith.constant 0 : i32
    %c0_i32_1 = arith.constant 0 : i32
    return %arg0, %c0_i32, %c0_i32_0 : i32, i32, i32
  }
  func.func @transform_1(%arg0: i32) -> (i32, i32) {
    %c0_i32 = arith.constant 0 : i32
    %c0_i32_0 = arith.constant 0 : i32
    %c0_i32_1 = arith.constant 0 : i32
    return %c0_i32, %c0_i32_0 : i32, i32
  }
  func.func @transform_2(%arg0: i32) -> (i32, i32) {
    %c0_i32 = arith.constant 0 : i32
    %c0_i32_0 = arith.constant 0 : i32
    %c0_i32_1 = arith.constant 0 : i32
    return %c0_i32, %c0_i32_0 : i32, i32
  }
  func.func @transform_3(%arg0: i32) -> (i32, i32) {
    %c0_i32 = arith.constant 0 : i32
    %c0_i32_0 = arith.constant 0 : i32
    %c0_i32_1 = arith.constant 0 : i32
    return %c0_i32, %c0_i32_0 : i32, i32
  }
  func.func @transform_4(%arg0: i32) -> (i32, i32) {
    %c0_i32 = arith.constant 0 : i32
    %c0_i32_0 = arith.constant 0 : i32
    %c0_i32_1 = arith.constant 0 : i32
    return %c0_i32, %c0_i32_0 : i32, i32
  }
  func.func @transform_5(%arg0: i32) -> (i32, i32) {
    %c0_i32 = arith.constant 0 : i32
    %c0_i32_0 = arith.constant 0 : i32
    %c0_i32_1 = arith.constant 0 : i32
    return %c0_i32, %c0_i32_0 : i32, i32
  }
  func.func @transform_6(%arg0: i32) -> (i32, i32) {
    %c0_i32 = arith.constant 0 : i32
    %c0_i32_0 = arith.constant 0 : i32
    %c0_i32_1 = arith.constant 0 : i32
    return %c0_i32, %c0_i32_0 : i32, i32
  }
  func.func @transform_7(%arg0: i32) -> (i32, i32) {
    %c0_i32 = arith.constant 0 : i32
    %c0_i32_0 = arith.constant 0 : i32
    %c0_i32_1 = arith.constant 0 : i32
    return %c0_i32, %c0_i32_0 : i32, i32
  }
  func.func @transform_8(%arg0: i32) -> (i32, i32) {
    %c0_i32 = arith.constant 0 : i32
    %c0_i32_0 = arith.constant 0 : i32
    %c0_i32_1 = arith.constant 0 : i32
    return %c0_i32, %c0_i32_0 : i32, i32
  }
  func.func @transform_9(%arg0: i32) -> (i32, i32) {
    %c0_i32 = arith.constant 0 : i32
    %c0_i32_0 = arith.constant 0 : i32
    %c0_i32_1 = arith.constant 0 : i32
    return %c0_i32, %c0_i32_0 : i32, i32
  }
  func.func @transform_10(%arg0: i32) -> (i32, i32, i32) {
    %c0_i32 = arith.constant 0 : i32
    %c0_i32_0 = arith.constant 0 : i32
    %c0_i32_1 = arith.constant 0 : i32
    return %arg0, %c0_i32, %c0_i32_0 : i32, i32, i32
  }
}

</mosaic_0001>

<llo_original>
// kernel: tpu_custom_call.1
$region0: #{tpu_custom_call.1}
  #allocation0 [shape = 'u32[]', space=smem, size = 0x4, offset = 0x4, fixed_abs, tag = 'smem constant byte address 0x4 - core index']
  #allocation1 [shape = 'u32[72,128]{1,0:T(1,128)}', space=vmem, size = 0x9000, scoped, tag = 'internal scratch']
  #allocation2 [shape = 'f32[10,10,128]{2,1,0:T(8,128)}', space=vmem, size = 0x14000, scoped, tag = 'scratch operand']
  %s0 = inlined_call_operand.hbm [shape: f32[2,64,128], index: 0, kind: input, shape index: {}]
  %s1 = inlined_call_operand.hbm [shape: bf16[128,128], index: 1, kind: input, shape index: {}]
  %s2 = inlined_call_operand.vmem [shape: f32[1,128], index: 2, kind: input, shape index: {}]
  %s3 = inlined_call_operand.vmem [shape: f32[1,128], index: 3, kind: input, shape index: {}]
  %s4 = inlined_call_operand.hbm [shape: bf16[1152,128], index: 4, kind: input, shape index: {}]
  %s5 = inlined_call_operand.vmem [shape: f32[1,128], index: 5, kind: input, shape index: {}]
  %s6 = inlined_call_operand.vmem [shape: f32[1,128], index: 6, kind: input, shape index: {}]
  %s7 = inlined_call_operand.hbm [shape: bf16[128,128], index: 7, kind: input, shape index: {}]
  %s8 = inlined_call_operand.vmem [shape: f32[1,128], index: 8, kind: input, shape index: {}]
  %s9 = inlined_call_operand.vmem [shape: f32[1,128], index: 9, kind: input, shape index: {}]
  %s10 = inlined_call_operand.hbm [shape: f32[2,64,128], index: 10, kind: output, shape index: {}]
  %s11 = sld [smem:[#allocation0]]
  $region89: #{tpu_custom_call.1} parent=0
    _
  %s13 = ssub.s32 1, %s11
  %s14 = scalar_select 0, %s13, %s11
  $region1: #{tpu_custom_call.1} parent=0
    #allocation3 [shape = 'u8[65536]{0}', space=vmem, size = 0x10000, scoped, tag = 'input window, operand 0']
    #allocation4 [shape = 's32[2]{0}', space=sflag, size = 0x8, scoped, tag = 'scoped memory for tpu_custom_call.1']
    #allocation5 [shape = 's32[2]{0}', space=sflag, size = 0x8, scoped, tag = 'scoped memory for tpu_custom_call.1']
    #allocation6 [shape = 'u8[32768]{0}', space=vmem, size = 0x8000, scoped, tag = 'input window, operand 1, single buffered']
    #allocation7 [shape = 's32[1]{0}', space=sflag, size = 0x4, scoped, tag = 'scoped memory for tpu_custom_call.1']
    #allocation8 [shape = 'u8[294912]{0}', space=vmem, size = 0x48000, scoped, tag = 'input window, operand 4, single buffered']
    #allocation9 [shape = 'u8[32768]{0}', space=vmem, size = 0x8000, scoped, tag = 'input window, operand 7, single buffered']
    #allocation10 [shape = 's32[1]{0}', space=sflag, size = 0x4, scoped, tag = 'scoped memory for tpu_custom_call.1']
    #allocation11 [shape = 'u8[65536]{0}', space=vmem, size = 0x10000, scoped, tag = 'output window, operand 0']
    %15 = vsyncpa [#allocation4], 0
    %s16 = scalar_lea.sflag [#allocation4], 1
    %17 = vsyncpa %s16, 0
    %18 = vsyncpa [#allocation7], 0
    %19 = vsyncpa [#allocation10], 0
    %20 = vsyncpa [#allocation5], 0
    %s21 = scalar_lea.sflag [#allocation5], 1
    %22 = vsyncpa %s21, 0
    loop: start=0, step=1, limit=4
    $region2: #{tpu_custom_call.1} parent=1 // loop_pre_header
      _
    $region3: #{tpu_custom_call.1} parent=1 // loop_header
      %s24 = sphi 0, %s28
      %p25 = scmp.ge.s32.totalorder %s24, 4
      %s34 = sphi 0, %s36
      %s37 = sphi 0, %s34
      %s38 = sphi 0, %s37
      %s54 = sphi 0, %s38
      %s58 = sphi 0, %s58
      %s60 = sphi 0, %s58
      %s61 = sphi 0, %s60
      %s75 = sphi 0, %s61
      %s79 = sphi 0, %s79
      %s81 = sphi 0, %s79
      %s82 = sphi 0, %s81
      %s96 = sphi 0, %s82
      %s100 = sphi 0, %s100
      %s102 = sphi 0, %s100
      %s103 = sphi 0, %s102
      %s117 = sphi 0, %s103
      %s121 = sphi 0, %s121
      %s123 = sphi 0, %s121
      %s124 = sphi 0, %s123
      %s138 = sphi 0, %s124
      %s142 = sphi 0, %s142
      %s144 = sphi 0, %s142
      %s145 = sphi 0, %s144
      %s159 = sphi 0, %s145
      %s163 = sphi 0, %s163
      %s165 = sphi 0, %s163
      %s166 = sphi 0, %s165
      %s180 = sphi 0, %s166
      %s184 = sphi 0, %s184
      %s186 = sphi 0, %s184
      %s187 = sphi 0, %s186
      %s201 = sphi 0, %s187
      %s205 = sphi 0, %s205
      %s207 = sphi 0, %s205
      %s208 = sphi 0, %s207
      %s222 = sphi 0, %s208
      %s226 = sphi 0, %s226
      %s228 = sphi 0, %s226
      %s229 = sphi 0, %s228
      %s243 = sphi 0, %s229
      %s249 = sphi 0, %s251
      %s252 = sphi 0, %s249
      %s253 = sphi 0, %s252
      %s269 = sphi 0, %s253
    $region4: #{tpu_custom_call.1} parent=1 // loop_header_branch
      %27 = sbr.rel (%p25) target = $region8
    $region5: #{tpu_custom_call.1} parent=1 // loop_body
      %s29 = ssub.s32 %s24, 1
      %s30 = ssub.s32 %s24, 2
      %s31 = sadd.s32 %s24, 1
      %s32 = ssub.s32 %s24, %s31
      %p33 = scmp.eq.s32.totalorder %s32, 0
      %s35 = sadd.s32 %s34, 1
      %s36 = scalar_select %p33, %s34, %s35
      %p39 = pneg %p33
      %p40 = scmp.eq.s32.totalorder %s24, 1
      %p41 = por %p39, %p40
      %p42 = scmp.ne.s32.totalorder %s34, %s37
      %p43 = scmp.eq.s32.totalorder %s24, 0
      %p44 = por %p42, %p43
      %p45 = scmp.ne.s32.totalorder %s34, %s37
      %p46 = scmp.eq.s32.totalorder %s29, 1
      %p47 = por %p45, %p46
      %p48 = scmp.ne.s32.totalorder %s37, %s38
      %p49 = scmp.eq.s32.totalorder %s29, 0
      %p50 = por %p48, %p49
      %p51 = scmp.ne.s32.totalorder %s37, %s38
      %p52 = scmp.eq.s32.totalorder %s30, 1
      %p53 = por %p51, %p52
      %p55 = scmp.ne.s32.totalorder %s38, %s54
      %p56 = scmp.eq.s32.totalorder %s30, 0
      %p57 = por %p55, %p56
      %s59 = sadd.s32 %s58, 1
      %p62 = scmp.eq.s32.totalorder %s24, 1
      %p63 = scmp.ne.s32.totalorder %s58, %s60
      %p64 = scmp.eq.s32.totalorder %s24, 0
      %p65 = por %p63, %p64
      %p66 = scmp.ne.s32.totalorder %s58, %s60
      %p67 = scmp.eq.s32.totalorder %s29, 1
      %p68 = por %p66, %p67
      %p69 = scmp.ne.s32.totalorder %s60, %s61
      %p70 = scmp.eq.s32.totalorder %s29, 0
      %p71 = por %p69, %p70
      %p72 = scmp.ne.s32.totalorder %s60, %s61
      %p73 = scmp.eq.s32.totalorder %s30, 1
      %p74 = por %p72, %p73
      %p76 = scmp.ne.s32.totalorder %s61, %s75
      %p77 = scmp.eq.s32.totalorder %s30, 0
      %p78 = por %p76, %p77
      %s80 = sadd.s32 %s79, 1
      %p83 = scmp.eq.s32.totalorder %s24, 1
      %p84 = scmp.ne.s32.totalorder %s79, %s81
      %p85 = scmp.eq.s32.totalorder %s24, 0
      %p86 = por %p84, %p85
      %p87 = scmp.ne.s32.totalorder %s79, %s81
      %p88 = scmp.eq.s32.totalorder %s29, 1
      %p89 = por %p87, %p88
      %p90 = scmp.ne.s32.totalorder %s81, %s82
      %p91 = scmp.eq.s32.totalorder %s29, 0
      %p92 = por %p90, %p91
      %p93 = scmp.ne.s32.totalorder %s81, %s82
      %p94 = scmp.eq.s32.totalorder %s30, 1
      %p95 = por %p93, %p94
      %p97 = scmp.ne.s32.totalorder %s82, %s96
      %p98 = scmp.eq.s32.totalorder %s30, 0
      %p99 = por %p97, %p98
      %s101 = sadd.s32 %s100, 1
      %p104 = scmp.eq.s32.totalorder %s24, 1
      %p105 = scmp.ne.s32.totalorder %s100, %s102
      %p106 = scmp.eq.s32.totalorder %s24, 0
      %p107 = por %p105, %p106
      %p108 = scmp.ne.s32.totalorder %s100, %s102
      %p109 = scmp.eq.s32.totalorder %s29, 1
      %p110 = por %p108, %p109
      %p111 = scmp.ne.s32.totalorder %s102, %s103
      %p112 = scmp.eq.s32.totalorder %s29, 0
      %p113 = por %p111, %p112
      %p114 = scmp.ne.s32.totalorder %s102, %s103
      %p115 = scmp.eq.s32.totalorder %s30, 1
      %p116 = por %p114, %p115
      %p118 = scmp.ne.s32.totalorder %s103, %s117
      %p119 = scmp.eq.s32.totalorder %s30, 0
      %p120 = por %p118, %p119
      %s122 = sadd.s32 %s121, 1
      %p125 = scmp.eq.s32.totalorder %s24, 1
      %p126 = scmp.ne.s32.totalorder %s121, %s123
      %p127 = scmp.eq.s32.totalorder %s24, 0
      %p128 = por %p126, %p127
      %p129 = scmp.ne.s32.totalorder %s121, %s123
      %p130 = scmp.eq.s32.totalorder %s29, 1
      %p131 = por %p129, %p130
      %p132 = scmp.ne.s32.totalorder %s123, %s124
      %p133 = scmp.eq.s32.totalorder %s29, 0
      %p134 = por %p132, %p133
      %p135 = scmp.ne.s32.totalorder %s123, %s124
      %p136 = scmp.eq.s32.totalorder %s30, 1
      %p137 = por %p135, %p136
      %p139 = scmp.ne.s32.totalorder %s124, %s138
      %p140 = scmp.eq.s32.totalorder %s30, 0
      %p141 = por %p139, %p140
      %s143 = sadd.s32 %s142, 1
      %p146 = scmp.eq.s32.totalorder %s24, 1
      %p147 = scmp.ne.s32.totalorder %s142, %s144
      %p148 = scmp.eq.s32.totalorder %s24, 0
      %p149 = por %p147, %p148
      %p150 = scmp.ne.s32.totalorder %s142, %s144
      %p151 = scmp.eq.s32.totalorder %s29, 1
      %p152 = por %p150, %p151
      %p153 = scmp.ne.s32.totalorder %s144, %s145
      %p154 = scmp.eq.s32.totalorder %s29, 0
      %p155 = por %p153, %p154
      %p156 = scmp.ne.s32.totalorder %s144, %s145
      %p157 = scmp.eq.s32.totalorder %s30, 1
      %p158 = por %p156, %p157
      %p160 = scmp.ne.s32.totalorder %s145, %s159
      %p161 = scmp.eq.s32.totalorder %s30, 0
      %p162 = por %p160, %p161
      %s164 = sadd.s32 %s163, 1
      %p167 = scmp.eq.s32.totalorder %s24, 1
      %p168 = scmp.ne.s32.totalorder %s163, %s165
      %p169 = scmp.eq.s32.totalorder %s24, 0
      %p170 = por %p168, %p169
      %p171 = scmp.ne.s32.totalorder %s163, %s165
      %p172 = scmp.eq.s32.totalorder %s29, 1
      %p173 = por %p171, %p172
      %p174 = scmp.ne.s32.totalorder %s165, %s166
      %p175 = scmp.eq.s32.totalorder %s29, 0
      %p176 = por %p174, %p175
      %p177 = scmp.ne.s32.totalorder %s165, %s166
      %p178 = scmp.eq.s32.totalorder %s30, 1
      %p179 = por %p177, %p178
      %p181 = scmp.ne.s32.totalorder %s166, %s180
      %p182 = scmp.eq.s32.totalorder %s30, 0
      %p183 = por %p181, %p182
      %s185 = sadd.s32 %s184, 1
      %p188 = scmp.eq.s32.totalorder %s24, 1
      %p189 = scmp.ne.s32.totalorder %s184, %s186
      %p190 = scmp.eq.s32.totalorder %s24, 0
      %p191 = por %p189, %p190
      %p192 = scmp.ne.s32.totalorder %s184, %s186
      %p193 = scmp.eq.s32.totalorder %s29, 1
      %p194 = por %p192, %p193
      %p195 = scmp.ne.s32.totalorder %s186, %s187
      %p196 = scmp.eq.s32.totalorder %s29, 0
      %p197 = por %p195, %p196
      %p198 = scmp.ne.s32.totalorder %s186, %s187
      %p199 = scmp.eq.s32.totalorder %s30, 1
      %p200 = por %p198, %p199
      %p202 = scmp.ne.s32.totalorder %s187, %s201
      %p203 = scmp.eq.s32.totalorder %s30, 0
      %p204 = por %p202, %p203
      %s206 = sadd.s32 %s205, 1
      %p209 = scmp.eq.s32.totalorder %s24, 1
      %p210 = scmp.ne.s32.totalorder %s205, %s207
      %p211 = scmp.eq.s32.totalorder %s24, 0
      %p212 = por %p210, %p211
      %p213 = scmp.ne.s32.totalorder %s205, %s207
      %p214 = scmp.eq.s32.totalorder %s29, 1
      %p215 = por %p213, %p214
      %p216 = scmp.ne.s32.totalorder %s207, %s208
      %p217 = scmp.eq.s32.totalorder %s29, 0
      %p218 = por %p216, %p217
      %p219 = scmp.ne.s32.totalorder %s207, %s208
      %p220 = scmp.eq.s32.totalorder %s30, 1
      %p221 = por %p219, %p220
      %p223 = scmp.ne.s32.totalorder %s208, %s222
      %p224 = scmp.eq.s32.totalorder %s30, 0
      %p225 = por %p223, %p224
      %s227 = sadd.s32 %s226, 1
      %p230 = scmp.eq.s32.totalorder %s24, 1
      %p231 = scmp.ne.s32.totalorder %s226, %s228
      %p232 = scmp.eq.s32.totalorder %s24, 0
      %p233 = por %p231, %p232
      %p234 = scmp.ne.s32.totalorder %s226, %s228
      %p235 = scmp.eq.s32.totalorder %s29, 1
      %p236 = por %p234, %p235
      %p237 = scmp.ne.s32.totalorder %s228, %s229
      %p238 = scmp.eq.s32.totalorder %s29, 0
      %p239 = por %p237, %p238
      %p240 = scmp.ne.s32.totalorder %s228, %s229
      %p241 = scmp.eq.s32.totalorder %s30, 1
      %p242 = por %p240, %p241
      %p244 = scmp.ne.s32.totalorder %s229, %s243
      %p245 = scmp.eq.s32.totalorder %s30, 0
      %p246 = por %p244, %p245
      %s247 = ssub.s32 %s24, %s31
      %p248 = scmp.eq.s32.totalorder %s247, 0
      %s250 = sadd.s32 %s249, 1
      %s251 = scalar_select %p248, %s249, %s250
      %p254 = pneg %p248
      %p255 = scmp.eq.s32.totalorder %s24, 1
      %p256 = por %p254, %p255
      %p257 = scmp.ne.s32.totalorder %s249, %s252
      %p258 = scmp.eq.s32.totalorder %s24, 0
      %p259 = por %p257, %p258
      %p260 = scmp.ne.s32.totalorder %s249, %s252
      %p261 = scmp.eq.s32.totalorder %s29, 1
      %p262 = por %p260, %p261
      %p263 = scmp.ne.s32.totalorder %s252, %s253
      %p264 = scmp.eq.s32.totalorder %s29, 0
      %p265 = por %p263, %p264
      %p266 = scmp.ne.s32.totalorder %s252, %s253
      %p267 = scmp.eq.s32.totalorder %s30, 1
      %p268 = por %p266, %p267
      %p270 = scmp.ne.s32.totalorder %s253, %s269
      %p271 = scmp.eq.s32.totalorder %s30, 0
      %p272 = por %p270, %p271
      %p273 = scmp.le.s32.totalorder 1, %s24
      %p274 = scmp.lt.s32.totalorder %s24, 3
      %p275 = pnand %p273, %p274
      %p276 = pneg %p275
      // Predicated region
      $region9: #{tpu_custom_call.1} parent=5 // pred_check
        _
      $region10: #{tpu_custom_call.1} parent=5 // pred_check_branch
        %278 = sbr.rel (%p275) target = $region12
      $region11: #{tpu_custom_call.1} parent=5 // pred_region
        %s279 = ssub.s32 %s24, 1
        // Predicated region
        $region13: #{tpu_custom_call.1} parent=11 // pred_check
          %p280 = pneg %p71
        $region14: #{tpu_custom_call.1} parent=11 // pred_check_branch
          %282 = sbr.rel (%p280) target = $region16
        $region15: #{tpu_custom_call.1} parent=11 // pred_region
          %284 = vsyncadd [#allocation7], 0
          %s285 = sshll.u32 %s1, 4
          %s286 = int_to_ptr.hbm [resolvable:$true] %s285
          %s287 = sshll.u32 [#allocation6], 4
          %s288 = int_to_ptr.vmem [resolvable:$true] %s287
          %293 = dma.hbm_to_vmem [thread:$0]  %s286, 1024, %s288, [#allocation7], 64, 64, 4
        $region16: #{tpu_custom_call.1} parent=11 // pred_fallthru
          _
        // Predicated region
        $region17: #{tpu_custom_call.1} parent=11 // pred_check
          %p294 = pneg %p92
        $region18: #{tpu_custom_call.1} parent=11 // pred_check_branch
          %296 = sbr.rel (%p294) target = $region20
        $region19: #{tpu_custom_call.1} parent=11 // pred_region
          _
        $region20: #{tpu_custom_call.1} parent=11 // pred_fallthru
          _
        // Predicated region
        $region21: #{tpu_custom_call.1} parent=11 // pred_check
          %p297 = pneg %p113
        $region22: #{tpu_custom_call.1} parent=11 // pred_check_branch
          %299 = sbr.rel (%p297) target = $region24
        $region23: #{tpu_custom_call.1} parent=11 // pred_region
          _
        $region24: #{tpu_custom_call.1} parent=11 // pred_fallthru
          _
        // Predicated region
        $region25: #{tpu_custom_call.1} parent=11 // pred_check
          %p300 = pneg %p134
        $region26: #{tpu_custom_call.1} parent=11 // pred_check_branch
          %302 = sbr.rel (%p300) target = $region28
        $region27: #{tpu_custom_call.1} parent=11 // pred_region
          %304 = vsyncadd [#allocation7], 0
          %s305 = sshll.u32 %s4, 4
          %s306 = int_to_ptr.hbm [resolvable:$true] %s305
          %s307 = sshll.u32 [#allocation8], 4
          %s308 = int_to_ptr.vmem [resolvable:$true] %s307
          %313 = dma.hbm_to_vmem [thread:$0]  %s306, 9216, %s308, [#allocation7], 64, 64, 4
        $region28: #{tpu_custom_call.1} parent=11 // pred_fallthru
          _
        // Predicated region
        $region29: #{tpu_custom_call.1} parent=11 // pred_check
          %p314 = pneg %p155
        $region30: #{tpu_custom_call.1} parent=11 // pred_check_branch
          %316 = sbr.rel (%p314) target = $region32
        $region31: #{tpu_custom_call.1} parent=11 // pred_region
          _
        $region32: #{tpu_custom_call.1} parent=11 // pred_fallthru
          _
        // Predicated region
        $region33: #{tpu_custom_call.1} parent=11 // pred_check
          %p317 = pneg %p176
        $region34: #{tpu_custom_call.1} parent=11 // pred_check_branch
          %319 = sbr.rel (%p317) target = $region36
        $region35: #{tpu_custom_call.1} parent=11 // pred_region
          _
        $region36: #{tpu_custom_call.1} parent=11 // pred_fallthru
          _
        // Predicated region
        $region37: #{tpu_custom_call.1} parent=11 // pred_check
          %p320 = pneg %p197
        $region38: #{tpu_custom_call.1} parent=11 // pred_check_branch
          %322 = sbr.rel (%p320) target = $region40
        $region39: #{tpu_custom_call.1} parent=11 // pred_region
          %324 = vsyncadd [#allocation10], 0
          %s325 = sshll.u32 %s7, 4
          %s326 = int_to_ptr.hbm [resolvable:$true] %s325
          %s327 = sshll.u32 [#allocation9], 4
          %s328 = int_to_ptr.vmem [resolvable:$true] %s327
          %333 = dma.hbm_to_vmem [thread:$0]  %s326, 1024, %s328, [#allocation10], 64, 64, 4
        $region40: #{tpu_custom_call.1} parent=11 // pred_fallthru
          _
        // Predicated region
        $region41: #{tpu_custom_call.1} parent=11 // pred_check
          %p334 = pneg %p218
        $region42: #{tpu_custom_call.1} parent=11 // pred_check_branch
          %336 = sbr.rel (%p334) target = $region44
        $region43: #{tpu_custom_call.1} parent=11 // pred_region
          _
        $region44: #{tpu_custom_call.1} parent=11 // pred_fallthru
          _
        // Predicated region
        $region45: #{tpu_custom_call.1} parent=11 // pred_check
          %p337 = pneg %p239
        $region46: #{tpu_custom_call.1} parent=11 // pred_check_branch
          %339 = sbr.rel (%p337) target = $region48
        $region47: #{tpu_custom_call.1} parent=11 // pred_region
          _
        $region48: #{tpu_custom_call.1} parent=11 // pred_fallthru
          _
      $region12: #{tpu_custom_call.1} parent=5 // pred_fallthru
        _
      %p340 = scmp.lt.s32.totalorder %s24, 2
      // Predicated region
      $region49: #{tpu_custom_call.1} parent=5 // pred_check
        %p341 = pneg %p340
      $region50: #{tpu_custom_call.1} parent=5 // pred_check_branch
        %343 = sbr.rel (%p341) target = $region52
      $region51: #{tpu_custom_call.1} parent=5 // pred_region
        // Predicated region
        $region53: #{tpu_custom_call.1} parent=51 // pred_check
          %p344 = pneg %p44
        $region54: #{tpu_custom_call.1} parent=51 // pred_check_branch
          %346 = sbr.rel (%p344) target = $region56
        $region55: #{tpu_custom_call.1} parent=51 // pred_region
          %s347 = sand.u32 %s34, 1
          %s348 = scalar_lea.sflag [#allocation4], %s347
          %s349 = sand.u32 %s34, 1
          %s350 = smul.addr %s349, 64
          %s351 = scalar_lea.vmem [#allocation3], %s350
          %353 = vsyncadd %s348, 0
          %s354 = smul.addr %s24, 8
          %s355 = smul.addr %s354, 8
          %s356 = scalar_lea.hbm %s0, %s355
          %s357 = sshll.u32 %s356, 4
          %s358 = int_to_ptr.hbm [resolvable:$true] %s357
          %s359 = sshll.u32 %s351, 4
          %s360 = int_to_ptr.vmem [resolvable:$true] %s359
          %365 = dma.hbm_to_vmem [thread:$0]  %s358, 1024, %s360, %s348, 128, 128, 8
        $region56: #{tpu_custom_call.1} parent=51 // pred_fallthru
          _
      $region52: #{tpu_custom_call.1} parent=5 // pred_fallthru
        _
      %p366 = scmp.le.s32.totalorder 1, %s24
      %p367 = scmp.lt.s32.totalorder %s24, 3
      %p368 = pnand %p366, %p367
      %p369 = pneg %p368
      // Predicated region
      $region57: #{tpu_custom_call.1} parent=5 // pred_check
        _
      $region58: #{tpu_custom_call.1} parent=5 // pred_check_branch
        %371 = sbr.rel (%p368) target = $region60
      $region59: #{tpu_custom_call.1} parent=5 // pred_region
        %s372 = ssub.s32 %s24, 1
        %s373 = sand.u32 %s37, 1
        %s374 = scalar_lea.sflag [#allocation4], %s373
        %s375 = sand.u32 %s37, 1
        %s376 = smul.addr %s375, 64
        %s377 = scalar_lea.vmem [#allocation3], %s376
        // Predicated region
        $region61: #{tpu_custom_call.1} parent=59 // pred_check
          %p378 = pneg %p50
        $region62: #{tpu_custom_call.1} parent=59 // pred_check_branch
          %380 = sbr.rel (%p378) target = $region64
        $region63: #{tpu_custom_call.1} parent=59 // pred_region
          %382 = dma.done %s374, 1024
        $region64: #{tpu_custom_call.1} parent=59 // pred_fallthru
          _
        // Predicated region
        $region65: #{tpu_custom_call.1} parent=59 // pred_check
          %p383 = pneg %p71
        $region66: #{tpu_custom_call.1} parent=59 // pred_check_branch
          %385 = sbr.rel (%p383) target = $region68
        $region67: #{tpu_custom_call.1} parent=59 // pred_region
          %387 = dma.done [#allocation7], 1024
        $region68: #{tpu_custom_call.1} parent=59 // pred_fallthru
          _
        // Predicated region
        $region69: #{tpu_custom_call.1} parent=59 // pred_check
          %p388 = pneg %p134
        $region70: #{tpu_custom_call.1} parent=59 // pred_check_branch
          %390 = sbr.rel (%p388) target = $region72
        $region71: #{tpu_custom_call.1} parent=59 // pred_region
          %392 = dma.done [#allocation7], 9216
        $region72: #{tpu_custom_call.1} parent=59 // pred_fallthru
          _
        // Predicated region
        $region73: #{tpu_custom_call.1} parent=59 // pred_check
          %p393 = pneg %p197
        $region74: #{tpu_custom_call.1} parent=59 // pred_check_branch
          %395 = sbr.rel (%p393) target = $region76
        $region75: #{tpu_custom_call.1} parent=59 // pred_region
          %397 = dma.done [#allocation10], 1024
        $region76: #{tpu_custom_call.1} parent=59 // pred_fallthru
          _
        %s398 = sand.u32 %s37, 1
        %s399 = scalar_lea.sflag [#allocation4], %s398
        %s400 = sand.u32 %s37, 1
        %s401 = smul.addr %s400, 64
        %s402 = scalar_lea.vmem [#allocation3], %s401
        %p403 = pneg %p50
        %p404 = pneg %p47
        %p405 = pneg %p71
        %p406 = pneg %p68
        %p407 = pneg %p92
        %p408 = pneg %p89
        %p409 = pneg %p113
        %p410 = pneg %p110
        %p411 = pneg %p134
        %p412 = pneg %p131
        %p413 = pneg %p155
        %p414 = pneg %p152
        %p415 = pneg %p176
        %p416 = pneg %p173
        %p417 = pneg %p197
        %p418 = pneg %p194
        %p419 = pneg %p218
        %p420 = pneg %p215
        %p421 = pneg %p239
        %p422 = pneg %p236
        %p423 = pneg %p265
        %p424 = pneg %p262
        %s425 = sand.u32 %s252, 1
        %s426 = scalar_lea.sflag [#allocation5], %s425
        %s427 = sand.u32 %s252, 1
        %s428 = smul.addr %s427, 64
        %s429 = scalar_lea.vmem [#allocation11], %s428
        %v430 = vld [vmem:[%s377] sm:$0xff]
        %v431 = vld [vmem:[%s377 + $0x8] sm:$0xff]
        %v432 = vld [vmem:[%s377 + $0x10] sm:$0xff]
        %v433 = vld [vmem:[%s377 + $0x18] sm:$0xff]
        %v434 = vld [vmem:[%s377 + $0x20] sm:$0xff]
        %v435 = vld [vmem:[%s377 + $0x28] sm:$0xff]
        %v436 = vld [vmem:[%s377 + $0x30] sm:$0xff]
        %v437 = vld [vmem:[%s377 + $0x38] sm:$0xff]
        %v438 = vpack.c.bf16 %v431, %v430
        %v439 = vpack.c.bf16 %v433, %v432
        %v440 = vpack.c.bf16 %v435, %v434
        %v441 = vpack.c.bf16 %v437, %v436
        %v442 = vld [vmem:[#allocation6] sm:$0xf]
        %v443 = vld [vmem:[#allocation6 + $0x4] sm:$0xf]
        %v444 = vld [vmem:[#allocation6 + $0x8] sm:$0xf]
        %v445 = vld [vmem:[#allocation6 + $0xc] sm:$0xf]
        %v446 = vld [vmem:[#allocation6 + $0x10] sm:$0xf]
        %v447 = vld [vmem:[#allocation6 + $0x14] sm:$0xf]
        %v448 = vld [vmem:[#allocation6 + $0x18] sm:$0xf]
        %v449 = vld [vmem:[#allocation6 + $0x1c] sm:$0xf]
        %v450 = vld [vmem:[#allocation6 + $0x20] sm:$0xf]
        %v451 = vld [vmem:[#allocation6 + $0x24] sm:$0xf]
        %v452 = vld [vmem:[#allocation6 + $0x28] sm:$0xf]
        %v453 = vld [vmem:[#allocation6 + $0x2c] sm:$0xf]
        %v454 = vld [vmem:[#allocation6 + $0x30] sm:$0xf]
        %v455 = vld [vmem:[#allocation6 + $0x34] sm:$0xf]
        %v456 = vld [vmem:[#allocation6 + $0x38] sm:$0xf]
        %v457 = vld [vmem:[#allocation6 + $0x3c] sm:$0xf]
        %v474 = vunpack.c.l.b16 %v442
        %v475 = vunpack.c.l.b16 %v443
        %v476 = vunpack.c.l.b16 %v444
        %v477 = vunpack.c.l.b16 %v445
        %v478 = vunpack.c.l.b16 %v446
        %v479 = vunpack.c.l.b16 %v447
        %v480 = vunpack.c.l.b16 %v448
        %v481 = vunpack.c.l.b16 %v449
        %v482 = vunpack.c.l.b16 %v450
        %v483 = vunpack.c.l.b16 %v451
        %v484 = vunpack.c.l.b16 %v452
        %v485 = vunpack.c.l.b16 %v453
        %v486 = vunpack.c.l.b16 %v454
        %v487 = vunpack.c.l.b16 %v455
        %v488 = vunpack.c.l.b16 %v456
        %v489 = vunpack.c.l.b16 %v457
        %v490 = vpack.c.b16 %v475, %v474
        %v491 = vpack.c.b16 %v477, %v476
        %v492 = vpack.c.b16 %v479, %v478
        %v493 = vpack.c.b16 %v481, %v480
        %v494 = vpack.c.b16 %v483, %v482
        %v495 = vpack.c.b16 %v485, %v484
        %v496 = vpack.c.b16 %v487, %v486
        %v497 = vpack.c.b16 %v489, %v488
        %506 = vmatpush.bf16.msra.mxu0 %v497
        %507 = vmatpush.bf16.msra.mxu0 %v496
        %508 = vmatpush.bf16.msra.mxu0 %v495
        %509 = vmatpush.bf16.msra.mxu0 %v494
        %510 = vmatpush.bf16.msra.mxu0 %v493
        %511 = vmatpush.bf16.msra.mxu0 %v492
        %512 = vmatpush.bf16.msra.mxu0 %v491
        %513 = vmatpush.bf16.msra.mxu0 %v490
        %514 = vmatmul.bf16.gmra.mxu0 %v438
        %v515 = vpop.f32.mrf.mxu0
        %v516 = vadd.f32 0.0, %v515
        %v517 = vpop.f32.mrf.mxu0
        %v518 = vadd.f32 0.0, %v517
        %519 = vmatmul.bf16.gmra.mxu0 %v439
        %v520 = vpop.f32.mrf.mxu0
        %v521 = vadd.f32 0.0, %v520
        %v522 = vpop.f32.mrf.mxu0
        %v523 = vadd.f32 0.0, %v522
        %524 = vmatmul.bf16.gmra.mxu0 %v440
        %v525 = vpop.f32.mrf.mxu0
        %v526 = vadd.f32 0.0, %v525
        %v527 = vpop.f32.mrf.mxu0
        %v528 = vadd.f32 0.0, %v527
        %529 = vmatmul.bf16.gmra.mxu0 %v441
        %v530 = vpop.f32.mrf.mxu0
        %v531 = vadd.f32 0.0, %v530
        %v532 = vpop.f32.mrf.mxu0
        %v533 = vadd.f32 0.0, %v532
        %534 = vdwg.mxu0
        %v535 = vld [vmem:[%s2] sm:$0x1]
        %v537 = vperm.slane %v535, 0
        %v539 = vmul.f32 %v516, %v537
        %v540 = vmul.f32 %v518, %v537
        %v541 = vmul.f32 %v521, %v537
        %v542 = vmul.f32 %v523, %v537
        %v543 = vmul.f32 %v526, %v537
        %v544 = vmul.f32 %v528, %v537
        %v545 = vmul.f32 %v531, %v537
        %v546 = vmul.f32 %v533, %v537
        %v547 = vld [vmem:[%s3] sm:$0x1]
        %v549 = vperm.slane %v547, 0
        %v551 = vadd.f32 %v539, %v549
        %v552 = vadd.f32 %v540, %v549
        %v553 = vadd.f32 %v541, %v549
        %v554 = vadd.f32 %v542, %v549
        %v555 = vadd.f32 %v543, %v549
        %v556 = vadd.f32 %v544, %v549
        %v557 = vadd.f32 %v545, %v549
        %v558 = vadd.f32 %v546, %v549
        %v559 = vmax.f32 %v551, 0.0
        %v560 = vmax.f32 %v552, 0.0
        %v561 = vmax.f32 %v553, 0.0
        %v562 = vmax.f32 %v554, 0.0
        %v563 = vmax.f32 %v555, 0.0
        %v564 = vmax.f32 %v556, 0.0
        %v565 = vmax.f32 %v557, 0.0
        %v566 = vmax.f32 %v558, 0.0
        %567 = vst [vmem:[#allocation2] sm:$0xff] 0.0
        %568 = vst [vmem:[#allocation2 + $0x8] sm:$0x3] 0.0
        %s569 = scalar_lea.vmem [#allocation2], 144
        %570 = vst [vmem:[%s569] sm:$0xff] 0.0
        %571 = vst [vmem:[%s569 + $0x8] sm:$0x3] 0.0
        %v580 = vrot.slane %v559, 7
        %v581 = vrot.slane %v560, 7
        %v582 = vrot.slane %v561, 7
        %v583 = vrot.slane %v562, 7
        %v584 = vrot.slane %v563, 7
        %v585 = vrot.slane %v564, 7
        %v586 = vrot.slane %v565, 7
        %v587 = vrot.slane %v566, 7
        %vm596 = vcmask 1040384
        %v597 = vsel %vm596, 0.0, %v580
        %v598 = vsel %vm596, 0.0, %v581
        %v599 = vsel %vm596, 0.0, %v582
        %v600 = vsel %vm596, 0.0, %v583
        %v601 = vsel %vm596, 0.0, %v584
        %v602 = vsel %vm596, 0.0, %v585
        %v603 = vsel %vm596, 0.0, %v586
        %v604 = vsel %vm596, 0.0, %v587
        %v605 = vsel %vm596, %v580, 0.0
        %v606 = vsel %vm596, %v581, 0.0
        %v607 = vsel %vm596, %v582, 0.0
        %v608 = vsel %vm596, %v583, 0.0
        %v609 = vsel %vm596, %v584, 0.0
        %v610 = vsel %vm596, %v585, 0.0
        %v611 = vsel %vm596, %v586, 0.0
        %v612 = vsel %vm596, %v587, 0.0
        %s613 = scalar_lea.vmem [#allocation2], 16
        %614 = vst [vmem:[%s613] sm:$0xff] %v597
        %615 = vst [vmem:[%s613 + $0x8] sm:$0x3] %v605
        %616 = vst [vmem:[%s613 + $0x10] sm:$0xff] %v598
        %617 = vst [vmem:[%s613 + $0x18] sm:$0x3] %v606
        %618 = vst [vmem:[%s613 + $0x20] sm:$0xff] %v599
        %619 = vst [vmem:[%s613 + $0x28] sm:$0x3] %v607
        %620 = vst [vmem:[%s613 + $0x30] sm:$0xff] %v600
        %621 = vst [vmem:[%s613 + $0x38] sm:$0x3] %v608
        %622 = vst [vmem:[%s613 + $0x40] sm:$0xff] %v601
        %623 = vst [vmem:[%s613 + $0x48] sm:$0x3] %v609
        %624 = vst [vmem:[%s613 + $0x50] sm:$0xff] %v602
        %625 = vst [vmem:[%s613 + $0x58] sm:$0x3] %v610
        %626 = vst [vmem:[%s613 + $0x60] sm:$0xff] %v603
        %627 = vst [vmem:[%s613 + $0x68] sm:$0x3] %v611
        %628 = vst [vmem:[%s613 + $0x70] sm:$0xff] %v604
        %629 = vst [vmem:[%s613 + $0x78] sm:$0x3] %v612
        %v630 = vld [vmem:[#allocation2] sm:$0xff]
        %v631 = vld [vmem:[#allocation2 + $0x8] sm:$0x3]
        %v632 = vld [vmem:[#allocation2 + $0x10] sm:$0xff]
        %v633 = vld [vmem:[#allocation2 + $0x18] sm:$0x3]
        %v634 = vld [vmem:[#allocation2 + $0x20] sm:$0xff]
        %v635 = vld [vmem:[#allocation2 + $0x28] sm:$0x3]
        %v636 = vld [vmem:[#allocation2 + $0x30] sm:$0xff]
        %v637 = vld [vmem:[#allocation2 + $0x38] sm:$0x3]
        %v638 = vld [vmem:[#allocation2 + $0x40] sm:$0xff]
        %v639 = vld [vmem:[#allocation2 + $0x48] sm:$0x3]
        %v640 = vld [vmem:[#allocation2 + $0x50] sm:$0xff]
        %v641 = vld [vmem:[#allocation2 + $0x58] sm:$0x3]
        %v642 = vld [vmem:[#allocation2 + $0x60] sm:$0xff]
        %v643 = vld [vmem:[#allocation2 + $0x68] sm:$0x3]
        %v644 = vld [vmem:[#allocation2 + $0x70] sm:$0xff]
        %v645 = vld [vmem:[#allocation2 + $0x78] sm:$0x3]
        %v646 = vpack.c.bf16 %v630, %v630
        %v647 = vpack.c.bf16 %v632, %v632
        %v648 = vpack.c.bf16 %v634, %v634
        %v649 = vpack.c.bf16 %v636, %v636
        %v650 = vpack.c.bf16 %v638, %v638
        %v651 = vpack.c.bf16 %v640, %v640
        %v652 = vpack.c.bf16 %v642, %v642
        %v653 = vpack.c.bf16 %v644, %v644
        %v654 = vpack.c.bf16 %v631, %v631
        %v655 = vpack.c.bf16 %v633, %v633
        %v656 = vpack.c.bf16 %v635, %v635
        %v657 = vpack.c.bf16 %v637, %v637
        %v658 = vpack.c.bf16 %v639, %v639
        %v659 = vpack.c.bf16 %v641, %v641
        %v660 = vpack.c.bf16 %v643, %v643
        %v661 = vpack.c.bf16 %v645, %v645
        %vm662 = vsmask.f32 3328
        %vm663 = vsmask.f32 7440
        %vm664 = vmor %vm662, %vm663
        %v666 = vshrl.u32 %v646, 16
        %v668 = vrot.slane %v666, 4
        %v669 = vshll.u32 %v646, 16
        %v671 = vrot.slane %v669, 5
        %v672 = vor.u32 %v668, %v671
        %v673 = vrot.slane %v672, 4
        %v675 = vshll.u32 %v654, 16
        %v677 = vrot.slane %v675, 5
        %v678 = vsel %vm664, %v673, %v677
        %v680 = vshrl.u32 %v647, 16
        %v682 = vrot.slane %v680, 4
        %v683 = vshll.u32 %v647, 16
        %v685 = vrot.slane %v683, 5
        %v686 = vor.u32 %v682, %v685
        %v687 = vrot.slane %v686, 4
        %v689 = vshll.u32 %v655, 16
        %v691 = vrot.slane %v689, 5
        %v692 = vsel %vm664, %v687, %v691
        %v694 = vshrl.u32 %v648, 16
        %v696 = vrot.slane %v694, 4
        %v697 = vshll.u32 %v648, 16
        %v699 = vrot.slane %v697, 5
        %v700 = vor.u32 %v696, %v699
        %v701 = vrot.slane %v700, 4
        %v703 = vshll.u32 %v656, 16
        %v705 = vrot.slane %v703, 5
        %v706 = vsel %vm664, %v701, %v705
        %v708 = vshrl.u32 %v649, 16
        %v710 = vrot.slane %v708, 4
        %v711 = vshll.u32 %v649, 16
        %v713 = vrot.slane %v711, 5
        %v714 = vor.u32 %v710, %v713
        %v715 = vrot.slane %v714, 4
        %v717 = vshll.u32 %v657, 16
        %v719 = vrot.slane %v717, 5
        %v720 = vsel %vm664, %v715, %v719
        %v722 = vshrl.u32 %v650, 16
        %v724 = vrot.slane %v722, 4
        %v725 = vshll.u32 %v650, 16
        %v727 = vrot.slane %v725, 5
        %v728 = vor.u32 %v724, %v727
        %v729 = vrot.slane %v728, 4
        %v731 = vshll.u32 %v658, 16
        %v733 = vrot.slane %v731, 5
        %v734 = vsel %vm664, %v729, %v733
        %v736 = vshrl.u32 %v651, 16
        %v738 = vrot.slane %v736, 4
        %v739 = vshll.u32 %v651, 16
        %v741 = vrot.slane %v739, 5
        %v742 = vor.u32 %v738, %v741
        %v743 = vrot.slane %v742, 4
        %v745 = vshll.u32 %v659, 16
        %v747 = vrot.slane %v745, 5
        %v748 = vsel %vm664, %v743, %v747
        %v750 = vshrl.u32 %v652, 16
        %v752 = vrot.slane %v750, 4
        %v753 = vshll.u32 %v652, 16
        %v755 = vrot.slane %v753, 5
        %v756 = vor.u32 %v752, %v755
        %v757 = vrot.slane %v756, 4
        %v759 = vshll.u32 %v660, 16
        %v761 = vrot.slane %v759, 5
        %v762 = vsel %vm664, %v757, %v761
        %v764 = vshrl.u32 %v653, 16
        %v766 = vrot.slane %v764, 4
        %v767 = vshll.u32 %v653, 16
        %v769 = vrot.slane %v767, 5
        %v770 = vor.u32 %v766, %v769
        %v771 = vrot.slane %v770, 4
        %v773 = vshll.u32 %v661, 16
        %v775 = vrot.slane %v773, 5
        %v776 = vsel %vm664, %v771, %v775
        %vm793 = vcmask 1042432
        %vm794 = vcmask 1046532
        %vm795 = vmor %vm793, %vm794
        %v796 = vrot.slane %v646, 5
        %v797 = vrot.slane %v796, 4
        %v798 = vrot.slane %v654, 5
        %v799 = vsel %vm795, %v797, %v798
        %v800 = vrot.slane %v647, 5
        %v801 = vrot.slane %v800, 4
        %v802 = vrot.slane %v655, 5
        %v803 = vsel %vm795, %v801, %v802
        %v804 = vrot.slane %v648, 5
        %v805 = vrot.slane %v804, 4
        %v806 = vrot.slane %v656, 5
        %v807 = vsel %vm795, %v805, %v806
        %v808 = vrot.slane %v649, 5
        %v809 = vrot.slane %v808, 4
        %v810 = vrot.slane %v657, 5
        %v811 = vsel %vm795, %v809, %v810
        %v812 = vrot.slane %v650, 5
        %v813 = vrot.slane %v812, 4
        %v814 = vrot.slane %v658, 5
        %v815 = vsel %vm795, %v813, %v814
        %v816 = vrot.slane %v651, 5
        %v817 = vrot.slane %v816, 4
        %v818 = vrot.slane %v659, 5
        %v819 = vsel %vm795, %v817, %v818
        %v820 = vrot.slane %v652, 5
        %v821 = vrot.slane %v820, 4
        %v822 = vrot.slane %v660, 5
        %v823 = vsel %vm795, %v821, %v822
        %v824 = vrot.slane %v653, 5
        %v825 = vrot.slane %v824, 4
        %v826 = vrot.slane %v661, 5
        %v827 = vsel %vm795, %v825, %v826
        %v828 = vld [vmem:[%s613] sm:$0xff]
        %v829 = vld [vmem:[%s613 + $0x8] sm:$0x3]
        %v830 = vld [vmem:[%s613 + $0x10] sm:$0xff]
        %v831 = vld [vmem:[%s613 + $0x18] sm:$0x3]
        %v832 = vld [vmem:[%s613 + $0x20] sm:$0xff]
        %v833 = vld [vmem:[%s613 + $0x28] sm:$0x3]
        %v834 = vld [vmem:[%s613 + $0x30] sm:$0xff]
        %v835 = vld [vmem:[%s613 + $0x38] sm:$0x3]
        %v836 = vld [vmem:[%s613 + $0x40] sm:$0xff]
        %v837 = vld [vmem:[%s613 + $0x48] sm:$0x3]
        %v838 = vld [vmem:[%s613 + $0x50] sm:$0xff]
        %v839 = vld [vmem:[%s613 + $0x58] sm:$0x3]
        %v840 = vld [vmem:[%s613 + $0x60] sm:$0xff]
        %v841 = vld [vmem:[%s613 + $0x68] sm:$0x3]
        %v842 = vld [vmem:[%s613 + $0x70] sm:$0xff]
        %v843 = vld [vmem:[%s613 + $0x78] sm:$0x3]
        %v844 = vpack.c.bf16 %v828, %v828
        %v845 = vpack.c.bf16 %v830, %v830
        %v846 = vpack.c.bf16 %v832, %v832
        %v847 = vpack.c.bf16 %v834, %v834
        %v848 = vpack.c.bf16 %v836, %v836
        %v849 = vpack.c.bf16 %v838, %v838
        %v850 = vpack.c.bf16 %v840, %v840
        %v851 = vpack.c.bf16 %v842, %v842
        %v852 = vpack.c.bf16 %v829, %v829
        %v853 = vpack.c.bf16 %v831, %v831
        %v854 = vpack.c.bf16 %v833, %v833
        %v855 = vpack.c.bf16 %v835, %v835
        %v856 = vpack.c.bf16 %v837, %v837
        %v857 = vpack.c.bf16 %v839, %v839
        %v858 = vpack.c.bf16 %v841, %v841
        %v859 = vpack.c.bf16 %v843, %v843
        %v861 = vshrl.u32 %v844, 16
        %v863 = vrot.slane %v861, 4
        %v864 = vshll.u32 %v844, 16
        %v866 = vrot.slane %v864, 5
        %v867 = vor.u32 %v863, %v866
        %v868 = vrot.slane %v867, 4
        %v870 = vshll.u32 %v852, 16
        %v872 = vrot.slane %v870, 5
        %v873 = vsel %vm664, %v868, %v872
        %v875 = vshrl.u32 %v845, 16
        %v877 = vrot.slane %v875, 4
        %v878 = vshll.u32 %v845, 16
        %v880 = vrot.slane %v878, 5
        %v881 = vor.u32 %v877, %v880
        %v882 = vrot.slane %v881, 4
        %v884 = vshll.u32 %v853, 16
        %v886 = vrot.slane %v884, 5
        %v887 = vsel %vm664, %v882, %v886
        %v889 = vshrl.u32 %v846, 16
        %v891 = vrot.slane %v889, 4
        %v892 = vshll.u32 %v846, 16
        %v894 = vrot.slane %v892, 5
        %v895 = vor.u32 %v891, %v894
        %v896 = vrot.slane %v895, 4
        %v898 = vshll.u32 %v854, 16
        %v900 = vrot.slane %v898, 5
        %v901 = vsel %vm664, %v896, %v900
        %v903 = vshrl.u32 %v847, 16
        %v905 = vrot.slane %v903, 4
        %v906 = vshll.u32 %v847, 16
        %v908 = vrot.slane %v906, 5
        %v909 = vor.u32 %v905, %v908
        %v910 = vrot.slane %v909, 4
        %v912 = vshll.u32 %v855, 16
        %v914 = vrot.slane %v912, 5
        %v915 = vsel %vm664, %v910, %v914
        %v917 = vshrl.u32 %v848, 16
        %v919 = vrot.slane %v917, 4
        %v920 = vshll.u32 %v848, 16
        %v922 = vrot.slane %v920, 5
        %v923 = vor.u32 %v919, %v922
        %v924 = vrot.slane %v923, 4
        %v926 = vshll.u32 %v856, 16
        %v928 = vrot.slane %v926, 5
        %v929 = vsel %vm664, %v924, %v928
        %v931 = vshrl.u32 %v849, 16
        %v933 = vrot.slane %v931, 4
        %v934 = vshll.u32 %v849, 16
        %v936 = vrot.slane %v934, 5
        %v937 = vor.u32 %v933, %v936
        %v938 = vrot.slane %v937, 4
        %v940 = vshll.u32 %v857, 16
        %v942 = vrot.slane %v940, 5
        %v943 = vsel %vm664, %v938, %v942
        %v945 = vshrl.u32 %v850, 16
        %v947 = vrot.slane %v945, 4
        %v948 = vshll.u32 %v850, 16
        %v950 = vrot.slane %v948, 5
        %v951 = vor.u32 %v947, %v950
        %v952 = vrot.slane %v951, 4
        %v954 = vshll.u32 %v858, 16
        %v956 = vrot.slane %v954, 5
        %v957 = vsel %vm664, %v952, %v956
        %v959 = vshrl.u32 %v851, 16
        %v961 = vrot.slane %v959, 4
        %v962 = vshll.u32 %v851, 16
        %v964 = vrot.slane %v962, 5
        %v965 = vor.u32 %v961, %v964
        %v966 = vrot.slane %v965, 4
        %v968 = vshll.u32 %v859, 16
        %v970 = vrot.slane %v968, 5
        %v971 = vsel %vm664, %v966, %v970
        %v988 = vrot.slane %v844, 5
        %v989 = vrot.slane %v988, 4
        %v990 = vrot.slane %v852, 5
        %v991 = vsel %vm795, %v989, %v990
        %v992 = vrot.slane %v845, 5
        %v993 = vrot.slane %v992, 4
        %v994 = vrot.slane %v853, 5
        %v995 = vsel %vm795, %v993, %v994
        %v996 = vrot.slane %v846, 5
        %v997 = vrot.slane %v996, 4
        %v998 = vrot.slane %v854, 5
        %v999 = vsel %vm795, %v997, %v998
        %v1000 = vrot.slane %v847, 5
        %v1001 = vrot.slane %v1000, 4
        %v1002 = vrot.slane %v855, 5
        %v1003 = vsel %vm795, %v1001, %v1002
        %v1004 = vrot.slane %v848, 5
        %v1005 = vrot.slane %v1004, 4
        %v1006 = vrot.slane %v856, 5
        %v1007 = vsel %vm795, %v1005, %v1006
        %v1008 = vrot.slane %v849, 5
        %v1009 = vrot.slane %v1008, 4
        %v1010 = vrot.slane %v857, 5
        %v1011 = vsel %vm795, %v1009, %v1010
        %v1012 = vrot.slane %v850, 5
        %v1013 = vrot.slane %v1012, 4
        %v1014 = vrot.slane %v858, 5
        %v1015 = vsel %vm795, %v1013, %v1014
        %v1016 = vrot.slane %v851, 5
        %v1017 = vrot.slane %v1016, 4
        %v1018 = vrot.slane %v859, 5
        %v1019 = vsel %vm795, %v1017, %v1018
        %s1020 = scalar_lea.vmem [#allocation2], 32
        %v1021 = vld [vmem:[%s1020] sm:$0xff]
        %v1022 = vld [vmem:[%s1020 + $0x8] sm:$0x3]
        %v1023 = vld [vmem:[%s1020 + $0x10] sm:$0xff]
        %v1024 = vld [vmem:[%s1020 + $0x18] sm:$0x3]
        %v1025 = vld [vmem:[%s1020 + $0x20] sm:$0xff]
        %v1026 = vld [vmem:[%s1020 + $0x28] sm:$0x3]
        %v1027 = vld [vmem:[%s1020 + $0x30] sm:$0xff]
        %v1028 = vld [vmem:[%s1020 + $0x38] sm:$0x3]
        %v1029 = vld [vmem:[%s1020 + $0x40] sm:$0xff]
        %v1030 = vld [vmem:[%s1020 + $0x48] sm:$0x3]
        %v1031 = vld [vmem:[%s1020 + $0x50] sm:$0xff]
        %v1032 = vld [vmem:[%s1020 + $0x58] sm:$0x3]
        %v1033 = vld [vmem:[%s1020 + $0x60] sm:$0xff]
        %v1034 = vld [vmem:[%s1020 + $0x68] sm:$0x3]
        %v1035 = vld [vmem:[%s1020 + $0x70] sm:$0xff]
        %v1036 = vld [vmem:[%s1020 + $0x78] sm:$0x3]
        %v1037 = vpack.c.bf16 %v1021, %v1021
        %v1038 = vpack.c.bf16 %v1023, %v1023
        %v1039 = vpack.c.bf16 %v1025, %v1025
        %v1040 = vpack.c.bf16 %v1027, %v1027
        %v1041 = vpack.c.bf16 %v1029, %v1029
        %v1042 = vpack.c.bf16 %v1031, %v1031
        %v1043 = vpack.c.bf16 %v1033, %v1033
        %v1044 = vpack.c.bf16 %v1035, %v1035
        %v1045 = vpack.c.bf16 %v1022, %v1022
        %v1046 = vpack.c.bf16 %v1024, %v1024
        %v1047 = vpack.c.bf16 %v1026, %v1026
        %v1048 = vpack.c.bf16 %v1028, %v1028
        %v1049 = vpack.c.bf16 %v1030, %v1030
        %v1050 = vpack.c.bf16 %v1032, %v1032
        %v1051 = vpack.c.bf16 %v1034, %v1034
        %v1052 = vpack.c.bf16 %v1036, %v1036
        %v1054 = vshrl.u32 %v1037, 16
        %v1056 = vrot.slane %v1054, 4
        %v1057 = vshll.u32 %v1037, 16
        %v1059 = vrot.slane %v1057, 5
        %v1060 = vor.u32 %v1056, %v1059
        %v1061 = vrot.slane %v1060, 4
        %v1063 = vshll.u32 %v1045, 16
        %v1065 = vrot.slane %v1063, 5
        %v1066 = vsel %vm664, %v1061, %v1065
        %v1068 = vshrl.u32 %v1038, 16
        %v1070 = vrot.slane %v1068, 4
        %v1071 = vshll.u32 %v1038, 16
        %v1073 = vrot.slane %v1071, 5
        %v1074 = vor.u32 %v1070, %v1073
        %v1075 = vrot.slane %v1074, 4
        %v1077 = vshll.u32 %v1046, 16
        %v1079 = vrot.slane %v1077, 5
        %v1080 = vsel %vm664, %v1075, %v1079
        %v1082 = vshrl.u32 %v1039, 16
        %v1084 = vrot.slane %v1082, 4
        %v1085 = vshll.u32 %v1039, 16
        %v1087 = vrot.slane %v1085, 5
        %v1088 = vor.u32 %v1084, %v1087
        %v1089 = vrot.slane %v1088, 4
        %v1091 = vshll.u32 %v1047, 16
        %v1093 = vrot.slane %v1091, 5
        %v1094 = vsel %vm664, %v1089, %v1093
        %v1096 = vshrl.u32 %v1040, 16
        %v1098 = vrot.slane %v1096, 4
        %v1099 = vshll.u32 %v1040, 16
        %v1101 = vrot.slane %v1099, 5
        %v1102 = vor.u32 %v1098, %v1101
        %v1103 = vrot.slane %v1102, 4
        %v1105 = vshll.u32 %v1048, 16
        %v1107 = vrot.slane %v1105, 5
        %v1108 = vsel %vm664, %v1103, %v1107
        %v1110 = vshrl.u32 %v1041, 16
        %v1112 = vrot.slane %v1110, 4
        %v1113 = vshll.u32 %v1041, 16
        %v1115 = vrot.slane %v1113, 5
        %v1116 = vor.u32 %v1112, %v1115
        %v1117 = vrot.slane %v1116, 4
        %v1119 = vshll.u32 %v1049, 16
        %v1121 = vrot.slane %v1119, 5
        %v1122 = vsel %vm664, %v1117, %v1121
        %v1124 = vshrl.u32 %v1042, 16
        %v1126 = vrot.slane %v1124, 4
        %v1127 = vshll.u32 %v1042, 16
        %v1129 = vrot.slane %v1127, 5
        %v1130 = vor.u32 %v1126, %v1129
        %v1131 = vrot.slane %v1130, 4
        %v1133 = vshll.u32 %v1050, 16
        %v1135 = vrot.slane %v1133, 5
        %v1136 = vsel %vm664, %v1131, %v1135
        %v1138 = vshrl.u32 %v1043, 16
        %v1140 = vrot.slane %v1138, 4
        %v1141 = vshll.u32 %v1043, 16
        %v1143 = vrot.slane %v1141, 5
        %v1144 = vor.u32 %v1140, %v1143
        %v1145 = vrot.slane %v1144, 4
        %v1147 = vshll.u32 %v1051, 16
        %v1149 = vrot.slane %v1147, 5
        %v1150 = vsel %vm664, %v1145, %v1149
        %v1152 = vshrl.u32 %v1044, 16
        %v1154 = vrot.slane %v1152, 4
        %v1155 = vshll.u32 %v1044, 16
        %v1157 = vrot.slane %v1155, 5
        %v1158 = vor.u32 %v1154, %v1157
        %v1159 = vrot.slane %v1158, 4
        %v1161 = vshll.u32 %v1052, 16
        %v1163 = vrot.slane %v1161, 5
        %v1164 = vsel %vm664, %v1159, %v1163
        %v1181 = vrot.slane %v1037, 5
        %v1182 = vrot.slane %v1181, 4
        %v1183 = vrot.slane %v1045, 5
        %v1184 = vsel %vm795, %v1182, %v1183
        %v1185 = vrot.slane %v1038, 5
        %v1186 = vrot.slane %v1185, 4
        %v1187 = vrot.slane %v1046, 5
        %v1188 = vsel %vm795, %v1186, %v1187
        %v1189 = vrot.slane %v1039, 5
        %v1190 = vrot.slane %v1189, 4
        %v1191 = vrot.slane %v1047, 5
        %v1192 = vsel %vm795, %v1190, %v1191
        %v1193 = vrot.slane %v1040, 5
        %v1194 = vrot.slane %v1193, 4
        %v1195 = vrot.slane %v1048, 5
        %v1196 = vsel %vm795, %v1194, %v1195
        %v1197 = vrot.slane %v1041, 5
        %v1198 = vrot.slane %v1197, 4
        %v1199 = vrot.slane %v1049, 5
        %v1200 = vsel %vm795, %v1198, %v1199
        %v1201 = vrot.slane %v1042, 5
        %v1202 = vrot.slane %v1201, 4
        %v1203 = vrot.slane %v1050, 5
        %v1204 = vsel %vm795, %v1202, %v1203
        %v1205 = vrot.slane %v1043, 5
        %v1206 = vrot.slane %v1205, 4
        %v1207 = vrot.slane %v1051, 5
        %v1208 = vsel %vm795, %v1206, %v1207
        %v1209 = vrot.slane %v1044, 5
        %v1210 = vrot.slane %v1209, 4
        %v1211 = vrot.slane %v1052, 5
        %v1212 = vsel %vm795, %v1210, %v1211
        %v1213 = vunpack.c.l.b16 %v646
        %v1214 = vunpack.c.l.b16 %v647
        %v1215 = vunpack.c.l.b16 %v648
        %v1216 = vunpack.c.l.b16 %v649
        %v1217 = vunpack.c.l.b16 %v650
        %v1218 = vunpack.c.l.b16 %v651
        %v1219 = vunpack.c.l.b16 %v652
        %v1220 = vunpack.c.l.b16 %v653
        %v1221 = vpack.c.b16 %v1214, %v1213
        %v1222 = vpack.c.b16 %v1216, %v1215
        %v1223 = vpack.c.b16 %v1218, %v1217
        %v1224 = vpack.c.b16 %v1220, %v1219
        %v1229 = vunpack.c.l.b16 %v678
        %v1230 = vunpack.c.l.b16 %v692
        %v1231 = vunpack.c.l.b16 %v706
        %v1232 = vunpack.c.l.b16 %v720
        %v1233 = vunpack.c.l.b16 %v734
        %v1234 = vunpack.c.l.b16 %v748
        %v1235 = vunpack.c.l.b16 %v762
        %v1236 = vunpack.c.l.b16 %v776
        %v1237 = vpack.c.b16 %v1230, %v1229
        %v1238 = vpack.c.b16 %v1232, %v1231
        %v1239 = vpack.c.b16 %v1234, %v1233
        %v1240 = vpack.c.b16 %v1236, %v1235
        %v1245 = vunpack.c.l.b16 %v799
        %v1246 = vunpack.c.l.b16 %v803
        %v1247 = vunpack.c.l.b16 %v807
        %v1248 = vunpack.c.l.b16 %v811
        %v1249 = vunpack.c.l.b16 %v815
        %v1250 = vunpack.c.l.b16 %v819
        %v1251 = vunpack.c.l.b16 %v823
        %v1252 = vunpack.c.l.b16 %v827
        %v1253 = vpack.c.b16 %v1246, %v1245
        %v1254 = vpack.c.b16 %v1248, %v1247
        %v1255 = vpack.c.b16 %v1250, %v1249
        %v1256 = vpack.c.b16 %v1252, %v1251
        %v1261 = vunpack.c.l.b16 %v844
        %v1262 = vunpack.c.l.b16 %v845
        %v1263 = vunpack.c.l.b16 %v846
        %v1264 = vunpack.c.l.b16 %v847
        %v1265 = vunpack.c.l.b16 %v848
        %v1266 = vunpack.c.l.b16 %v849
        %v1267 = vunpack.c.l.b16 %v850
        %v1268 = vunpack.c.l.b16 %v851
        %v1269 = vpack.c.b16 %v1262, %v1261
        %v1270 = vpack.c.b16 %v1264, %v1263
        %v1271 = vpack.c.b16 %v1266, %v1265
        %v1272 = vpack.c.b16 %v1268, %v1267
        %v1277 = vunpack.c.l.b16 %v873
        %v1278 = vunpack.c.l.b16 %v887
        %v1279 = vunpack.c.l.b16 %v901
        %v1280 = vunpack.c.l.b16 %v915
        %v1281 = vunpack.c.l.b16 %v929
        %v1282 = vunpack.c.l.b16 %v943
        %v1283 = vunpack.c.l.b16 %v957
        %v1284 = vunpack.c.l.b16 %v971
        %v1285 = vpack.c.b16 %v1278, %v1277
        %v1286 = vpack.c.b16 %v1280, %v1279
        %v1287 = vpack.c.b16 %v1282, %v1281
        %v1288 = vpack.c.b16 %v1284, %v1283
        %v1293 = vunpack.c.l.b16 %v991
        %v1294 = vunpack.c.l.b16 %v995
        %v1295 = vunpack.c.l.b16 %v999
        %v1296 = vunpack.c.l.b16 %v1003
        %v1297 = vunpack.c.l.b16 %v1007
        %v1298 = vunpack.c.l.b16 %v1011
        %v1299 = vunpack.c.l.b16 %v1015
        %v1300 = vunpack.c.l.b16 %v1019
        %v1301 = vpack.c.b16 %v1294, %v1293
        %v1302 = vpack.c.b16 %v1296, %v1295
        %v1303 = vpack.c.b16 %v1298, %v1297
        %v1304 = vpack.c.b16 %v1300, %v1299
        %v1309 = vunpack.c.l.b16 %v1037
        %v1310 = vunpack.c.l.b16 %v1038
        %v1311 = vunpack.c.l.b16 %v1039
        %v1312 = vunpack.c.l.b16 %v1040
        %v1313 = vunpack.c.l.b16 %v1041
        %v1314 = vunpack.c.l.b16 %v1042
        %v1315 = vunpack.c.l.b16 %v1043
        %v1316 = vunpack.c.l.b16 %v1044
        %v1317 = vpack.c.b16 %v1310, %v1309
        %v1318 = vpack.c.b16 %v1312, %v1311
        %v1319 = vpack.c.b16 %v1314, %v1313
        %v1320 = vpack.c.b16 %v1316, %v1315
        %v1325 = vunpack.c.l.b16 %v1066
        %v1326 = vunpack.c.l.b16 %v1080
        %v1327 = vunpack.c.l.b16 %v1094
        %v1328 = vunpack.c.l.b16 %v1108
        %v1329 = vunpack.c.l.b16 %v1122
        %v1330 = vunpack.c.l.b16 %v1136
        %v1331 = vunpack.c.l.b16 %v1150
        %v1332 = vunpack.c.l.b16 %v1164
        %v1333 = vpack.c.b16 %v1326, %v1325
        %v1334 = vpack.c.b16 %v1328, %v1327
        %v1335 = vpack.c.b16 %v1330, %v1329
        %v1336 = vpack.c.b16 %v1332, %v1331
        %v1341 = vunpack.c.l.b16 %v1184
        %v1342 = vunpack.c.l.b16 %v1188
        %v1343 = vunpack.c.l.b16 %v1192
        %v1344 = vunpack.c.l.b16 %v1196
        %v1345 = vunpack.c.l.b16 %v1200
        %v1346 = vunpack.c.l.b16 %v1204
        %v1347 = vunpack.c.l.b16 %v1208
        %v1348 = vunpack.c.l.b16 %v1212
        %v1349 = vpack.c.b16 %v1342, %v1341
        %v1350 = vpack.c.b16 %v1344, %v1343
        %v1351 = vpack.c.b16 %v1346, %v1345
        %v1352 = vpack.c.b16 %v1348, %v1347
        %v1357 = vld [vmem:[#allocation8] sm:$0xf]
        %v1358 = vld [vmem:[#allocation8 + $0x4] sm:$0xf]
        %v1359 = vld [vmem:[#allocation8 + $0x8] sm:$0xf]
        %v1360 = vld [vmem:[#allocation8 + $0xc] sm:$0xf]
        %v1361 = vld [vmem:[#allocation8 + $0x10] sm:$0xf]
        %v1362 = vld [vmem:[#allocation8 + $0x14] sm:$0xf]
        %v1363 = vld [vmem:[#allocation8 + $0x18] sm:$0xf]
        %v1364 = vld [vmem:[#allocation8 + $0x1c] sm:$0xf]
        %v1365 = vld [vmem:[#allocation8 + $0x20] sm:$0xf]
        %v1366 = vld [vmem:[#allocation8 + $0x24] sm:$0xf]
        %v1367 = vld [vmem:[#allocation8 + $0x28] sm:$0xf]
        %v1368 = vld [vmem:[#allocation8 + $0x2c] sm:$0xf]
        %v1369 = vld [vmem:[#allocation8 + $0x30] sm:$0xf]
        %v1370 = vld [vmem:[#allocation8 + $0x34] sm:$0xf]
        %v1371 = vld [vmem:[#allocation8 + $0x38] sm:$0xf]
        %v1372 = vld [vmem:[#allocation8 + $0x3c] sm:$0xf]
        %v1373 = vld [vmem:[#allocation8 + $0x40] sm:$0xf]
        %v1374 = vld [vmem:[#allocation8 + $0x44] sm:$0xf]
        %v1375 = vld [vmem:[#allocation8 + $0x48] sm:$0xf]
        %v1376 = vld [vmem:[#allocation8 + $0x4c] sm:$0xf]
        %v1377 = vld [vmem:[#allocation8 + $0x50] sm:$0xf]
        %v1378 = vld [vmem:[#allocation8 + $0x54] sm:$0xf]
        %v1379 = vld [vmem:[#allocation8 + $0x58] sm:$0xf]
        %v1380 = vld [vmem:[#allocation8 + $0x5c] sm:$0xf]
        %v1381 = vld [vmem:[#allocation8 + $0x60] sm:$0xf]
        %v1382 = vld [vmem:[#allocation8 + $0x64] sm:$0xf]
        %v1383 = vld [vmem:[#allocation8 + $0x68] sm:$0xf]
        %v1384 = vld [vmem:[#allocation8 + $0x6c] sm:$0xf]
        %v1385 = vld [vmem:[#allocation8 + $0x70] sm:$0xf]
        %v1386 = vld [vmem:[#allocation8 + $0x74] sm:$0xf]
        %v1387 = vld [vmem:[#allocation8 + $0x78] sm:$0xf]
        %v1388 = vld [vmem:[#allocation8 + $0x7c] sm:$0xf]
        %v1389 = vld [vmem:[#allocation8 + $0x80] sm:$0xf]
        %v1390 = vld [vmem:[#allocation8 + $0x84] sm:$0xf]
        %v1391 = vld [vmem:[#allocation8 + $0x88] sm:$0xf]
        %v1392 = vld [vmem:[#allocation8 + $0x8c] sm:$0xf]
        %v1393 = vld [vmem:[#allocation8 + $0x90] sm:$0xf]
        %v1394 = vld [vmem:[#allocation8 + $0x94] sm:$0xf]
        %v1395 = vld [vmem:[#allocation8 + $0x98] sm:$0xf]
        %v1396 = vld [vmem:[#allocation8 + $0x9c] sm:$0xf]
        %v1397 = vld [vmem:[#allocation8 + $0xa0] sm:$0xf]
        %v1398 = vld [vmem:[#allocation8 + $0xa4] sm:$0xf]
        %v1399 = vld [vmem:[#allocation8 + $0xa8] sm:$0xf]
        %v1400 = vld [vmem:[#allocation8 + $0xac] sm:$0xf]
        %v1401 = vld [vmem:[#allocation8 + $0xb0] sm:$0xf]
        %v1402 = vld [vmem:[#allocation8 + $0xb4] sm:$0xf]
        %v1403 = vld [vmem:[#allocation8 + $0xb8] sm:$0xf]
        %v1404 = vld [vmem:[#allocation8 + $0xbc] sm:$0xf]
        %v1405 = vld [vmem:[#allocation8 + $0xc0] sm:$0xf]
        %v1406 = vld [vmem:[#allocation8 + $0xc4] sm:$0xf]
        %v1407 = vld [vmem:[#allocation8 + $0xc8] sm:$0xf]
        %v1408 = vld [vmem:[#allocation8 + $0xcc] sm:$0xf]
        %v1409 = vld [vmem:[#allocation8 + $0xd0] sm:$0xf]
        %v1410 = vld [vmem:[#allocation8 + $0xd4] sm:$0xf]
        %v1411 = vld [vmem:[#allocation8 + $0xd8] sm:$0xf]
        %v1412 = vld [vmem:[#allocation8 + $0xdc] sm:$0xf]
        %v1413 = vld [vmem:[#allocation8 + $0xe0] sm:$0xf]
        %v1414 = vld [vmem:[#allocation8 + $0xe4] sm:$0xf]
        %v1415 = vld [vmem:[#allocation8 + $0xe8] sm:$0xf]
        %v1416 = vld [vmem:[#allocation8 + $0xec] sm:$0xf]
        %v1417 = vld [vmem:[#allocation8 + $0xf0] sm:$0xf]
        %v1418 = vld [vmem:[#allocation8 + $0xf4] sm:$0xf]
        %v1419 = vld [vmem:[#allocation8 + $0xf8] sm:$0xf]
        %v1420 = vld [vmem:[#allocation8 + $0xfc] sm:$0xf]
        %v1421 = vld [vmem:[#allocation8 + $0x100] sm:$0xf]
        %v1422 = vld [vmem:[#allocation8 + $0x104] sm:$0xf]
        %v1423 = vld [vmem:[#allocation8 + $0x108] sm:$0xf]
        %v1424 = vld [vmem:[#allocation8 + $0x10c] sm:$0xf]
        %v1425 = vld [vmem:[#allocation8 + $0x110] sm:$0xf]
        %v1426 = vld [vmem:[#allocation8 + $0x114] sm:$0xf]
        %v1427 = vld [vmem:[#allocation8 + $0x118] sm:$0xf]
        %v1428 = vld [vmem:[#allocation8 + $0x11c] sm:$0xf]
        %v1429 = vld [vmem:[#allocation8 + $0x120] sm:$0xf]
        %v1430 = vld [vmem:[#allocation8 + $0x124] sm:$0xf]
        %v1431 = vld [vmem:[#allocation8 + $0x128] sm:$0xf]
        %v1432 = vld [vmem:[#allocation8 + $0x12c] sm:$0xf]
        %v1433 = vld [vmem:[#allocation8 + $0x130] sm:$0xf]
        %v1434 = vld [vmem:[#allocation8 + $0x134] sm:$0xf]
        %v1435 = vld [vmem:[#allocation8 + $0x138] sm:$0xf]
        %v1436 = vld [vmem:[#allocation8 + $0x13c] sm:$0xf]
        %v1437 = vld [vmem:[#allocation8 + $0x140] sm:$0xf]
        %v1438 = vld [vmem:[#allocation8 + $0x144] sm:$0xf]
        %v1439 = vld [vmem:[#allocation8 + $0x148] sm:$0xf]
        %v1440 = vld [vmem:[#allocation8 + $0x14c] sm:$0xf]
        %v1441 = vld [vmem:[#allocation8 + $0x150] sm:$0xf]
        %v1442 = vld [vmem:[#allocation8 + $0x154] sm:$0xf]
        %v1443 = vld [vmem:[#allocation8 + $0x158] sm:$0xf]
        %v1444 = vld [vmem:[#allocation8 + $0x15c] sm:$0xf]
        %v1445 = vld [vmem:[#allocation8 + $0x160] sm:$0xf]
        %v1446 = vld [vmem:[#allocation8 + $0x164] sm:$0xf]
        %v1447 = vld [vmem:[#allocation8 + $0x168] sm:$0xf]
        %v1448 = vld [vmem:[#allocation8 + $0x16c] sm:$0xf]
        %v1449 = vld [vmem:[#allocation8 + $0x170] sm:$0xf]
        %v1450 = vld [vmem:[#allocation8 + $0x174] sm:$0xf]
        %v1451 = vld [vmem:[#allocation8 + $0x178] sm:$0xf]
        %v1452 = vld [vmem:[#allocation8 + $0x17c] sm:$0xf]
        %v1453 = vld [vmem:[#allocation8 + $0x180] sm:$0xf]
        %v1454 = vld [vmem:[#allocation8 + $0x184] sm:$0xf]
        %v1455 = vld [vmem:[#allocation8 + $0x188] sm:$0xf]
        %v1456 = vld [vmem:[#allocation8 + $0x18c] sm:$0xf]
        %v1457 = vld [vmem:[#allocation8 + $0x190] sm:$0xf]
        %v1458 = vld [vmem:[#allocation8 + $0x194] sm:$0xf]
        %v1459 = vld [vmem:[#allocation8 + $0x198] sm:$0xf]
        %v1460 = vld [vmem:[#allocation8 + $0x19c] sm:$0xf]
        %v1461 = vld [vmem:[#allocation8 + $0x1a0] sm:$0xf]
        %v1462 = vld [vmem:[#allocation8 + $0x1a4] sm:$0xf]
        %v1463 = vld [vmem:[#allocation8 + $0x1a8] sm:$0xf]
        %v1464 = vld [vmem:[#allocation8 + $0x1ac] sm:$0xf]
        %v1465 = vld [vmem:[#allocation8 + $0x1b0] sm:$0xf]
        %v1466 = vld [vmem:[#allocation8 + $0x1b4] sm:$0xf]
        %v1467 = vld [vmem:[#allocation8 + $0x1b8] sm:$0xf]
        %v1468 = vld [vmem:[#allocation8 + $0x1bc] sm:$0xf]
        %v1469 = vld [vmem:[#allocation8 + $0x1c0] sm:$0xf]
        %v1470 = vld [vmem:[#allocation8 + $0x1c4] sm:$0xf]
        %v1471 = vld [vmem:[#allocation8 + $0x1c8] sm:$0xf]
        %v1472 = vld [vmem:[#allocation8 + $0x1cc] sm:$0xf]
        %v1473 = vld [vmem:[#allocation8 + $0x1d0] sm:$0xf]
        %v1474 = vld [vmem:[#allocation8 + $0x1d4] sm:$0xf]
        %v1475 = vld [vmem:[#allocation8 + $0x1d8] sm:$0xf]
        %v1476 = vld [vmem:[#allocation8 + $0x1dc] sm:$0xf]
        %v1477 = vld [vmem:[#allocation8 + $0x1e0] sm:$0xf]
        %v1478 = vld [vmem:[#allocation8 + $0x1e4] sm:$0xf]
        %v1479 = vld [vmem:[#allocation8 + $0x1e8] sm:$0xf]
        %v1480 = vld [vmem:[#allocation8 + $0x1ec] sm:$0xf]
        %v1481 = vld [vmem:[#allocation8 + $0x1f0] sm:$0xf]
        %v1482 = vld [vmem:[#allocation8 + $0x1f4] sm:$0xf]
        %v1483 = vld [vmem:[#allocation8 + $0x1f8] sm:$0xf]
        %v1484 = vld [vmem:[#allocation8 + $0x1fc] sm:$0xf]
        %v1485 = vld [vmem:[#allocation8 + $0x200] sm:$0xf]
        %v1486 = vld [vmem:[#allocation8 + $0x204] sm:$0xf]
        %v1487 = vld [vmem:[#allocation8 + $0x208] sm:$0xf]
        %v1488 = vld [vmem:[#allocation8 + $0x20c] sm:$0xf]
        %v1489 = vld [vmem:[#allocation8 + $0x210] sm:$0xf]
        %v1490 = vld [vmem:[#allocation8 + $0x214] sm:$0xf]
        %v1491 = vld [vmem:[#allocation8 + $0x218] sm:$0xf]
        %v1492 = vld [vmem:[#allocation8 + $0x21c] sm:$0xf]
        %v1493 = vld [vmem:[#allocation8 + $0x220] sm:$0xf]
        %v1494 = vld [vmem:[#allocation8 + $0x224] sm:$0xf]
        %v1495 = vld [vmem:[#allocation8 + $0x228] sm:$0xf]
        %v1496 = vld [vmem:[#allocation8 + $0x22c] sm:$0xf]
        %v1497 = vld [vmem:[#allocation8 + $0x230] sm:$0xf]
        %v1498 = vld [vmem:[#allocation8 + $0x234] sm:$0xf]
        %v1499 = vld [vmem:[#allocation8 + $0x238] sm:$0xf]
        %v1500 = vld [vmem:[#allocation8 + $0x23c] sm:$0xf]
        %v1645 = vunpack.c.l.b16 %v1357
        %v1646 = vunpack.c.l.b16 %v1358
        %v1647 = vunpack.c.l.b16 %v1359
        %v1648 = vunpack.c.l.b16 %v1360
        %v1649 = vunpack.c.l.b16 %v1361
        %v1650 = vunpack.c.l.b16 %v1362
        %v1651 = vunpack.c.l.b16 %v1363
        %v1652 = vunpack.c.l.b16 %v1364
        %v1653 = vunpack.c.l.b16 %v1365
        %v1654 = vunpack.c.l.b16 %v1366
        %v1655 = vunpack.c.l.b16 %v1367
        %v1656 = vunpack.c.l.b16 %v1368
        %v1657 = vunpack.c.l.b16 %v1369
        %v1658 = vunpack.c.l.b16 %v1370
        %v1659 = vunpack.c.l.b16 %v1371
        %v1660 = vunpack.c.l.b16 %v1372
        %v1661 = vunpack.c.l.b16 %v1373
        %v1662 = vunpack.c.l.b16 %v1374
        %v1663 = vunpack.c.l.b16 %v1375
        %v1664 = vunpack.c.l.b16 %v1376
        %v1665 = vunpack.c.l.b16 %v1377
        %v1666 = vunpack.c.l.b16 %v1378
        %v1667 = vunpack.c.l.b16 %v1379
        %v1668 = vunpack.c.l.b16 %v1380
        %v1669 = vunpack.c.l.b16 %v1381
        %v1670 = vunpack.c.l.b16 %v1382
        %v1671 = vunpack.c.l.b16 %v1383
        %v1672 = vunpack.c.l.b16 %v1384
        %v1673 = vunpack.c.l.b16 %v1385
        %v1674 = vunpack.c.l.b16 %v1386
        %v1675 = vunpack.c.l.b16 %v1387
        %v1676 = vunpack.c.l.b16 %v1388
        %v1677 = vunpack.c.l.b16 %v1389
        %v1678 = vunpack.c.l.b16 %v1390
        %v1679 = vunpack.c.l.b16 %v1391
        %v1680 = vunpack.c.l.b16 %v1392
        %v1681 = vunpack.c.l.b16 %v1393
        %v1682 = vunpack.c.l.b16 %v1394
        %v1683 = vunpack.c.l.b16 %v1395
        %v1684 = vunpack.c.l.b16 %v1396
        %v1685 = vunpack.c.l.b16 %v1397
        %v1686 = vunpack.c.l.b16 %v1398
        %v1687 = vunpack.c.l.b16 %v1399
        %v1688 = vunpack.c.l.b16 %v1400
        %v1689 = vunpack.c.l.b16 %v1401
        %v1690 = vunpack.c.l.b16 %v1402
        %v1691 = vunpack.c.l.b16 %v1403
        %v1692 = vunpack.c.l.b16 %v1404
        %v1693 = vunpack.c.l.b16 %v1405
        %v1694 = vunpack.c.l.b16 %v1406
        %v1695 = vunpack.c.l.b16 %v1407
        %v1696 = vunpack.c.l.b16 %v1408
        %v1697 = vunpack.c.l.b16 %v1409
        %v1698 = vunpack.c.l.b16 %v1410
        %v1699 = vunpack.c.l.b16 %v1411
        %v1700 = vunpack.c.l.b16 %v1412
        %v1701 = vunpack.c.l.b16 %v1413
        %v1702 = vunpack.c.l.b16 %v1414
        %v1703 = vunpack.c.l.b16 %v1415
        %v1704 = vunpack.c.l.b16 %v1416
        %v1705 = vunpack.c.l.b16 %v1417
        %v1706 = vunpack.c.l.b16 %v1418
        %v1707 = vunpack.c.l.b16 %v1419
        %v1708 = vunpack.c.l.b16 %v1420
        %v1709 = vunpack.c.l.b16 %v1421
        %v1710 = vunpack.c.l.b16 %v1422
        %v1711 = vunpack.c.l.b16 %v1423
        %v1712 = vunpack.c.l.b16 %v1424
        %v1713 = vunpack.c.l.b16 %v1425
        %v1714 = vunpack.c.l.b16 %v1426
        %v1715 = vunpack.c.l.b16 %v1427
        %v1716 = vunpack.c.l.b16 %v1428
        %v1717 = vunpack.c.l.b16 %v1429
        %v1718 = vunpack.c.l.b16 %v1430
        %v1719 = vunpack.c.l.b16 %v1431
        %v1720 = vunpack.c.l.b16 %v1432
        %v1721 = vunpack.c.l.b16 %v1433
        %v1722 = vunpack.c.l.b16 %v1434
        %v1723 = vunpack.c.l.b16 %v1435
        %v1724 = vunpack.c.l.b16 %v1436
        %v1725 = vunpack.c.l.b16 %v1437
        %v1726 = vunpack.c.l.b16 %v1438
        %v1727 = vunpack.c.l.b16 %v1439
        %v1728 = vunpack.c.l.b16 %v1440
        %v1729 = vunpack.c.l.b16 %v1441
        %v1730 = vunpack.c.l.b16 %v1442
        %v1731 = vunpack.c.l.b16 %v1443
        %v1732 = vunpack.c.l.b16 %v1444
        %v1733 = vunpack.c.l.b16 %v1445
        %v1734 = vunpack.c.l.b16 %v1446
        %v1735 = vunpack.c.l.b16 %v1447
        %v1736 = vunpack.c.l.b16 %v1448
        %v1737 = vunpack.c.l.b16 %v1449
        %v1738 = vunpack.c.l.b16 %v1450
        %v1739 = vunpack.c.l.b16 %v1451
        %v1740 = vunpack.c.l.b16 %v1452
        %v1741 = vunpack.c.l.b16 %v1453
        %v1742 = vunpack.c.l.b16 %v1454
        %v1743 = vunpack.c.l.b16 %v1455
        %v1744 = vunpack.c.l.b16 %v1456
        %v1745 = vunpack.c.l.b16 %v1457
        %v1746 = vunpack.c.l.b16 %v1458
        %v1747 = vunpack.c.l.b16 %v1459
        %v1748 = vunpack.c.l.b16 %v1460
        %v1749 = vunpack.c.l.b16 %v1461
        %v1750 = vunpack.c.l.b16 %v1462
        %v1751 = vunpack.c.l.b16 %v1463
        %v1752 = vunpack.c.l.b16 %v1464
        %v1753 = vunpack.c.l.b16 %v1465
        %v1754 = vunpack.c.l.b16 %v1466
        %v1755 = vunpack.c.l.b16 %v1467
        %v1756 = vunpack.c.l.b16 %v1468
        %v1757 = vunpack.c.l.b16 %v1469
        %v1758 = vunpack.c.l.b16 %v1470
        %v1759 = vunpack.c.l.b16 %v1471
        %v1760 = vunpack.c.l.b16 %v1472
        %v1761 = vunpack.c.l.b16 %v1473
        %v1762 = vunpack.c.l.b16 %v1474
        %v1763 = vunpack.c.l.b16 %v1475
        %v1764 = vunpack.c.l.b16 %v1476
        %v1765 = vunpack.c.l.b16 %v1477
        %v1766 = vunpack.c.l.b16 %v1478
        %v1767 = vunpack.c.l.b16 %v1479
        %v1768 = vunpack.c.l.b16 %v1480
        %v1769 = vunpack.c.l.b16 %v1481
        %v1770 = vunpack.c.l.b16 %v1482
        %v1771 = vunpack.c.l.b16 %v1483
        %v1772 = vunpack.c.l.b16 %v1484
        %v1773 = vunpack.c.l.b16 %v1485
        %v1774 = vunpack.c.l.b16 %v1486
        %v1775 = vunpack.c.l.b16 %v1487
        %v1776 = vunpack.c.l.b16 %v1488
        %v1777 = vunpack.c.l.b16 %v1489
        %v1778 = vunpack.c.l.b16 %v1490
        %v1779 = vunpack.c.l.b16 %v1491
        %v1780 = vunpack.c.l.b16 %v1492
        %v1781 = vunpack.c.l.b16 %v1493
        %v1782 = vunpack.c.l.b16 %v1494
        %v1783 = vunpack.c.l.b16 %v1495
        %v1784 = vunpack.c.l.b16 %v1496
        %v1785 = vunpack.c.l.b16 %v1497
        %v1786 = vunpack.c.l.b16 %v1498
        %v1787 = vunpack.c.l.b16 %v1499
        %v1788 = vunpack.c.l.b16 %v1500
        %v1789 = vpack.c.b16 %v1646, %v1645
        %v1790 = vpack.c.b16 %v1648, %v1647
        %v1791 = vpack.c.b16 %v1650, %v1649
        %v1792 = vpack.c.b16 %v1652, %v1651
        %v1793 = vpack.c.b16 %v1654, %v1653
        %v1794 = vpack.c.b16 %v1656, %v1655
        %v1795 = vpack.c.b16 %v1658, %v1657
        %v1796 = vpack.c.b16 %v1660, %v1659
        %v1797 = vpack.c.b16 %v1662, %v1661
        %v1798 = vpack.c.b16 %v1664, %v1663
        %v1799 = vpack.c.b16 %v1666, %v1665
        %v1800 = vpack.c.b16 %v1668, %v1667
        %v1801 = vpack.c.b16 %v1670, %v1669
        %v1802 = vpack.c.b16 %v1672, %v1671
        %v1803 = vpack.c.b16 %v1674, %v1673
        %v1804 = vpack.c.b16 %v1676, %v1675
        %v1805 = vpack.c.b16 %v1678, %v1677
        %v1806 = vpack.c.b16 %v1680, %v1679
        %v1807 = vpack.c.b16 %v1682, %v1681
        %v1808 = vpack.c.b16 %v1684, %v1683
        %v1809 = vpack.c.b16 %v1686, %v1685
        %v1810 = vpack.c.b16 %v1688, %v1687
        %v1811 = vpack.c.b16 %v1690, %v1689
        %v1812 = vpack.c.b16 %v1692, %v1691
        %v1813 = vpack.c.b16 %v1694, %v1693
        %v1814 = vpack.c.b16 %v1696, %v1695
        %v1815 = vpack.c.b16 %v1698, %v1697
        %v1816 = vpack.c.b16 %v1700, %v1699
        %v1817 = vpack.c.b16 %v1702, %v1701
        %v1818 = vpack.c.b16 %v1704, %v1703
        %v1819 = vpack.c.b16 %v1706, %v1705
        %v1820 = vpack.c.b16 %v1708, %v1707
        %v1821 = vpack.c.b16 %v1710, %v1709
        %v1822 = vpack.c.b16 %v1712, %v1711
        %v1823 = vpack.c.b16 %v1714, %v1713
        %v1824 = vpack.c.b16 %v1716, %v1715
        %v1825 = vpack.c.b16 %v1718, %v1717
        %v1826 = vpack.c.b16 %v1720, %v1719
        %v1827 = vpack.c.b16 %v1722, %v1721
        %v1828 = vpack.c.b16 %v1724, %v1723
        %v1829 = vpack.c.b16 %v1726, %v1725
        %v1830 = vpack.c.b16 %v1728, %v1727
        %v1831 = vpack.c.b16 %v1730, %v1729
        %v1832 = vpack.c.b16 %v1732, %v1731
        %v1833 = vpack.c.b16 %v1734, %v1733
        %v1834 = vpack.c.b16 %v1736, %v1735
        %v1835 = vpack.c.b16 %v1738, %v1737
        %v1836 = vpack.c.b16 %v1740, %v1739
        %v1837 = vpack.c.b16 %v1742, %v1741
        %v1838 = vpack.c.b16 %v1744, %v1743
        %v1839 = vpack.c.b16 %v1746, %v1745
        %v1840 = vpack.c.b16 %v1748, %v1747
        %v1841 = vpack.c.b16 %v1750, %v1749
        %v1842 = vpack.c.b16 %v1752, %v1751
        %v1843 = vpack.c.b16 %v1754, %v1753
        %v1844 = vpack.c.b16 %v1756, %v1755
        %v1845 = vpack.c.b16 %v1758, %v1757
        %v1846 = vpack.c.b16 %v1760, %v1759
        %v1847 = vpack.c.b16 %v1762, %v1761
        %v1848 = vpack.c.b16 %v1764, %v1763
        %v1849 = vpack.c.b16 %v1766, %v1765
        %v1850 = vpack.c.b16 %v1768, %v1767
        %v1851 = vpack.c.b16 %v1770, %v1769
        %v1852 = vpack.c.b16 %v1772, %v1771
        %v1853 = vpack.c.b16 %v1774, %v1773
        %v1854 = vpack.c.b16 %v1776, %v1775
        %v1855 = vpack.c.b16 %v1778, %v1777
        %v1856 = vpack.c.b16 %v1780, %v1779
        %v1857 = vpack.c.b16 %v1782, %v1781
        %v1858 = vpack.c.b16 %v1784, %v1783
        %v1859 = vpack.c.b16 %v1786, %v1785
        %v1860 = vpack.c.b16 %v1788, %v1787
        %1933 = vmatpush.bf16.msra.mxu0 %v1796
        %1934 = vmatpush.bf16.msra.mxu0 %v1795
        %1935 = vmatpush.bf16.msra.mxu0 %v1794
        %1936 = vmatpush.bf16.msra.mxu0 %v1793
        %1937 = vmatpush.bf16.msra.mxu0 %v1792
        %1938 = vmatpush.bf16.msra.mxu0 %v1791
        %1939 = vmatpush.bf16.msra.mxu0 %v1790
        %1940 = vmatpush.bf16.msra.mxu0 %v1789
        %1941 = vmatmul.bf16.gmra.mxu0 %v1221
        %v1942 = vpop.f32.mrf.mxu0
        %v1943 = vadd.f32 0.0, %v1942
        %v1944 = vpop.f32.mrf.mxu0
        %v1945 = vadd.f32 0.0, %v1944
        %1946 = vmatmul.bf16.gmra.mxu0 %v1222
        %v1947 = vpop.f32.mrf.mxu0
        %v1948 = vadd.f32 0.0, %v1947
        %v1949 = vpop.f32.mrf.mxu0
        %v1950 = vadd.f32 0.0, %v1949
        %1951 = vmatmul.bf16.gmra.mxu0 %v1223
        %v1952 = vpop.f32.mrf.mxu0
        %v1953 = vadd.f32 0.0, %v1952
        %v1954 = vpop.f32.mrf.mxu0
        %v1955 = vadd.f32 0.0, %v1954
        %1956 = vmatmul.bf16.gmra.mxu0 %v1224
        %v1957 = vpop.f32.mrf.mxu0
        %v1958 = vadd.f32 0.0, %v1957
        %v1959 = vpop.f32.mrf.mxu0
        %v1960 = vadd.f32 0.0, %v1959
        %1961 = vdwg.mxu0
        %1962 = vmatpush.bf16.msra.mxu0 %v1804
        %1963 = vmatpush.bf16.msra.mxu0 %v1803
        %1964 = vmatpush.bf16.msra.mxu0 %v1802
        %1965 = vmatpush.bf16.msra.mxu0 %v1801
        %1966 = vmatpush.bf16.msra.mxu0 %v1800
        %1967 = vmatpush.bf16.msra.mxu0 %v1799
        %1968 = vmatpush.bf16.msra.mxu0 %v1798
        %1969 = vmatpush.bf16.msra.mxu0 %v1797
        %1970 = vmatmul.bf16.gmra.mxu0 %v1237
        %v1971 = vpop.f32.mrf.mxu0
        %v1972 = vadd.f32 %v1943, %v1971
        %v1973 = vpop.f32.mrf.mxu0
        %v1974 = vadd.f32 %v1945, %v1973
        %1975 = vmatmul.bf16.gmra.mxu0 %v1238
        %v1976 = vpop.f32.mrf.mxu0
        %v1977 = vadd.f32 %v1948, %v1976
        %v1978 = vpop.f32.mrf.mxu0
        %v1979 = vadd.f32 %v1950, %v1978
        %1980 = vmatmul.bf16.gmra.mxu0 %v1239
        %v1981 = vpop.f32.mrf.mxu0
        %v1982 = vadd.f32 %v1953, %v1981
        %v1983 = vpop.f32.mrf.mxu0
        %v1984 = vadd.f32 %v1955, %v1983
        %1985 = vmatmul.bf16.gmra.mxu0 %v1240
        %v1986 = vpop.f32.mrf.mxu0
        %v1987 = vadd.f32 %v1958, %v1986
        %v1988 = vpop.f32.mrf.mxu0
        %v1989 = vadd.f32 %v1960, %v1988
        %1990 = vdwg.mxu0
        %1991 = vmatpush.bf16.msra.mxu0 %v1812
        %1992 = vmatpush.bf16.msra.mxu0 %v1811
        %1993 = vmatpush.bf16.msra.mxu0 %v1810
        %1994 = vmatpush.bf16.msra.mxu0 %v1809
        %1995 = vmatpush.bf16.msra.mxu0 %v1808
        %1996 = vmatpush.bf16.msra.mxu0 %v1807
        %1997 = vmatpush.bf16.msra.mxu0 %v1806
        %1998 = vmatpush.bf16.msra.mxu0 %v1805
        %1999 = vmatmul.bf16.gmra.mxu0 %v1253
        %v2000 = vpop.f32.mrf.mxu0
        %v2001 = vadd.f32 %v1972, %v2000
        %v2002 = vpop.f32.mrf.mxu0
        %v2003 = vadd.f32 %v1974, %v2002
        %2004 = vmatmul.bf16.gmra.mxu0 %v1254
        %v2005 = vpop.f32.mrf.mxu0
        %v2006 = vadd.f32 %v1977, %v2005
        %v2007 = vpop.f32.mrf.mxu0
        %v2008 = vadd.f32 %v1979, %v2007
        %2009 = vmatmul.bf16.gmra.mxu0 %v1255
        %v2010 = vpop.f32.mrf.mxu0
        %v2011 = vadd.f32 %v1982, %v2010
        %v2012 = vpop.f32.mrf.mxu0
        %v2013 = vadd.f32 %v1984, %v2012
        %2014 = vmatmul.bf16.gmra.mxu0 %v1256
        %v2015 = vpop.f32.mrf.mxu0
        %v2016 = vadd.f32 %v1987, %v2015
        %v2017 = vpop.f32.mrf.mxu0
        %v2018 = vadd.f32 %v1989, %v2017
        %2019 = vdwg.mxu0
        %2020 = vmatpush.bf16.msra.mxu0 %v1820
        %2021 = vmatpush.bf16.msra.mxu0 %v1819
        %2022 = vmatpush.bf16.msra.mxu0 %v1818
        %2023 = vmatpush.bf16.msra.mxu0 %v1817
        %2024 = vmatpush.bf16.msra.mxu0 %v1816
        %2025 = vmatpush.bf16.msra.mxu0 %v1815
        %2026 = vmatpush.bf16.msra.mxu0 %v1814
        %2027 = vmatpush.bf16.msra.mxu0 %v1813
        %2028 = vmatmul.bf16.gmra.mxu0 %v1269
        %v2029 = vpop.f32.mrf.mxu0
        %v2030 = vadd.f32 %v2001, %v2029
        %v2031 = vpop.f32.mrf.mxu0
        %v2032 = vadd.f32 %v2003, %v2031
        %2033 = vmatmul.bf16.gmra.mxu0 %v1270
        %v2034 = vpop.f32.mrf.mxu0
        %v2035 = vadd.f32 %v2006, %v2034
        %v2036 = vpop.f32.mrf.mxu0
        %v2037 = vadd.f32 %v2008, %v2036
        %2038 = vmatmul.bf16.gmra.mxu0 %v1271
        %v2039 = vpop.f32.mrf.mxu0
        %v2040 = vadd.f32 %v2011, %v2039
        %v2041 = vpop.f32.mrf.mxu0
        %v2042 = vadd.f32 %v2013, %v2041
        %2043 = vmatmul.bf16.gmra.mxu0 %v1272
        %v2044 = vpop.f32.mrf.mxu0
        %v2045 = vadd.f32 %v2016, %v2044
        %v2046 = vpop.f32.mrf.mxu0
        %v2047 = vadd.f32 %v2018, %v2046
        %2048 = vdwg.mxu0
        %2049 = vmatpush.bf16.msra.mxu0 %v1828
        %2050 = vmatpush.bf16.msra.mxu0 %v1827
        %2051 = vmatpush.bf16.msra.mxu0 %v1826
        %2052 = vmatpush.bf16.msra.mxu0 %v1825
        %2053 = vmatpush.bf16.msra.mxu0 %v1824
        %2054 = vmatpush.bf16.msra.mxu0 %v1823
        %2055 = vmatpush.bf16.msra.mxu0 %v1822
        %2056 = vmatpush.bf16.msra.mxu0 %v1821
        %2057 = vmatmul.bf16.gmra.mxu0 %v1285
        %v2058 = vpop.f32.mrf.mxu0
        %v2059 = vadd.f32 %v2030, %v2058
        %v2060 = vpop.f32.mrf.mxu0
        %v2061 = vadd.f32 %v2032, %v2060
        %2062 = vmatmul.bf16.gmra.mxu0 %v1286
        %v2063 = vpop.f32.mrf.mxu0
        %v2064 = vadd.f32 %v2035, %v2063
        %v2065 = vpop.f32.mrf.mxu0
        %v2066 = vadd.f32 %v2037, %v2065
        %2067 = vmatmul.bf16.gmra.mxu0 %v1287
        %v2068 = vpop.f32.mrf.mxu0
        %v2069 = vadd.f32 %v2040, %v2068
        %v2070 = vpop.f32.mrf.mxu0
        %v2071 = vadd.f32 %v2042, %v2070
        %2072 = vmatmul.bf16.gmra.mxu0 %v1288
        %v2073 = vpop.f32.mrf.mxu0
        %v2074 = vadd.f32 %v2045, %v2073
        %v2075 = vpop.f32.mrf.mxu0
        %v2076 = vadd.f32 %v2047, %v2075
        %2077 = vdwg.mxu0
        %2078 = vmatpush.bf16.msra.mxu0 %v1836
        %2079 = vmatpush.bf16.msra.mxu0 %v1835
        %2080 = vmatpush.bf16.msra.mxu0 %v1834
        %2081 = vmatpush.bf16.msra.mxu0 %v1833
        %2082 = vmatpush.bf16.msra.mxu0 %v1832
        %2083 = vmatpush.bf16.msra.mxu0 %v1831
        %2084 = vmatpush.bf16.msra.mxu0 %v1830
        %2085 = vmatpush.bf16.msra.mxu0 %v1829
        %2086 = vmatmul.bf16.gmra.mxu0 %v1301
        %v2087 = vpop.f32.mrf.mxu0
        %v2088 = vadd.f32 %v2059, %v2087
        %v2089 = vpop.f32.mrf.mxu0
        %v2090 = vadd.f32 %v2061, %v2089
        %2091 = vmatmul.bf16.gmra.mxu0 %v1302
        %v2092 = vpop.f32.mrf.mxu0
        %v2093 = vadd.f32 %v2064, %v2092
        %v2094 = vpop.f32.mrf.mxu0
        %v2095 = vadd.f32 %v2066, %v2094
        %2096 = vmatmul.bf16.gmra.mxu0 %v1303
        %v2097 = vpop.f32.mrf.mxu0
        %v2098 = vadd.f32 %v2069, %v2097
        %v2099 = vpop.f32.mrf.mxu0
        %v2100 = vadd.f32 %v2071, %v2099
        %2101 = vmatmul.bf16.gmra.mxu0 %v1304
        %v2102 = vpop.f32.mrf.mxu0
        %v2103 = vadd.f32 %v2074, %v2102
        %v2104 = vpop.f32.mrf.mxu0
        %v2105 = vadd.f32 %v2076, %v2104
        %2106 = vdwg.mxu0
        %2107 = vmatpush.bf16.msra.mxu0 %v1844
        %2108 = vmatpush.bf16.msra.mxu0 %v1843
        %2109 = vmatpush.bf16.msra.mxu0 %v1842
        %2110 = vmatpush.bf16.msra.mxu0 %v1841
        %2111 = vmatpush.bf16.msra.mxu0 %v1840
        %2112 = vmatpush.bf16.msra.mxu0 %v1839
        %2113 = vmatpush.bf16.msra.mxu0 %v1838
        %2114 = vmatpush.bf16.msra.mxu0 %v1837
        %2115 = vmatmul.bf16.gmra.mxu0 %v1317
        %v2116 = vpop.f32.mrf.mxu0
        %v2117 = vadd.f32 %v2088, %v2116
        %v2118 = vpop.f32.mrf.mxu0
        %v2119 = vadd.f32 %v2090, %v2118
        %2120 = vmatmul.bf16.gmra.mxu0 %v1318
        %v2121 = vpop.f32.mrf.mxu0
        %v2122 = vadd.f32 %v2093, %v2121
        %v2123 = vpop.f32.mrf.mxu0
        %v2124 = vadd.f32 %v2095, %v2123
        %2125 = vmatmul.bf16.gmra.mxu0 %v1319
        %v2126 = vpop.f32.mrf.mxu0
        %v2127 = vadd.f32 %v2098, %v2126
        %v2128 = vpop.f32.mrf.mxu0
        %v2129 = vadd.f32 %v2100, %v2128
        %2130 = vmatmul.bf16.gmra.mxu0 %v1320
        %v2131 = vpop.f32.mrf.mxu0
        %v2132 = vadd.f32 %v2103, %v2131
        %v2133 = vpop.f32.mrf.mxu0
        %v2134 = vadd.f32 %v2105, %v2133
        %2135 = vdwg.mxu0
        %2136 = vmatpush.bf16.msra.mxu0 %v1852
        %2137 = vmatpush.bf16.msra.mxu0 %v1851
        %2138 = vmatpush.bf16.msra.mxu0 %v1850
        %2139 = vmatpush.bf16.msra.mxu0 %v1849
        %2140 = vmatpush.bf16.msra.mxu0 %v1848
        %2141 = vmatpush.bf16.msra.mxu0 %v1847
        %2142 = vmatpush.bf16.msra.mxu0 %v1846
        %2143 = vmatpush.bf16.msra.mxu0 %v1845
        %2144 = vmatmul.bf16.gmra.mxu0 %v1333
        %v2145 = vpop.f32.mrf.mxu0
        %v2146 = vadd.f32 %v2117, %v2145
        %v2147 = vpop.f32.mrf.mxu0
        %v2148 = vadd.f32 %v2119, %v2147
        %2149 = vmatmul.bf16.gmra.mxu0 %v1334
        %v2150 = vpop.f32.mrf.mxu0
        %v2151 = vadd.f32 %v2122, %v2150
        %v2152 = vpop.f32.mrf.mxu0
        %v2153 = vadd.f32 %v2124, %v2152
        %2154 = vmatmul.bf16.gmra.mxu0 %v1335
        %v2155 = vpop.f32.mrf.mxu0
        %v2156 = vadd.f32 %v2127, %v2155
        %v2157 = vpop.f32.mrf.mxu0
        %v2158 = vadd.f32 %v2129, %v2157
        %2159 = vmatmul.bf16.gmra.mxu0 %v1336
        %v2160 = vpop.f32.mrf.mxu0
        %v2161 = vadd.f32 %v2132, %v2160
        %v2162 = vpop.f32.mrf.mxu0
        %v2163 = vadd.f32 %v2134, %v2162
        %2164 = vdwg.mxu0
        %2165 = vmatpush.bf16.msra.mxu0 %v1860
        %2166 = vmatpush.bf16.msra.mxu0 %v1859
        %2167 = vmatpush.bf16.msra.mxu0 %v1858
        %2168 = vmatpush.bf16.msra.mxu0 %v1857
        %2169 = vmatpush.bf16.msra.mxu0 %v1856
        %2170 = vmatpush.bf16.msra.mxu0 %v1855
        %2171 = vmatpush.bf16.msra.mxu0 %v1854
        %2172 = vmatpush.bf16.msra.mxu0 %v1853
        %2173 = vmatmul.bf16.gmra.mxu0 %v1349
        %v2174 = vpop.f32.mrf.mxu0
        %v2175 = vadd.f32 %v2146, %v2174
        %v2176 = vpop.f32.mrf.mxu0
        %v2177 = vadd.f32 %v2148, %v2176
        %2178 = vmatmul.bf16.gmra.mxu0 %v1350
        %v2179 = vpop.f32.mrf.mxu0
        %v2180 = vadd.f32 %v2151, %v2179
        %v2181 = vpop.f32.mrf.mxu0
        %v2182 = vadd.f32 %v2153, %v2181
        %2183 = vmatmul.bf16.gmra.mxu0 %v1351
        %v2184 = vpop.f32.mrf.mxu0
        %v2185 = vadd.f32 %v2156, %v2184
        %v2186 = vpop.f32.mrf.mxu0
        %v2187 = vadd.f32 %v2158, %v2186
        %2188 = vmatmul.bf16.gmra.mxu0 %v1352
        %v2189 = vpop.f32.mrf.mxu0
        %v2190 = vadd.f32 %v2161, %v2189
        %v2191 = vpop.f32.mrf.mxu0
        %v2192 = vadd.f32 %v2163, %v2191
        %2193 = vdwg.mxu0
        %v2194 = vld [vmem:[%s5] sm:$0x1]
        %v2196 = vperm.slane %v2194, 0
        %v2198 = vmul.f32 %v2175, %v2196
        %v2199 = vmul.f32 %v2177, %v2196
        %v2200 = vmul.f32 %v2180, %v2196
        %v2201 = vmul.f32 %v2182, %v2196
        %v2202 = vmul.f32 %v2185, %v2196
        %v2203 = vmul.f32 %v2187, %v2196
        %v2204 = vmul.f32 %v2190, %v2196
        %v2205 = vmul.f32 %v2192, %v2196
        %v2206 = vld [vmem:[%s6] sm:$0x1]
        %v2208 = vperm.slane %v2206, 0
        %v2210 = vadd.f32 %v2198, %v2208
        %v2211 = vadd.f32 %v2199, %v2208
        %v2212 = vadd.f32 %v2200, %v2208
        %v2213 = vadd.f32 %v2201, %v2208
        %v2214 = vadd.f32 %v2202, %v2208
        %v2215 = vadd.f32 %v2203, %v2208
        %v2216 = vadd.f32 %v2204, %v2208
        %v2217 = vadd.f32 %v2205, %v2208
        %v2218 = vmax.f32 %v2210, 0.0
        %v2219 = vmax.f32 %v2211, 0.0
        %v2220 = vmax.f32 %v2212, 0.0
        %v2221 = vmax.f32 %v2213, 0.0
        %v2222 = vmax.f32 %v2214, 0.0
        %v2223 = vmax.f32 %v2215, 0.0
        %v2224 = vmax.f32 %v2216, 0.0
        %v2225 = vmax.f32 %v2217, 0.0
        %v2226 = vpack.c.bf16 %v2219, %v2218
        %v2227 = vpack.c.bf16 %v2221, %v2220
        %v2228 = vpack.c.bf16 %v2223, %v2222
        %v2229 = vpack.c.bf16 %v2225, %v2224
        %v2230 = vld [vmem:[#allocation9] sm:$0xf]
        %v2231 = vld [vmem:[#allocation9 + $0x4] sm:$0xf]
        %v2232 = vld [vmem:[#allocation9 + $0x8] sm:$0xf]
        %v2233 = vld [vmem:[#allocation9 + $0xc] sm:$0xf]
        %v2234 = vld [vmem:[#allocation9 + $0x10] sm:$0xf]
        %v2235 = vld [vmem:[#allocation9 + $0x14] sm:$0xf]
        %v2236 = vld [vmem:[#allocation9 + $0x18] sm:$0xf]
        %v2237 = vld [vmem:[#allocation9 + $0x1c] sm:$0xf]
        %v2238 = vld [vmem:[#allocation9 + $0x20] sm:$0xf]
        %v2239 = vld [vmem:[#allocation9 + $0x24] sm:$0xf]
        %v2240 = vld [vmem:[#allocation9 + $0x28] sm:$0xf]
        %v2241 = vld [vmem:[#allocation9 + $0x2c] sm:$0xf]
        %v2242 = vld [vmem:[#allocation9 + $0x30] sm:$0xf]
        %v2243 = vld [vmem:[#allocation9 + $0x34] sm:$0xf]
        %v2244 = vld [vmem:[#allocation9 + $0x38] sm:$0xf]
        %v2245 = vld [vmem:[#allocation9 + $0x3c] sm:$0xf]
        %v2262 = vunpack.c.l.b16 %v2230
        %v2263 = vunpack.c.l.b16 %v2231
        %v2264 = vunpack.c.l.b16 %v2232
        %v2265 = vunpack.c.l.b16 %v2233
        %v2266 = vunpack.c.l.b16 %v2234
        %v2267 = vunpack.c.l.b16 %v2235
        %v2268 = vunpack.c.l.b16 %v2236
        %v2269 = vunpack.c.l.b16 %v2237
        %v2270 = vunpack.c.l.b16 %v2238
        %v2271 = vunpack.c.l.b16 %v2239
        %v2272 = vunpack.c.l.b16 %v2240
        %v2273 = vunpack.c.l.b16 %v2241
        %v2274 = vunpack.c.l.b16 %v2242
        %v2275 = vunpack.c.l.b16 %v2243
        %v2276 = vunpack.c.l.b16 %v2244
        %v2277 = vunpack.c.l.b16 %v2245
        %v2278 = vpack.c.b16 %v2263, %v2262
        %v2279 = vpack.c.b16 %v2265, %v2264
        %v2280 = vpack.c.b16 %v2267, %v2266
        %v2281 = vpack.c.b16 %v2269, %v2268
        %v2282 = vpack.c.b16 %v2271, %v2270
        %v2283 = vpack.c.b16 %v2273, %v2272
        %v2284 = vpack.c.b16 %v2275, %v2274
        %v2285 = vpack.c.b16 %v2277, %v2276
        %2294 = vmatpush.bf16.msra.mxu0 %v2285
        %2295 = vmatpush.bf16.msra.mxu0 %v2284
        %2296 = vmatpush.bf16.msra.mxu0 %v2283
        %2297 = vmatpush.bf16.msra.mxu0 %v2282
        %2298 = vmatpush.bf16.msra.mxu0 %v2281
        %2299 = vmatpush.bf16.msra.mxu0 %v2280
        %2300 = vmatpush.bf16.msra.mxu0 %v2279
        %2301 = vmatpush.bf16.msra.mxu0 %v2278
        %2302 = vmatmul.bf16.gmra.mxu0 %v2226
        %v2303 = vpop.f32.mrf.mxu0
        %v2304 = vadd.f32 0.0, %v2303
        %v2305 = vpop.f32.mrf.mxu0
        %v2306 = vadd.f32 0.0, %v2305
        %2307 = vmatmul.bf16.gmra.mxu0 %v2227
        %v2308 = vpop.f32.mrf.mxu0
        %v2309 = vadd.f32 0.0, %v2308
        %v2310 = vpop.f32.mrf.mxu0
        %v2311 = vadd.f32 0.0, %v2310
        %2312 = vmatmul.bf16.gmra.mxu0 %v2228
        %v2313 = vpop.f32.mrf.mxu0
        %v2314 = vadd.f32 0.0, %v2313
        %v2315 = vpop.f32.mrf.mxu0
        %v2316 = vadd.f32 0.0, %v2315
        %2317 = vmatmul.bf16.gmra.mxu0 %v2229
        %v2318 = vpop.f32.mrf.mxu0
        %v2319 = vadd.f32 0.0, %v2318
        %v2320 = vpop.f32.mrf.mxu0
        %v2321 = vadd.f32 0.0, %v2320
        %2322 = vdwg.mxu0
        %v2323 = vld [vmem:[%s8] sm:$0x1]
        %v2325 = vperm.slane %v2323, 0
        %v2327 = vmul.f32 %v2304, %v2325
        %v2328 = vmul.f32 %v2306, %v2325
        %v2329 = vmul.f32 %v2309, %v2325
        %v2330 = vmul.f32 %v2311, %v2325
        %v2331 = vmul.f32 %v2314, %v2325
        %v2332 = vmul.f32 %v2316, %v2325
        %v2333 = vmul.f32 %v2319, %v2325
        %v2334 = vmul.f32 %v2321, %v2325
        %v2335 = vld [vmem:[%s9] sm:$0x1]
        %v2337 = vperm.slane %v2335, 0
        %v2339 = vadd.f32 %v2327, %v2337
        %v2340 = vadd.f32 %v2328, %v2337
        %v2341 = vadd.f32 %v2329, %v2337
        %v2342 = vadd.f32 %v2330, %v2337
        %v2343 = vadd.f32 %v2331, %v2337
        %v2344 = vadd.f32 %v2332, %v2337
        %v2345 = vadd.f32 %v2333, %v2337
        %v2346 = vadd.f32 %v2334, %v2337
        %v2347 = vadd.f32 %v430, %v2339
        %v2348 = vadd.f32 %v431, %v2340
        %v2349 = vadd.f32 %v432, %v2341
        %v2350 = vadd.f32 %v433, %v2342
        %v2351 = vadd.f32 %v434, %v2343
        %v2352 = vadd.f32 %v435, %v2344
        %v2353 = vadd.f32 %v436, %v2345
        %v2354 = vadd.f32 %v437, %v2346
        %v2355 = vmax.f32 %v2347, 0.0
        %v2356 = vmax.f32 %v2348, 0.0
        %v2357 = vmax.f32 %v2349, 0.0
        %v2358 = vmax.f32 %v2350, 0.0
        %v2359 = vmax.f32 %v2351, 0.0
        %v2360 = vmax.f32 %v2352, 0.0
        %v2361 = vmax.f32 %v2353, 0.0
        %v2362 = vmax.f32 %v2354, 0.0
        %2363 = vst [vmem:[%s429] sm:$0xff] %v2355
        %2364 = vst [vmem:[%s429 + $0x8] sm:$0xff] %v2356
        %2365 = vst [vmem:[%s429 + $0x10] sm:$0xff] %v2357
        %2366 = vst [vmem:[%s429 + $0x18] sm:$0xff] %v2358
        %2367 = vst [vmem:[%s429 + $0x20] sm:$0xff] %v2359
        %2368 = vst [vmem:[%s429 + $0x28] sm:$0xff] %v2360
        %2369 = vst [vmem:[%s429 + $0x30] sm:$0xff] %v2361
        %2370 = vst [vmem:[%s429 + $0x38] sm:$0xff] %v2362
        %s2371 = sand.u32 %s252, 1
        %s2372 = scalar_lea.sflag [#allocation5], %s2371
        %s2373 = sand.u32 %s252, 1
        %s2374 = smul.addr %s2373, 64
        %s2375 = scalar_lea.vmem [#allocation11], %s2374
        // Predicated region
        $region77: #{tpu_custom_call.1} parent=59 // pred_check
          %p2376 = pneg %p262
        $region78: #{tpu_custom_call.1} parent=59 // pred_check_branch
          %2378 = sbr.rel (%p2376) target = $region80
        $region79: #{tpu_custom_call.1} parent=59 // pred_region
          %2380 = vsyncadd %s2372, 0
          %s2381 = smul.addr %s29, 8
          %s2382 = smul.addr %s2381, 8
          %s2383 = scalar_lea.hbm %s10, %s2382
          %s2384 = sshll.u32 %s2375, 4
          %s2385 = int_to_ptr.vmem [resolvable:$true] %s2384
          %s2386 = sshll.u32 %s2383, 4
          %s2387 = int_to_ptr.hbm [resolvable:$true] %s2386
          %2392 = dma.vmem_to_hbm [thread:$0]  %s2385, 1024, %s2387, %s2372, 128, 128, 8
        $region80: #{tpu_custom_call.1} parent=59 // pred_fallthru
          _
      $region60: #{tpu_custom_call.1} parent=5 // pred_fallthru
        _
      %p2393 = scmp.le.s32.totalorder 2, %s24
      // Predicated region
      $region81: #{tpu_custom_call.1} parent=5 // pred_check
        %p2394 = pneg %p2393
      $region82: #{tpu_custom_call.1} parent=5 // pred_check_branch
        %2396 = sbr.rel (%p2394) target = $region84
      $region83: #{tpu_custom_call.1} parent=5 // pred_region
        %s2397 = ssub.s32 %s24, 2
        // Predicated region
        $region85: #{tpu_custom_call.1} parent=83 // pred_check
          %p2398 = pneg %p268
        $region86: #{tpu_custom_call.1} parent=83 // pred_check_branch
          %2400 = sbr.rel (%p2398) target = $region88
        $region87: #{tpu_custom_call.1} parent=83 // pred_region
          %s2401 = sand.u32 %s253, 1
          %s2402 = scalar_lea.sflag [#allocation5], %s2401
          %s2403 = sand.u32 %s253, 1
          %s2404 = smul.addr %s2403, 64
          %s2405 = scalar_lea.vmem [#allocation11], %s2404
          %2407 = dma.done %s2402, 1024
        $region88: #{tpu_custom_call.1} parent=83 // pred_fallthru
          _
      $region84: #{tpu_custom_call.1} parent=5 // pred_fallthru
        _
    $region6: #{tpu_custom_call.1} parent=1 // loop_footer
      %s28 = sadd.s32 1, %s24
    $region7: #{tpu_custom_call.1} parent=1 // loop_footer_branch
      %23 = sbr.rel target = $region3
    $region8: #{tpu_custom_call.1} parent=1 // loop_exit
      _
    %2408 = vsyncpa [#allocation4], 1
    %s2409 = scalar_lea.sflag [#allocation4], 1
    %2410 = vsyncpa %s2409, 1
    %2411 = vsyncpa [#allocation7], 1
    %2412 = vsyncpa [#allocation10], 1
    %2413 = vsyncpa [#allocation5], 1
    %s2414 = scalar_lea.sflag [#allocation5], 1
    %2415 = vsyncpa %s2414, 1

// kernel: tpu_custom_call.1
$region0: #{tpu_custom_call.1}
  #allocation0 [shape = 'u32[]', space=smem, size = 0x4, offset = 0x4, fixed_abs, tag = 'smem constant byte address 0x4 - core index']
  #allocation1 [shape = 'u32[72,128]{1,0:T(1,128)}', space=vmem, size = 0x9000, scoped, tag = 'internal scratch']
  #allocation2 [shape = 'f32[10,10,128]{2,1,0:T(8,128)}', space=vmem, size = 0x14000, scoped, tag = 'scratch operand']
  %s0 = inlined_call_operand.hbm [shape: f32[2,64,128], index: 0, kind: input, shape index: {}]
  %s1 = inlined_call_operand.hbm [shape: bf16[128,128], index: 1, kind: input, shape index: {}]
  %s2 = inlined_call_operand.vmem [shape: f32[1,128], index: 2, kind: input, shape index: {}]
  %s3 = inlined_call_operand.vmem [shape: f32[1,128], index: 3, kind: input, shape index: {}]
  %s4 = inlined_call_operand.hbm [shape: bf16[1152,128], index: 4, kind: input, shape index: {}]
  %s5 = inlined_call_operand.vmem [shape: f32[1,128], index: 5, kind: input, shape index: {}]
  %s6 = inlined_call_operand.vmem [shape: f32[1,128], index: 6, kind: input, shape index: {}]
  %s7 = inlined_call_operand.hbm [shape: bf16[128,128], index: 7, kind: input, shape index: {}]
  %s8 = inlined_call_operand.vmem [shape: f32[1,128], index: 8, kind: input, shape index: {}]
  %s9 = inlined_call_operand.vmem [shape: f32[1,128], index: 9, kind: input, shape index: {}]
  %s10 = inlined_call_operand.hbm [shape: f32[2,64,128], index: 10, kind: output, shape index: {}]
  %s11 = sld [smem:[#allocation0]]
  $region89: #{tpu_custom_call.1} parent=0
    _
  %s13 = ssub.s32 1, %s11
  %s14 = scalar_select 0, %s13, %s11
  $region1: #{tpu_custom_call.1} parent=0
    #allocation3 [shape = 'u8[65536]{0}', space=vmem, size = 0x10000, scoped, tag = 'input window, operand 0']
    #allocation4 [shape = 's32[2]{0}', space=sflag, size = 0x8, scoped, tag = 'scoped memory for tpu_custom_call.1']
    #allocation5 [shape = 's32[2]{0}', space=sflag, size = 0x8, scoped, tag = 'scoped memory for tpu_custom_call.1']
    #allocation6 [shape = 'u8[32768]{0}', space=vmem, size = 0x8000, scoped, tag = 'input window, operand 1, single buffered']
    #allocation7 [shape = 's32[1]{0}', space=sflag, size = 0x4, scoped, tag = 'scoped memory for tpu_custom_call.1']
    #allocation8 [shape = 'u8[294912]{0}', space=vmem, size = 0x48000, scoped, tag = 'input window, operand 4, single buffered']
    #allocation9 [shape = 'u8[32768]{0}', space=vmem, size = 0x8000, scoped, tag = 'input window, operand 7, single buffered']
    #allocation10 [shape = 's32[1]{0}', space=sflag, size = 0x4, scoped, tag = 'scoped memory for tpu_custom_call.1']
    #allocation11 [shape = 'u8[65536]{0}', space=vmem, size = 0x10000, scoped, tag = 'output window, operand 0']
    %15 = vsyncpa [#allocation4], 0
    %s16 = scalar_lea.sflag [#allocation4], 1
    %17 = vsyncpa %s16, 0
    %18 = vsyncpa [#allocation7], 0
    %19 = vsyncpa [#allocation10], 0
    %20 = vsyncpa [#allocation5], 0
    %s21 = scalar_lea.sflag [#allocation5], 1
    %22 = vsyncpa %s21, 0
    loop: start=0, step=1, limit=4
    $region2: #{tpu_custom_call.1} parent=1 // loop_pre_header
      _
    $region3: #{tpu_custom_call.1} parent=1 // loop_header
      %s24 = sphi 0, %s28
      %p25 = scmp.ge.s32.totalorder %s24, 4
      %s34 = sphi 0, %s36
      %s37 = sphi 0, %s34
      %s38 = sphi 0, %s37
      %s54 = sphi 0, %s38
      %s58 = sphi 0, %s58
      %s60 = sphi 0, %s58
      %s61 = sphi 0, %s60
      %s75 = sphi 0, %s61
      %s79 = sphi 0, %s79
      %s81 = sphi 0, %s79
      %s82 = sphi 0, %s81
      %s96 = sphi 0, %s82
      %s100 = sphi 0, %s100
      %s102 = sphi 0, %s100
      %s103 = sphi 0, %s102
      %s117 = sphi 0, %s103
      %s121 = sphi 0, %s121
      %s123 = sphi 0, %s121
      %s124 = sphi 0, %s123
      %s138 = sphi 0, %s124
      %s142 = sphi 0, %s142
      %s144 = sphi 0, %s142
      %s145 = sphi 0, %s144
      %s159 = sphi 0, %s145
      %s163 = sphi 0, %s163
      %s165 = sphi 0, %s163
      %s166 = sphi 0, %s165
      %s180 = sphi 0, %s166
      %s184 = sphi 0, %s184
      %s186 = sphi 0, %s184
      %s187 = sphi 0, %s186
      %s201 = sphi 0, %s187
      %s205 = sphi 0, %s205
      %s207 = sphi 0, %s205
      %s208 = sphi 0, %s207
      %s222 = sphi 0, %s208
      %s226 = sphi 0, %s226
      %s228 = sphi 0, %s226
      %s229 = sphi 0, %s228
      %s243 = sphi 0, %s229
      %s249 = sphi 0, %s251
      %s252 = sphi 0, %s249
      %s253 = sphi 0, %s252
      %s269 = sphi 0, %s253
    $region4: #{tpu_custom_call.1} parent=1 // loop_header_branch
      %27 = sbr.rel (%p25) target = $region8
    $region5: #{tpu_custom_call.1} parent=1 // loop_body
      %s29 = ssub.s32 %s24, 1
      %s30 = ssub.s32 %s24, 2
      %s31 = sadd.s32 %s24, 1
      %s32 = ssub.s32 %s24, %s31
      %p33 = scmp.eq.s32.totalorder %s32, 0
      %s35 = sadd.s32 %s34, 1
      %s36 = scalar_select %p33, %s34, %s35
      %p39 = pneg %p33
      %p40 = scmp.eq.s32.totalorder %s24, 1
      %p41 = por %p39, %p40
      %p42 = scmp.ne.s32.totalorder %s34, %s37
      %p43 = scmp.eq.s32.totalorder %s24, 0
      %p44 = por %p42, %p43
      %p45 = scmp.ne.s32.totalorder %s34, %s37
      %p46 = scmp.eq.s32.totalorder %s29, 1
      %p47 = por %p45, %p46
      %p48 = scmp.ne.s32.totalorder %s37, %s38
      %p49 = scmp.eq.s32.totalorder %s29, 0
      %p50 = por %p48, %p49
      %p51 = scmp.ne.s32.totalorder %s37, %s38
      %p52 = scmp.eq.s32.totalorder %s30, 1
      %p53 = por %p51, %p52
      %p55 = scmp.ne.s32.totalorder %s38, %s54
      %p56 = scmp.eq.s32.totalorder %s30, 0
      %p57 = por %p55, %p56
      %s59 = sadd.s32 %s58, 1
      %p62 = scmp.eq.s32.totalorder %s24, 1
      %p63 = scmp.ne.s32.totalorder %s58, %s60
      %p64 = scmp.eq.s32.totalorder %s24, 0
      %p65 = por %p63, %p64
      %p66 = scmp.ne.s32.totalorder %s58, %s60
      %p67 = scmp.eq.s32.totalorder %s29, 1
      %p68 = por %p66, %p67
      %p69 = scmp.ne.s32.totalorder %s60, %s61
      %p70 = scmp.eq.s32.totalorder %s29, 0
      %p71 = por %p69, %p70
      %p72 = scmp.ne.s32.totalorder %s60, %s61
      %p73 = scmp.eq.s32.totalorder %s30, 1
      %p74 = por %p72, %p73
      %p76 = scmp.ne.s32.totalorder %s61, %s75
      %p77 = scmp.eq.s32.totalorder %s30, 0
      %p78 = por %p76, %p77
      %s80 = sadd.s32 %s79, 1
      %p83 = scmp.eq.s32.totalorder %s24, 1
      %p84 = scmp.ne.s32.totalorder %s79, %s81
      %p85 = scmp.eq.s32.totalorder %s24, 0
      %p86 = por %p84, %p85
      %p87 = scmp.ne.s32.totalorder %s79, %s81
      %p88 = scmp.eq.s32.totalorder %s29, 1
      %p89 = por %p87, %p88
      %p90 = scmp.ne.s32.totalorder %s81, %s82
      %p91 = scmp.eq.s32.totalorder %s29, 0
      %p92 = por %p90, %p91
      %p93 = scmp.ne.s32.totalorder %s81, %s82
      %p94 = scmp.eq.s32.totalorder %s30, 1
      %p95 = por %p93, %p94
      %p97 = scmp.ne.s32.totalorder %s82, %s96
      %p98 = scmp.eq.s32.totalorder %s30, 0
      %p99 = por %p97, %p98
      %s101 = sadd.s32 %s100, 1
      %p104 = scmp.eq.s32.totalorder %s24, 1
      %p105 = scmp.ne.s32.totalorder %s100, %s102
      %p106 = scmp.eq.s32.totalorder %s24, 0
      %p107 = por %p105, %p106
      %p108 = scmp.ne.s32.totalorder %s100, %s102
      %p109 = scmp.eq.s32.totalorder %s29, 1
      %p110 = por %p108, %p109
      %p111 = scmp.ne.s32.totalorder %s102, %s103
      %p112 = scmp.eq.s32.totalorder %s29, 0
      %p113 = por %p111, %p112
      %p114 = scmp.ne.s32.totalorder %s102, %s103
      %p115 = scmp.eq.s32.totalorder %s30, 1
      %p116 = por %p114, %p115
      %p118 = scmp.ne.s32.totalorder %s103, %s117
      %p119 = scmp.eq.s32.totalorder %s30, 0
      %p120 = por %p118, %p119
      %s122 = sadd.s32 %s121, 1
      %p125 = scmp.eq.s32.totalorder %s24, 1
      %p126 = scmp.ne.s32.totalorder %s121, %s123
      %p127 = scmp.eq.s32.totalorder %s24, 0
      %p128 = por %p126, %p127
      %p129 = scmp.ne.s32.totalorder %s121, %s123
      %p130 = scmp.eq.s32.totalorder %s29, 1
      %p131 = por %p129, %p130
      %p132 = scmp.ne.s32.totalorder %s123, %s124
      %p133 = scmp.eq.s32.totalorder %s29, 0
      %p134 = por %p132, %p133
      %p135 = scmp.ne.s32.totalorder %s123, %s124
      %p136 = scmp.eq.s32.totalorder %s30, 1
      %p137 = por %p135, %p136
      %p139 = scmp.ne.s32.totalorder %s124, %s138
      %p140 = scmp.eq.s32.totalorder %s30, 0
      %p141 = por %p139, %p140
      %s143 = sadd.s32 %s142, 1
      %p146 = scmp.eq.s32.totalorder %s24, 1
      %p147 = scmp.ne.s32.totalorder %s142, %s144
      %p148 = scmp.eq.s32.totalorder %s24, 0
      %p149 = por %p147, %p148
      %p150 = scmp.ne.s32.totalorder %s142, %s144
      %p151 = scmp.eq.s32.totalorder %s29, 1
      %p152 = por %p150, %p151
      %p153 = scmp.ne.s32.totalorder %s144, %s145
      %p154 = scmp.eq.s32.totalorder %s29, 0
      %p155 = por %p153, %p154
      %p156 = scmp.ne.s32.totalorder %s144, %s145
      %p157 = scmp.eq.s32.totalorder %s30, 1
      %p158 = por %p156, %p157
      %p160 = scmp.ne.s32.totalorder %s145, %s159
      %p161 = scmp.eq.s32.totalorder %s30, 0
      %p162 = por %p160, %p161
      %s164 = sadd.s32 %s163, 1
      %p167 = scmp.eq.s32.totalorder %s24, 1
      %p168 = scmp.ne.s32.totalorder %s163, %s165
      %p169 = scmp.eq.s32.totalorder %s24, 0
      %p170 = por %p168, %p169
      %p171 = scmp.ne.s32.totalorder %s163, %s165
      %p172 = scmp.eq.s32.totalorder %s29, 1
      %p173 = por %p171, %p172
      %p174 = scmp.ne.s32.totalorder %s165, %s166
      %p175 = scmp.eq.s32.totalorder %s29, 0
      %p176 = por %p174, %p175
      %p177 = scmp.ne.s32.totalorder %s165, %s166
      %p178 = scmp.eq.s32.totalorder %s30, 1
      %p179 = por %p177, %p178
      %p181 = scmp.ne.s32.totalorder %s166, %s180
      %p182 = scmp.eq.s32.totalorder %s30, 0
      %p183 = por %p181, %p182
      %s185 = sadd.s32 %s184, 1
      %p188 = scmp.eq.s32.totalorder %s24, 1
      %p189 = scmp.ne.s32.totalorder %s184, %s186
      %p190 = scmp.eq.s32.totalorder %s24, 0
      %p191 = por %p189, %p190
      %p192 = scmp.ne.s32.totalorder %s184, %s186
      %p193 = scmp.eq.s32.totalorder %s29, 1
      %p194 = por %p192, %p193
      %p195 = scmp.ne.s32.totalorder %s186, %s187
      %p196 = scmp.eq.s32.totalorder %s29, 0
      %p197 = por %p195, %p196
      %p198 = scmp.ne.s32.totalorder %s186, %s187
      %p199 = scmp.eq.s32.totalorder %s30, 1
      %p200 = por %p198, %p199
      %p202 = scmp.ne.s32.totalorder %s187, %s201
      %p203 = scmp.eq.s32.totalorder %s30, 0
      %p204 = por %p202, %p203
      %s206 = sadd.s32 %s205, 1
      %p209 = scmp.eq.s32.totalorder %s24, 1
      %p210 = scmp.ne.s32.totalorder %s205, %s207
      %p211 = scmp.eq.s32.totalorder %s24, 0
      %p212 = por %p210, %p211
      %p213 = scmp.ne.s32.totalorder %s205, %s207
      %p214 = scmp.eq.s32.totalorder %s29, 1
      %p215 = por %p213, %p214
      %p216 = scmp.ne.s32.totalorder %s207, %s208
      %p217 = scmp.eq.s32.totalorder %s29, 0
      %p218 = por %p216, %p217
      %p219 = scmp.ne.s32.totalorder %s207, %s208
      %p220 = scmp.eq.s32.totalorder %s30, 1
      %p221 = por %p219, %p220
      %p223 = scmp.ne.s32.totalorder %s208, %s222
      %p224 = scmp.eq.s32.totalorder %s30, 0
      %p225 = por %p223, %p224
      %s227 = sadd.s32 %s226, 1
      %p230 = scmp.eq.s32.totalorder %s24, 1
      %p231 = scmp.ne.s32.totalorder %s226, %s228
      %p232 = scmp.eq.s32.totalorder %s24, 0
      %p233 = por %p231, %p232
      %p234 = scmp.ne.s32.totalorder %s226, %s228
      %p235 = scmp.eq.s32.totalorder %s29, 1
      %p236 = por %p234, %p235
      %p237 = scmp.ne.s32.totalorder %s228, %s229
      %p238 = scmp.eq.s32.totalorder %s29, 0
      %p239 = por %p237, %p238
      %p240 = scmp.ne.s32.totalorder %s228, %s229
      %p241 = scmp.eq.s32.totalorder %s30, 1
      %p242 = por %p240, %p241
      %p244 = scmp.ne.s32.totalorder %s229, %s243
      %p245 = scmp.eq.s32.totalorder %s30, 0
      %p246 = por %p244, %p245
      %s247 = ssub.s32 %s24, %s31
      %p248 = scmp.eq.s32.totalorder %s247, 0
      %s250 = sadd.s32 %s249, 1
      %s251 = scalar_select %p248, %s249, %s250
      %p254 = pneg %p248
      %p255 = scmp.eq.s32.totalorder %s24, 1
      %p256 = por %p254, %p255
      %p257 = scmp.ne.s32.totalorder %s249, %s252
      %p258 = scmp.eq.s32.totalorder %s24, 0
      %p259 = por %p257, %p258
      %p260 = scmp.ne.s32.totalorder %s249, %s252
      %p261 = scmp.eq.s32.totalorder %s29, 1
      %p262 = por %p260, %p261
      %p263 = scmp.ne.s32.totalorder %s252, %s253
      %p264 = scmp.eq.s32.totalorder %s29, 0
      %p265 = por %p263, %p264
      %p266 = scmp.ne.s32.totalorder %s252, %s253
      %p267 = scmp.eq.s32.totalorder %s30, 1
      %p268 = por %p266, %p267
      %p270 = scmp.ne.s32.totalorder %s253, %s269
      %p271 = scmp.eq.s32.totalorder %s30, 0
      %p272 = por %p270, %p271
      %p273 = scmp.le.s32.totalorder 1, %s24
      %p274 = scmp.lt.s32.totalorder %s24, 3
      %p275 = pnand %p273, %p274
      %p276 = pneg %p275
      // Predicated region
      $region9: #{tpu_custom_call.1} parent=5 // pred_check
        _
      $region10: #{tpu_custom_call.1} parent=5 // pred_check_branch
        %278 = sbr.rel (%p275) target = $region12
      $region11: #{tpu_custom_call.1} parent=5 // pred_region
        %s279 = ssub.s32 %s24, 1
        // Predicated region
        $region13: #{tpu_custom_call.1} parent=11 // pred_check
          %p280 = pneg %p71
        $region14: #{tpu_custom_call.1} parent=11 // pred_check_branch
          %282 = sbr.rel (%p280) target = $region16
        $region15: #{tpu_custom_call.1} parent=11 // pred_region
          %284 = vsyncadd [#allocation7], 0
          %s285 = sshll.u32 %s1, 4
          %s286 = int_to_ptr.hbm [resolvable:$true] %s285
          %s287 = sshll.u32 [#allocation6], 4
          %s288 = int_to_ptr.vmem [resolvable:$true] %s287
          %293 = dma.hbm_to_vmem [thread:$0]  %s286, 1024, %s288, [#allocation7], 64, 64, 4
        $region16: #{tpu_custom_call.1} parent=11 // pred_fallthru
          _
        // Predicated region
        $region17: #{tpu_custom_call.1} parent=11 // pred_check
          %p294 = pneg %p92
        $region18: #{tpu_custom_call.1} parent=11 // pred_check_branch
          %296 = sbr.rel (%p294) target = $region20
        $region19: #{tpu_custom_call.1} parent=11 // pred_region
          _
        $region20: #{tpu_custom_call.1} parent=11 // pred_fallthru
          _
        // Predicated region
        $region21: #{tpu_custom_call.1} parent=11 // pred_check
          %p297 = pneg %p113
        $region22: #{tpu_custom_call.1} parent=11 // pred_check_branch
          %299 = sbr.rel (%p297) target = $region24
        $region23: #{tpu_custom_call.1} parent=11 // pred_region
          _
        $region24: #{tpu_custom_call.1} parent=11 // pred_fallthru
          _
        // Predicated region
        $region25: #{tpu_custom_call.1} parent=11 // pred_check
          %p300 = pneg %p134
        $region26: #{tpu_custom_call.1} parent=11 // pred_check_branch
          %302 = sbr.rel (%p300) target = $region28
        $region27: #{tpu_custom_call.1} parent=11 // pred_region
          %304 = vsyncadd [#allocation7], 0
          %s305 = sshll.u32 %s4, 4
          %s306 = int_to_ptr.hbm [resolvable:$true] %s305
          %s307 = sshll.u32 [#allocation8], 4
          %s308 = int_to_ptr.vmem [resolvable:$true] %s307
          %313 = dma.hbm_to_vmem [thread:$0]  %s306, 9216, %s308, [#allocation7], 64, 64, 4
        $region28: #{tpu_custom_call.1} parent=11 // pred_fallthru
          _
        // Predicated region
        $region29: #{tpu_custom_call.1} parent=11 // pred_check
          %p314 = pneg %p155
        $region30: #{tpu_custom_call.1} parent=11 // pred_check_branch
          %316 = sbr.rel (%p314) target = $region32
        $region31: #{tpu_custom_call.1} parent=11 // pred_region
          _
        $region32: #{tpu_custom_call.1} parent=11 // pred_fallthru
          _
        // Predicated region
        $region33: #{tpu_custom_call.1} parent=11 // pred_check
          %p317 = pneg %p176
        $region34: #{tpu_custom_call.1} parent=11 // pred_check_branch
          %319 = sbr.rel (%p317) target = $region36
        $region35: #{tpu_custom_call.1} parent=11 // pred_region
          _
        $region36: #{tpu_custom_call.1} parent=11 // pred_fallthru
          _
        // Predicated region
        $region37: #{tpu_custom_call.1} parent=11 // pred_check
          %p320 = pneg %p197
        $region38: #{tpu_custom_call.1} parent=11 // pred_check_branch
          %322 = sbr.rel (%p320) target = $region40
        $region39: #{tpu_custom_call.1} parent=11 // pred_region
          %324 = vsyncadd [#allocation10], 0
          %s325 = sshll.u32 %s7, 4
          %s326 = int_to_ptr.hbm [resolvable:$true] %s325
          %s327 = sshll.u32 [#allocation9], 4
          %s328 = int_to_ptr.vmem [resolvable:$true] %s327
          %333 = dma.hbm_to_vmem [thread:$0]  %s326, 1024, %s328, [#allocation10], 64, 64, 4
        $region40: #{tpu_custom_call.1} parent=11 // pred_fallthru
          _
        // Predicated region
        $region41: #{tpu_custom_call.1} parent=11 // pred_check
          %p334 = pneg %p218
        $region42: #{tpu_custom_call.1} parent=11 // pred_check_branch
          %336 = sbr.rel (%p334) target = $region44
        $region43: #{tpu_custom_call.1} parent=11 // pred_region
          _
        $region44: #{tpu_custom_call.1} parent=11 // pred_fallthru
          _
        // Predicated region
        $region45: #{tpu_custom_call.1} parent=11 // pred_check
          %p337 = pneg %p239
        $region46: #{tpu_custom_call.1} parent=11 // pred_check_branch
          %339 = sbr.rel (%p337) target = $region48
        $region47: #{tpu_custom_call.1} parent=11 // pred_region
          _
        $region48: #{tpu_custom_call.1} parent=11 // pred_fallthru
          _
      $region12: #{tpu_custom_call.1} parent=5 // pred_fallthru
        _
      %p340 = scmp.lt.s32.totalorder %s24, 2
      // Predicated region
      $region49: #{tpu_custom_call.1} parent=5 // pred_check
        %p341 = pneg %p340
      $region50: #{tpu_custom_call.1} parent=5 // pred_check_branch
        %343 = sbr.rel (%p341) target = $region52
      $region51: #{tpu_custom_call.1} parent=5 // pred_region
        // Predicated region
        $region53: #{tpu_custom_call.1} parent=51 // pred_check
          %p344 = pneg %p44
        $region54: #{tpu_custom_call.1} parent=51 // pred_check_branch
          %346 = sbr.rel (%p344) target = $region56
        $region55: #{tpu_custom_call.1} parent=51 // pred_region
          %s347 = sand.u32 %s34, 1
          %s348 = scalar_lea.sflag [#allocation4], %s347
          %s349 = sand.u32 %s34, 1
          %s350 = smul.addr %s349, 64
          %s351 = scalar_lea.vmem [#allocation3], %s350
          %353 = vsyncadd %s348, 0
          %s354 = smul.addr %s24, 8
          %s355 = smul.addr %s354, 8
          %s356 = scalar_lea.hbm %s0, %s355
          %s357 = sshll.u32 %s356, 4
          %s358 = int_to_ptr.hbm [resolvable:$true] %s357
          %s359 = sshll.u32 %s351, 4
          %s360 = int_to_ptr.vmem [resolvable:$true] %s359
          %365 = dma.hbm_to_vmem [thread:$0]  %s358, 1024, %s360, %s348, 128, 128, 8
        $region56: #{tpu_custom_call.1} parent=51 // pred_fallthru
          _
      $region52: #{tpu_custom_call.1} parent=5 // pred_fallthru
        _
      %p366 = scmp.le.s32.totalorder 1, %s24
      %p367 = scmp.lt.s32.totalorder %s24, 3
      %p368 = pnand %p366, %p367
      %p369 = pneg %p368
      // Predicated region
      $region57: #{tpu_custom_call.1} parent=5 // pred_check
        _
      $region58: #{tpu_custom_call.1} parent=5 // pred_check_branch
        %371 = sbr.rel (%p368) target = $region60
      $region59: #{tpu_custom_call.1} parent=5 // pred_region
        %s372 = ssub.s32 %s24, 1
        %s373 = sand.u32 %s37, 1
        %s374 = scalar_lea.sflag [#allocation4], %s373
        %s375 = sand.u32 %s37, 1
        %s376 = smul.addr %s375, 64
        %s377 = scalar_lea.vmem [#allocation3], %s376
        // Predicated region
        $region61: #{tpu_custom_call.1} parent=59 // pred_check
          %p378 = pneg %p50
        $region62: #{tpu_custom_call.1} parent=59 // pred_check_branch
          %380 = sbr.rel (%p378) target = $region64
        $region63: #{tpu_custom_call.1} parent=59 // pred_region
          %382 = dma.done %s374, 1024
        $region64: #{tpu_custom_call.1} parent=59 // pred_fallthru
          _
        // Predicated region
        $region65: #{tpu_custom_call.1} parent=59 // pred_check
          %p383 = pneg %p71
        $region66: #{tpu_custom_call.1} parent=59 // pred_check_branch
          %385 = sbr.rel (%p383) target = $region68
        $region67: #{tpu_custom_call.1} parent=59 // pred_region
          %387 = dma.done [#allocation7], 1024
        $region68: #{tpu_custom_call.1} parent=59 // pred_fallthru
          _
        // Predicated region
        $region69: #{tpu_custom_call.1} parent=59 // pred_check
          %p388 = pneg %p134
        $region70: #{tpu_custom_call.1} parent=59 // pred_check_branch
          %390 = sbr.rel (%p388) target = $region72
        $region71: #{tpu_custom_call.1} parent=59 // pred_region
          %392 = dma.done [#allocation7], 9216
        $region72: #{tpu_custom_call.1} parent=59 // pred_fallthru
          _
        // Predicated region
        $region73: #{tpu_custom_call.1} parent=59 // pred_check
          %p393 = pneg %p197
        $region74: #{tpu_custom_call.1} parent=59 // pred_check_branch
          %395 = sbr.rel (%p393) target = $region76
        $region75: #{tpu_custom_call.1} parent=59 // pred_region
          %397 = dma.done [#allocation10], 1024
        $region76: #{tpu_custom_call.1} parent=59 // pred_fallthru
          _
        %s398 = sand.u32 %s37, 1
        %s399 = scalar_lea.sflag [#allocation4], %s398
        %s400 = sand.u32 %s37, 1
        %s401 = smul.addr %s400, 64
        %s402 = scalar_lea.vmem [#allocation3], %s401
        %p403 = pneg %p50
        %p404 = pneg %p47
        %p405 = pneg %p71
        %p406 = pneg %p68
        %p407 = pneg %p92
        %p408 = pneg %p89
        %p409 = pneg %p113
        %p410 = pneg %p110
        %p411 = pneg %p134
        %p412 = pneg %p131
        %p413 = pneg %p155
        %p414 = pneg %p152
        %p415 = pneg %p176
        %p416 = pneg %p173
        %p417 = pneg %p197
        %p418 = pneg %p194
        %p419 = pneg %p218
        %p420 = pneg %p215
        %p421 = pneg %p239
        %p422 = pneg %p236
        %p423 = pneg %p265
        %p424 = pneg %p262
        %s425 = sand.u32 %s252, 1
        %s426 = scalar_lea.sflag [#allocation5], %s425
        %s427 = sand.u32 %s252, 1
        %s428 = smul.addr %s427, 64
        %s429 = scalar_lea.vmem [#allocation11], %s428
        %v430 = vld [vmem:[%s377] sm:$0xff]
        %v431 = vld [vmem:[%s377 + $0x8] sm:$0xff]
        %v432 = vld [vmem:[%s377 + $0x10] sm:$0xff]
        %v433 = vld [vmem:[%s377 + $0x18] sm:$0xff]
        %v434 = vld [vmem:[%s377 + $0x20] sm:$0xff]
        %v435 = vld [vmem:[%s377 + $0x28] sm:$0xff]
        %v436 = vld [vmem:[%s377 + $0x30] sm:$0xff]
        %v437 = vld [vmem:[%s377 + $0x38] sm:$0xff]
        %v438 = vpack.c.bf16 %v431, %v430
        %v439 = vpack.c.bf16 %v433, %v432
        %v440 = vpack.c.bf16 %v435, %v434
        %v441 = vpack.c.bf16 %v437, %v436
        %v442 = vld [vmem:[#allocation6] sm:$0xf]
        %v443 = vld [vmem:[#allocation6 + $0x4] sm:$0xf]
        %v444 = vld [vmem:[#allocation6 + $0x8] sm:$0xf]
        %v445 = vld [vmem:[#allocation6 + $0xc] sm:$0xf]
        %v446 = vld [vmem:[#allocation6 + $0x10] sm:$0xf]
        %v447 = vld [vmem:[#allocation6 + $0x14] sm:$0xf]
        %v448 = vld [vmem:[#allocation6 + $0x18] sm:$0xf]
        %v449 = vld [vmem:[#allocation6 + $0x1c] sm:$0xf]
        %v450 = vld [vmem:[#allocation6 + $0x20] sm:$0xf]
        %v451 = vld [vmem:[#allocation6 + $0x24] sm:$0xf]
        %v452 = vld [vmem:[#allocation6 + $0x28] sm:$0xf]
        %v453 = vld [vmem:[#allocation6 + $0x2c] sm:$0xf]
        %v454 = vld [vmem:[#allocation6 + $0x30] sm:$0xf]
        %v455 = vld [vmem:[#allocation6 + $0x34] sm:$0xf]
        %v456 = vld [vmem:[#allocation6 + $0x38] sm:$0xf]
        %v457 = vld [vmem:[#allocation6 + $0x3c] sm:$0xf]
        %v474 = vunpack.c.l.b16 %v442
        %v475 = vunpack.c.l.b16 %v443
        %v476 = vunpack.c.l.b16 %v444
        %v477 = vunpack.c.l.b16 %v445
        %v478 = vunpack.c.l.b16 %v446
        %v479 = vunpack.c.l.b16 %v447
        %v480 = vunpack.c.l.b16 %v448
        %v481 = vunpack.c.l.b16 %v449
        %v482 = vunpack.c.l.b16 %v450
        %v483 = vunpack.c.l.b16 %v451
        %v484 = vunpack.c.l.b16 %v452
        %v485 = vunpack.c.l.b16 %v453
        %v486 = vunpack.c.l.b16 %v454
        %v487 = vunpack.c.l.b16 %v455
        %v488 = vunpack.c.l.b16 %v456
        %v489 = vunpack.c.l.b16 %v457
        %v490 = vpack.c.b16 %v475, %v474
        %v491 = vpack.c.b16 %v477, %v476
        %v492 = vpack.c.b16 %v479, %v478
        %v493 = vpack.c.b16 %v481, %v480
        %v494 = vpack.c.b16 %v483, %v482
        %v495 = vpack.c.b16 %v485, %v484
        %v496 = vpack.c.b16 %v487, %v486
        %v497 = vpack.c.b16 %v489, %v488
        %506 = vmatpush.bf16.msra.mxu0 %v497
        %507 = vmatpush.bf16.msra.mxu0 %v496
        %508 = vmatpush.bf16.msra.mxu0 %v495
        %509 = vmatpush.bf16.msra.mxu0 %v494
        %510 = vmatpush.bf16.msra.mxu0 %v493
        %511 = vmatpush.bf16.msra.mxu0 %v492
        %512 = vmatpush.bf16.msra.mxu0 %v491
        %513 = vmatpush.bf16.msra.mxu0 %v490
        %514 = vmatmul.bf16.gmra.mxu0 %v438
        %v515 = vpop.f32.mrf.mxu0
        %v516 = vadd.f32 0.0, %v515
        %v517 = vpop.f32.mrf.mxu0
        %v518 = vadd.f32 0.0, %v517
        %519 = vmatmul.bf16.gmra.mxu0 %v439
        %v520 = vpop.f32.mrf.mxu0
        %v521 = vadd.f32 0.0, %v520
        %v522 = vpop.f32.mrf.mxu0
        %v523 = vadd.f32 0.0, %v522
        %524 = vmatmul.bf16.gmra.mxu0 %v440
        %v525 = vpop.f32.mrf.mxu0
        %v526 = vadd.f32 0.0, %v525
        %v527 = vpop.f32.mrf.mxu0
        %v528 = vadd.f32 0.0, %v527
        %529 = vmatmul.bf16.gmra.mxu0 %v441
        %v530 = vpop.f32.mrf.mxu0
        %v531 = vadd.f32 0.0, %v530
        %v532 = vpop.f32.mrf.mxu0
        %v533 = vadd.f32 0.0, %v532
        %534 = vdwg.mxu0
        %v535 = vld [vmem:[%s2] sm:$0x1]
        %v537 = vperm.slane %v535, 0
        %v539 = vmul.f32 %v516, %v537
        %v540 = vmul.f32 %v518, %v537
        %v541 = vmul.f32 %v521, %v537
        %v542 = vmul.f32 %v523, %v537
        %v543 = vmul.f32 %v526, %v537
        %v544 = vmul.f32 %v528, %v537
        %v545 = vmul.f32 %v531, %v537
        %v546 = vmul.f32 %v533, %v537
        %v547 = vld [vmem:[%s3] sm:$0x1]
        %v549 = vperm.slane %v547, 0
        %v551 = vadd.f32 %v539, %v549
        %v552 = vadd.f32 %v540, %v549
        %v553 = vadd.f32 %v541, %v549
        %v554 = vadd.f32 %v542, %v549
        %v555 = vadd.f32 %v543, %v549
        %v556 = vadd.f32 %v544, %v549
        %v557 = vadd.f32 %v545, %v549
        %v558 = vadd.f32 %v546, %v549
        %v559 = vmax.f32 %v551, 0.0
        %v560 = vmax.f32 %v552, 0.0
        %v561 = vmax.f32 %v553, 0.0
        %v562 = vmax.f32 %v554, 0.0
        %v563 = vmax.f32 %v555, 0.0
        %v564 = vmax.f32 %v556, 0.0
        %v565 = vmax.f32 %v557, 0.0
        %v566 = vmax.f32 %v558, 0.0
        %567 = vst [vmem:[#allocation2] sm:$0xff] 0.0
        %568 = vst [vmem:[#allocation2 + $0x8] sm:$0x3] 0.0
        %s569 = scalar_lea.vmem [#allocation2], 144
        %570 = vst [vmem:[%s569] sm:$0xff] 0.0
        %571 = vst [vmem:[%s569 + $0x8] sm:$0x3] 0.0
        %v580 = vrot.slane %v559, 7
        %v581 = vrot.slane %v560, 7
        %v582 = vrot.slane %v561, 7
        %v583 = vrot.slane %v562, 7
        %v584 = vrot.slane %v563, 7
        %v585 = vrot.slane %v564, 7
        %v586 = vrot.slane %v565, 7
        %v587 = vrot.slane %v566, 7
        %vm596 = vcmask 1040384
        %v597 = vsel %vm596, 0.0, %v580
        %v598 = vsel %vm596, 0.0, %v581
        %v599 = vsel %vm596, 0.0, %v582
        %v600 = vsel %vm596, 0.0, %v583
        %v601 = vsel %vm596, 0.0, %v584
        %v602 = vsel %vm596, 0.0, %v585
        %v603 = vsel %vm596, 0.0, %v586
        %v604 = vsel %vm596, 0.0, %v587
        %v605 = vsel %vm596, %v580, 0.0
        %v606 = vsel %vm596, %v581, 0.0
        %v607 = vsel %vm596, %v582, 0.0
        %v608 = vsel %vm596, %v583, 0.0
        %v609 = vsel %vm596, %v584, 0.0
        %v610 = vsel %vm596, %v585, 0.0
        %v611 = vsel %vm596, %v586, 0.0
        %v612 = vsel %vm596, %v587, 0.0
        %s613 = scalar_lea.vmem [#allocation2], 16
        %614 = vst [vmem:[%s613] sm:$0xff] %v597
        %615 = vst [vmem:[%s613 + $0x8] sm:$0x3] %v605
        %616 = vst [vmem:[%s613 + $0x10] sm:$0xff] %v598
        %617 = vst [vmem:[%s613 + $0x18] sm:$0x3] %v606
        %618 = vst [vmem:[%s613 + $0x20] sm:$0xff] %v599
        %619 = vst [vmem:[%s613 + $0x28] sm:$0x3] %v607
        %620 = vst [vmem:[%s613 + $0x30] sm:$0xff] %v600
        %621 = vst [vmem:[%s613 + $0x38] sm:$0x3] %v608
        %622 = vst [vmem:[%s613 + $0x40] sm:$0xff] %v601
        %623 = vst [vmem:[%s613 + $0x48] sm:$0x3] %v609
        %624 = vst [vmem:[%s613 + $0x50] sm:$0xff] %v602
        %625 = vst [vmem:[%s613 + $0x58] sm:$0x3] %v610
        %626 = vst [vmem:[%s613 + $0x60] sm:$0xff] %v603
        %627 = vst [vmem:[%s613 + $0x68] sm:$0x3] %v611
        %628 = vst [vmem:[%s613 + $0x70] sm:$0xff] %v604
        %629 = vst [vmem:[%s613 + $0x78] sm:$0x3] %v612
        %v630 = vld [vmem:[#allocation2] sm:$0xff]
        %v631 = vld [vmem:[#allocation2 + $0x8] sm:$0x3]
        %v632 = vld [vmem:[#allocation2 + $0x10] sm:$0xff]
        %v633 = vld [vmem:[#allocation2 + $0x18] sm:$0x3]
        %v634 = vld [vmem:[#allocation2 + $0x20] sm:$0xff]
        %v635 = vld [vmem:[#allocation2 + $0x28] sm:$0x3]
        %v636 = vld [vmem:[#allocation2 + $0x30] sm:$0xff]
        %v637 = vld [vmem:[#allocation2 + $0x38] sm:$0x3]
        %v638 = vld [vmem:[#allocation2 + $0x40] sm:$0xff]
        %v639 = vld [vmem:[#allocation2 + $0x48] sm:$0x3]
        %v640 = vld [vmem:[#allocation2 + $0x50] sm:$0xff]
        %v641 = vld [vmem:[#allocation2 + $0x58] sm:$0x3]
        %v642 = vld [vmem:[#allocation2 + $0x60] sm:$0xff]
        %v643 = vld [vmem:[#allocation2 + $0x68] sm:$0x3]
        %v644 = vld [vmem:[#allocation2 + $0x70] sm:$0xff]
        %v645 = vld [vmem:[#allocation2 + $0x78] sm:$0x3]
        %v646 = vpack.c.bf16 %v630, %v630
        %v647 = vpack.c.bf16 %v632, %v632
        %v648 = vpack.c.bf16 %v634, %v634
        %v649 = vpack.c.bf16 %v636, %v636
        %v650 = vpack.c.bf16 %v638, %v638
        %v651 = vpack.c.bf16 %v640, %v640
        %v652 = vpack.c.bf16 %v642, %v642
        %v653 = vpack.c.bf16 %v644, %v644
        %v654 = vpack.c.bf16 %v631, %v631
        %v655 = vpack.c.bf16 %v633, %v633
        %v656 = vpack.c.bf16 %v635, %v635
        %v657 = vpack.c.bf16 %v637, %v637
        %v658 = vpack.c.bf16 %v639, %v639
        %v659 = vpack.c.bf16 %v641, %v641
        %v660 = vpack.c.bf16 %v643, %v643
        %v661 = vpack.c.bf16 %v645, %v645
        %vm662 = vsmask.f32 3328
        %vm663 = vsmask.f32 7440
        %vm664 = vmor %vm662, %vm663
        %v666 = vshrl.u32 %v646, 16
        %v668 = vrot.slane %v666, 4
        %v669 = vshll.u32 %v646, 16
        %v671 = vrot.slane %v669, 5
        %v672 = vor.u32 %v668, %v671
        %v673 = vrot.slane %v672, 4
        %v675 = vshll.u32 %v654, 16
        %v677 = vrot.slane %v675, 5
        %v678 = vsel %vm664, %v673, %v677
        %v680 = vshrl.u32 %v647, 16
        %v682 = vrot.slane %v680, 4
        %v683 = vshll.u32 %v647, 16
        %v685 = vrot.slane %v683, 5
        %v686 = vor.u32 %v682, %v685
        %v687 = vrot.slane %v686, 4
        %v689 = vshll.u32 %v655, 16
        %v691 = vrot.slane %v689, 5
        %v692 = vsel %vm664, %v687, %v691
        %v694 = vshrl.u32 %v648, 16
        %v696 = vrot.slane %v694, 4
        %v697 = vshll.u32 %v648, 16
        %v699 = vrot.slane %v697, 5
        %v700 = vor.u32 %v696, %v699
        %v701 = vrot.slane %v700, 4
        %v703 = vshll.u32 %v656, 16
        %v705 = vrot.slane %v703, 5
        %v706 = vsel %vm664, %v701, %v705
        %v708 = vshrl.u32 %v649, 16
        %v710 = vrot.slane %v708, 4
        %v711 = vshll.u32 %v649, 16
        %v713 = vrot.slane %v711, 5
        %v714 = vor.u32 %v710, %v713
        %v715 = vrot.slane %v714, 4
        %v717 = vshll.u32 %v657, 16
        %v719 = vrot.slane %v717, 5
        %v720 = vsel %vm664, %v715, %v719
        %v722 = vshrl.u32 %v650, 16
        %v724 = vrot.slane %v722, 4
        %v725 = vshll.u32 %v650, 16
        %v727 = vrot.slane %v725, 5
        %v728 = vor.u32 %v724, %v727
        %v729 = vrot.slane %v728, 4
        %v731 = vshll.u32 %v658, 16
        %v733 = vrot.slane %v731, 5
        %v734 = vsel %vm664, %v729, %v733
        %v736 = vshrl.u32 %v651, 16
        %v738 = vrot.slane %v736, 4
        %v739 = vshll.u32 %v651, 16
        %v741 = vrot.slane %v739, 5
        %v742 = vor.u32 %v738, %v741
        %v743 = vrot.slane %v742, 4
        %v745 = vshll.u32 %v659, 16
        %v747 = vrot.slane %v745, 5
        %v748 = vsel %vm664, %v743, %v747
        %v750 = vshrl.u32 %v652, 16
        %v752 = vrot.slane %v750, 4
        %v753 = vshll.u32 %v652, 16
        %v755 = vrot.slane %v753, 5
        %v756 = vor.u32 %v752, %v755
        %v757 = vrot.slane %v756, 4
        %v759 = vshll.u32 %v660, 16
        %v761 = vrot.slane %v759, 5
        %v762 = vsel %vm664, %v757, %v761
        %v764 = vshrl.u32 %v653, 16
        %v766 = vrot.slane %v764, 4
        %v767 = vshll.u32 %v653, 16
        %v769 = vrot.slane %v767, 5
        %v770 = vor.u32 %v766, %v769
        %v771 = vrot.slane %v770, 4
        %v773 = vshll.u32 %v661, 16
        %v775 = vrot.slane %v773, 5
        %v776 = vsel %vm664, %v771, %v775
        %vm793 = vcmask 1042432
        %vm794 = vcmask 1046532
        %vm795 = vmor %vm793, %vm794
        %v796 = vrot.slane %v646, 5
        %v797 = vrot.slane %v796, 4
        %v798 = vrot.slane %v654, 5
        %v799 = vsel %vm795, %v797, %v798
        %v800 = vrot.slane %v647, 5
        %v801 = vrot.slane %v800, 4
        %v802 = vrot.slane %v655, 5
        %v803 = vsel %vm795, %v801, %v802
        %v804 = vrot.slane %v648, 5
        %v805 = vrot.slane %v804, 4
        %v806 = vrot.slane %v656, 5
        %v807 = vsel %vm795, %v805, %v806
        %v808 = vrot.slane %v649, 5
        %v809 = vrot.slane %v808, 4
        %v810 = vrot.slane %v657, 5
        %v811 = vsel %vm795, %v809, %v810
        %v812 = vrot.slane %v650, 5
        %v813 = vrot.slane %v812, 4
        %v814 = vrot.slane %v658, 5
        %v815 = vsel %vm795, %v813, %v814
        %v816 = vrot.slane %v651, 5
        %v817 = vrot.slane %v816, 4
        %v818 = vrot.slane %v659, 5
        %v819 = vsel %vm795, %v817, %v818
        %v820 = vrot.slane %v652, 5
        %v821 = vrot.slane %v820, 4
        %v822 = vrot.slane %v660, 5
        %v823 = vsel %vm795, %v821, %v822
        %v824 = vrot.slane %v653, 5
        %v825 = vrot.slane %v824, 4
        %v826 = vrot.slane %v661, 5
        %v827 = vsel %vm795, %v825, %v826
        %v828 = vld [vmem:[%s613] sm:$0xff]
        %v829 = vld [vmem:[%s613 + $0x8] sm:$0x3]
        %v830 = vld [vmem:[%s613 + $0x10] sm:$0xff]
        %v831 = vld [vmem:[%s613 + $0x18] sm:$0x3]
        %v832 = vld [vmem:[%s613 + $0x20] sm:$0xff]
        %v833 = vld [vmem:[%s613 + $0x28] sm:$0x3]
        %v834 = vld [vmem:[%s613 + $0x30] sm:$0xff]
        %v835 = vld [vmem:[%s613 + $0x38] sm:$0x3]
        %v836 = vld [vmem:[%s613 + $0x40] sm:$0xff]
        %v837 = vld [vmem:[%s613 + $0x48] sm:$0x3]
        %v838 = vld [vmem:[%s613 + $0x50] sm:$0xff]
        %v839 = vld [vmem:[%s613 + $0x58] sm:$0x3]
        %v840 = vld [vmem:[%s613 + $0x60] sm:$0xff]
        %v841 = vld [vmem:[%s613 + $0x68] sm:$0x3]
        %v842 = vld [vmem:[%s613 + $0x70] sm:$0xff]
        %v843 = vld [vmem:[%s613 + $0x78] sm:$0x3]
        %v844 = vpack.c.bf16 %v828, %v828
        %v845 = vpack.c.bf16 %v830, %v830
        %v846 = vpack.c.bf16 %v832, %v832
        %v847 = vpack.c.bf16 %v834, %v834
        %v848 = vpack.c.bf16 %v836, %v836
        %v849 = vpack.c.bf16 %v838, %v838
        %v850 = vpack.c.bf16 %v840, %v840
        %v851 = vpack.c.bf16 %v842, %v842
        %v852 = vpack.c.bf16 %v829, %v829
        %v853 = vpack.c.bf16 %v831, %v831
        %v854 = vpack.c.bf16 %v833, %v833
        %v855 = vpack.c.bf16 %v835, %v835
        %v856 = vpack.c.bf16 %v837, %v837
        %v857 = vpack.c.bf16 %v839, %v839
        %v858 = vpack.c.bf16 %v841, %v841
        %v859 = vpack.c.bf16 %v843, %v843
        %v861 = vshrl.u32 %v844, 16
        %v863 = vrot.slane %v861, 4
        %v864 = vshll.u32 %v844, 16
        %v866 = vrot.slane %v864, 5
        %v867 = vor.u32 %v863, %v866
        %v868 = vrot.slane %v867, 4
        %v870 = vshll.u32 %v852, 16
        %v872 = vrot.slane %v870, 5
        %v873 = vsel %vm664, %v868, %v872
        %v875 = vshrl.u32 %v845, 16
        %v877 = vrot.slane %v875, 4
        %v878 = vshll.u32 %v845, 16
        %v880 = vrot.slane %v878, 5
        %v881 = vor.u32 %v877, %v880
        %v882 = vrot.slane %v881, 4
        %v884 = vshll.u32 %v853, 16
        %v886 = vrot.slane %v884, 5
        %v887 = vsel %vm664, %v882, %v886
        %v889 = vshrl.u32 %v846, 16
        %v891 = vrot.slane %v889, 4
        %v892 = vshll.u32 %v846, 16
        %v894 = vrot.slane %v892, 5
        %v895 = vor.u32 %v891, %v894
        %v896 = vrot.slane %v895, 4
        %v898 = vshll.u32 %v854, 16
        %v900 = vrot.slane %v898, 5
        %v901 = vsel %vm664, %v896, %v900
        %v903 = vshrl.u32 %v847, 16
        %v905 = vrot.slane %v903, 4
        %v906 = vshll.u32 %v847, 16
        %v908 = vrot.slane %v906, 5
        %v909 = vor.u32 %v905, %v908
        %v910 = vrot.slane %v909, 4
        %v912 = vshll.u32 %v855, 16
        %v914 = vrot.slane %v912, 5
        %v915 = vsel %vm664, %v910, %v914
        %v917 = vshrl.u32 %v848, 16
        %v919 = vrot.slane %v917, 4
        %v920 = vshll.u32 %v848, 16
        %v922 = vrot.slane %v920, 5
        %v923 = vor.u32 %v919, %v922
        %v924 = vrot.slane %v923, 4
        %v926 = vshll.u32 %v856, 16
        %v928 = vrot.slane %v926, 5
        %v929 = vsel %vm664, %v924, %v928
        %v931 = vshrl.u32 %v849, 16
        %v933 = vrot.slane %v931, 4
        %v934 = vshll.u32 %v849, 16
        %v936 = vrot.slane %v934, 5
        %v937 = vor.u32 %v933, %v936
        %v938 = vrot.slane %v937, 4
        %v940 = vshll.u32 %v857, 16
        %v942 = vrot.slane %v940, 5
        %v943 = vsel %vm664, %v938, %v942
        %v945 = vshrl.u32 %v850, 16
        %v947 = vrot.slane %v945, 4
        %v948 = vshll.u32 %v850, 16
        %v950 = vrot.slane %v948, 5
        %v951 = vor.u32 %v947, %v950
        %v952 = vrot.slane %v951, 4
        %v954 = vshll.u32 %v858, 16
        %v956 = vrot.slane %v954, 5
        %v957 = vsel %vm664, %v952, %v956
        %v959 = vshrl.u32 %v851, 16
        %v961 = vrot.slane %v959, 4
        %v962 = vshll.u32 %v851, 16
        %v964 = vrot.slane %v962, 5
        %v965 = vor.u32 %v961, %v964
        %v966 = vrot.slane %v965, 4
        %v968 = vshll.u32 %v859, 16
        %v970 = vrot.slane %v968, 5
        %v971 = vsel %vm664, %v966, %v970
        %v988 = vrot.slane %v844, 5
        %v989 = vrot.slane %v988, 4
        %v990 = vrot.slane %v852, 5
        %v991 = vsel %vm795, %v989, %v990
        %v992 = vrot.slane %v845, 5
        %v993 = vrot.slane %v992, 4
        %v994 = vrot.slane %v853, 5
        %v995 = vsel %vm795, %v993, %v994
        %v996 = vrot.slane %v846, 5
        %v997 = vrot.slane %v996, 4
        %v998 = vrot.slane %v854, 5
        %v999 = vsel %vm795, %v997, %v998
        %v1000 = vrot.slane %v847, 5
        %v1001 = vrot.slane %v1000, 4
        %v1002 = vrot.slane %v855, 5
        %v1003 = vsel %vm795, %v1001, %v1002
        %v1004 = vrot.slane %v848, 5
        %v1005 = vrot.slane %v1004, 4
        %v1006 = vrot.slane %v856, 5
        %v1007 = vsel %vm795, %v1005, %v1006
        %v1008 = vrot.slane %v849, 5
        %v1009 = vrot.slane %v1008, 4
        %v1010 = vrot.slane %v857, 5
        %v1011 = vsel %vm795, %v1009, %v1010
        %v1012 = vrot.slane %v850, 5
        %v1013 = vrot.slane %v1012, 4
        %v1014 = vrot.slane %v858, 5
        %v1015 = vsel %vm795, %v1013, %v1014
        %v1016 = vrot.slane %v851, 5
        %v1017 = vrot.slane %v1016, 4
        %v1018 = vrot.slane %v859, 5
        %v1019 = vsel %vm795, %v1017, %v1018
        %s1020 = scalar_lea.vmem [#allocation2], 32
        %v1021 = vld [vmem:[%s1020] sm:$0xff]
        %v1022 = vld [vmem:[%s1020 + $0x8] sm:$0x3]
        %v1023 = vld [vmem:[%s1020 + $0x10] sm:$0xff]
        %v1024 = vld [vmem:[%s1020 + $0x18] sm:$0x3]
        %v1025 = vld [vmem:[%s1020 + $0x20] sm:$0xff]
        %v1026 = vld [vmem:[%s1020 + $0x28] sm:$0x3]
        %v1027 = vld [vmem:[%s1020 + $0x30] sm:$0xff]
        %v1028 = vld [vmem:[%s1020 + $0x38] sm:$0x3]
        %v1029 = vld [vmem:[%s1020 + $0x40] sm:$0xff]
        %v1030 = vld [vmem:[%s1020 + $0x48] sm:$0x3]
        %v1031 = vld [vmem:[%s1020 + $0x50] sm:$0xff]
        %v1032 = vld [vmem:[%s1020 + $0x58] sm:$0x3]
        %v1033 = vld [vmem:[%s1020 + $0x60] sm:$0xff]
        %v1034 = vld [vmem:[%s1020 + $0x68] sm:$0x3]
        %v1035 = vld [vmem:[%s1020 + $0x70] sm:$0xff]
        %v1036 = vld [vmem:[%s1020 + $0x78] sm:$0x3]
        %v1037 = vpack.c.bf16 %v1021, %v1021
        %v1038 = vpack.c.bf16 %v1023, %v1023
        %v1039 = vpack.c.bf16 %v1025, %v1025
        %v1040 = vpack.c.bf16 %v1027, %v1027
        %v1041 = vpack.c.bf16 %v1029, %v1029
        %v1042 = vpack.c.bf16 %v1031, %v1031
        %v1043 = vpack.c.bf16 %v1033, %v1033
        %v1044 = vpack.c.bf16 %v1035, %v1035
        %v1045 = vpack.c.bf16 %v1022, %v1022
        %v1046 = vpack.c.bf16 %v1024, %v1024
        %v1047 = vpack.c.bf16 %v1026, %v1026
        %v1048 = vpack.c.bf16 %v1028, %v1028
        %v1049 = vpack.c.bf16 %v1030, %v1030
        %v1050 = vpack.c.bf16 %v1032, %v1032
        %v1051 = vpack.c.bf16 %v1034, %v1034
        %v1052 = vpack.c.bf16 %v1036, %v1036
        %v1054 = vshrl.u32 %v1037, 16
        %v1056 = vrot.slane %v1054, 4
        %v1057 = vshll.u32 %v1037, 16
        %v1059 = vrot.slane %v1057, 5
        %v1060 = vor.u32 %v1056, %v1059
        %v1061 = vrot.slane %v1060, 4
        %v1063 = vshll.u32 %v1045, 16
        %v1065 = vrot.slane %v1063, 5
        %v1066 = vsel %vm664, %v1061, %v1065
        %v1068 = vshrl.u32 %v1038, 16
        %v1070 = vrot.slane %v1068, 4
        %v1071 = vshll.u32 %v1038, 16
        %v1073 = vrot.slane %v1071, 5
        %v1074 = vor.u32 %v1070, %v1073
        %v1075 = vrot.slane %v1074, 4
        %v1077 = vshll.u32 %v1046, 16
        %v1079 = vrot.slane %v1077, 5
        %v1080 = vsel %vm664, %v1075, %v1079
        %v1082 = vshrl.u32 %v1039, 16
        %v1084 = vrot.slane %v1082, 4
        %v1085 = vshll.u32 %v1039, 16
        %v1087 = vrot.slane %v1085, 5
        %v1088 = vor.u32 %v1084, %v1087
        %v1089 = vrot.slane %v1088, 4
        %v1091 = vshll.u32 %v1047, 16
        %v1093 = vrot.slane %v1091, 5
        %v1094 = vsel %vm664, %v1089, %v1093
        %v1096 = vshrl.u32 %v1040, 16
        %v1098 = vrot.slane %v1096, 4
        %v1099 = vshll.u32 %v1040, 16
        %v1101 = vrot.slane %v1099, 5
        %v1102 = vor.u32 %v1098, %v1101
        %v1103 = vrot.slane %v1102, 4
        %v1105 = vshll.u32 %v1048, 16
        %v1107 = vrot.slane %v1105, 5
        %v1108 = vsel %vm664, %v1103, %v1107
        %v1110 = vshrl.u32 %v1041, 16
        %v1112 = vrot.slane %v1110, 4
        %v1113 = vshll.u32 %v1041, 16
        %v1115 = vrot.slane %v1113, 5
        %v1116 = vor.u32 %v1112, %v1115
        %v1117 = vrot.slane %v1116, 4
        %v1119 = vshll.u32 %v1049, 16
        %v1121 = vrot.slane %v1119, 5
        %v1122 = vsel %vm664, %v1117, %v1121
        %v1124 = vshrl.u32 %v1042, 16
        %v1126 = vrot.slane %v1124, 4
        %v1127 = vshll.u32 %v1042, 16
        %v1129 = vrot.slane %v1127, 5
        %v1130 = vor.u32 %v1126, %v1129
        %v1131 = vrot.slane %v1130, 4
        %v1133 = vshll.u32 %v1050, 16
        %v1135 = vrot.slane %v1133, 5
        %v1136 = vsel %vm664, %v1131, %v1135
        %v1138 = vshrl.u32 %v1043, 16
        %v1140 = vrot.slane %v1138, 4
        %v1141 = vshll.u32 %v1043, 16
        %v1143 = vrot.slane %v1141, 5
        %v1144 = vor.u32 %v1140, %v1143
        %v1145 = vrot.slane %v1144, 4
        %v1147 = vshll.u32 %v1051, 16
        %v1149 = vrot.slane %v1147, 5
        %v1150 = vsel %vm664, %v1145, %v1149
        %v1152 = vshrl.u32 %v1044, 16
        %v1154 = vrot.slane %v1152, 4
        %v1155 = vshll.u32 %v1044, 16
        %v1157 = vrot.slane %v1155, 5
        %v1158 = vor.u32 %v1154, %v1157
        %v1159 = vrot.slane %v1158, 4
        %v1161 = vshll.u32 %v1052, 16
        %v1163 = vrot.slane %v1161, 5
        %v1164 = vsel %vm664, %v1159, %v1163
        %v1181 = vrot.slane %v1037, 5
        %v1182 = vrot.slane %v1181, 4
        %v1183 = vrot.slane %v1045, 5
        %v1184 = vsel %vm795, %v1182, %v1183
        %v1185 = vrot.slane %v1038, 5
        %v1186 = vrot.slane %v1185, 4
        %v1187 = vrot.slane %v1046, 5
        %v1188 = vsel %vm795, %v1186, %v1187
        %v1189 = vrot.slane %v1039, 5
        %v1190 = vrot.slane %v1189, 4
        %v1191 = vrot.slane %v1047, 5
        %v1192 = vsel %vm795, %v1190, %v1191
        %v1193 = vrot.slane %v1040, 5
        %v1194 = vrot.slane %v1193, 4
        %v1195 = vrot.slane %v1048, 5
        %v1196 = vsel %vm795, %v1194, %v1195
        %v1197 = vrot.slane %v1041, 5
        %v1198 = vrot.slane %v1197, 4
        %v1199 = vrot.slane %v1049, 5
        %v1200 = vsel %vm795, %v1198, %v1199
        %v1201 = vrot.slane %v1042, 5
        %v1202 = vrot.slane %v1201, 4
        %v1203 = vrot.slane %v1050, 5
        %v1204 = vsel %vm795, %v1202, %v1203
        %v1205 = vrot.slane %v1043, 5
        %v1206 = vrot.slane %v1205, 4
        %v1207 = vrot.slane %v1051, 5
        %v1208 = vsel %vm795, %v1206, %v1207
        %v1209 = vrot.slane %v1044, 5
        %v1210 = vrot.slane %v1209, 4
        %v1211 = vrot.slane %v1052, 5
        %v1212 = vsel %vm795, %v1210, %v1211
        %v1213 = vunpack.c.l.b16 %v646
        %v1214 = vunpack.c.l.b16 %v647
        %v1215 = vunpack.c.l.b16 %v648
        %v1216 = vunpack.c.l.b16 %v649
        %v1217 = vunpack.c.l.b16 %v650
        %v1218 = vunpack.c.l.b16 %v651
        %v1219 = vunpack.c.l.b16 %v652
        %v1220 = vunpack.c.l.b16 %v653
        %v1221 = vpack.c.b16 %v1214, %v1213
        %v1222 = vpack.c.b16 %v1216, %v1215
        %v1223 = vpack.c.b16 %v1218, %v1217
        %v1224 = vpack.c.b16 %v1220, %v1219
        %v1229 = vunpack.c.l.b16 %v678
        %v1230 = vunpack.c.l.b16 %v692
        %v1231 = vunpack.c.l.b16 %v706
        %v1232 = vunpack.c.l.b16 %v720
        %v1233 = vunpack.c.l.b16 %v734
        %v1234 = vunpack.c.l.b16 %v748
        %v1235 = vunpack.c.l.b16 %v762
        %v1236 = vunpack.c.l.b16 %v776
        %v1237 = vpack.c.b16 %v1230, %v1229
        %v1238 = vpack.c.b16 %v1232, %v1231
        %v1239 = vpack.c.b16 %v1234, %v1233
        %v1240 = vpack.c.b16 %v1236, %v1235
        %v1245 = vunpack.c.l.b16 %v799
        %v1246 = vunpack.c.l.b16 %v803
        %v1247 = vunpack.c.l.b16 %v807
        %v1248 = vunpack.c.l.b16 %v811
        %v1249 = vunpack.c.l.b16 %v815
        %v1250 = vunpack.c.l.b16 %v819
        %v1251 = vunpack.c.l.b16 %v823
        %v1252 = vunpack.c.l.b16 %v827
        %v1253 = vpack.c.b16 %v1246, %v1245
        %v1254 = vpack.c.b16 %v1248, %v1247
        %v1255 = vpack.c.b16 %v1250, %v1249
        %v1256 = vpack.c.b16 %v1252, %v1251
        %v1261 = vunpack.c.l.b16 %v844
        %v1262 = vunpack.c.l.b16 %v845
        %v1263 = vunpack.c.l.b16 %v846
        %v1264 = vunpack.c.l.b16 %v847
        %v1265 = vunpack.c.l.b16 %v848
        %v1266 = vunpack.c.l.b16 %v849
        %v1267 = vunpack.c.l.b16 %v850
        %v1268 = vunpack.c.l.b16 %v851
        %v1269 = vpack.c.b16 %v1262, %v1261
        %v1270 = vpack.c.b16 %v1264, %v1263
        %v1271 = vpack.c.b16 %v1266, %v1265
        %v1272 = vpack.c.b16 %v1268, %v1267
        %v1277 = vunpack.c.l.b16 %v873
        %v1278 = vunpack.c.l.b16 %v887
        %v1279 = vunpack.c.l.b16 %v901
        %v1280 = vunpack.c.l.b16 %v915
        %v1281 = vunpack.c.l.b16 %v929
        %v1282 = vunpack.c.l.b16 %v943
        %v1283 = vunpack.c.l.b16 %v957
        %v1284 = vunpack.c.l.b16 %v971
        %v1285 = vpack.c.b16 %v1278, %v1277
        %v1286 = vpack.c.b16 %v1280, %v1279
        %v1287 = vpack.c.b16 %v1282, %v1281
        %v1288 = vpack.c.b16 %v1284, %v1283
        %v1293 = vunpack.c.l.b16 %v991
        %v1294 = vunpack.c.l.b16 %v995
        %v1295 = vunpack.c.l.b16 %v999
        %v1296 = vunpack.c.l.b16 %v1003
        %v1297 = vunpack.c.l.b16 %v1007
        %v1298 = vunpack.c.l.b16 %v1011
        %v1299 = vunpack.c.l.b16 %v1015
        %v1300 = vunpack.c.l.b16 %v1019
        %v1301 = vpack.c.b16 %v1294, %v1293
        %v1302 = vpack.c.b16 %v1296, %v1295
        %v1303 = vpack.c.b16 %v1298, %v1297
        %v1304 = vpack.c.b16 %v1300, %v1299
        %v1309 = vunpack.c.l.b16 %v1037
        %v1310 = vunpack.c.l.b16 %v1038
        %v1311 = vunpack.c.l.b16 %v1039
        %v1312 = vunpack.c.l.b16 %v1040
        %v1313 = vunpack.c.l.b16 %v1041
        %v1314 = vunpack.c.l.b16 %v1042
        %v1315 = vunpack.c.l.b16 %v1043
        %v1316 = vunpack.c.l.b16 %v1044
        %v1317 = vpack.c.b16 %v1310, %v1309
        %v1318 = vpack.c.b16 %v1312, %v1311
        %v1319 = vpack.c.b16 %v1314, %v1313
        %v1320 = vpack.c.b16 %v1316, %v1315
        %v1325 = vunpack.c.l.b16 %v1066
        %v1326 = vunpack.c.l.b16 %v1080
        %v1327 = vunpack.c.l.b16 %v1094
        %v1328 = vunpack.c.l.b16 %v1108
        %v1329 = vunpack.c.l.b16 %v1122
        %v1330 = vunpack.c.l.b16 %v1136
        %v1331 = vunpack.c.l.b16 %v1150
        %v1332 = vunpack.c.l.b16 %v1164
        %v1333 = vpack.c.b16 %v1326, %v1325
        %v1334 = vpack.c.b16 %v1328, %v1327
        %v1335 = vpack.c.b16 %v1330, %v1329
        %v1336 = vpack.c.b16 %v1332, %v1331
        %v1341 = vunpack.c.l.b16 %v1184
        %v1342 = vunpack.c.l.b16 %v1188
        %v1343 = vunpack.c.l.b16 %v1192
        %v1344 = vunpack.c.l.b16 %v1196
        %v1345 = vunpack.c.l.b16 %v1200
        %v1346 = vunpack.c.l.b16 %v1204
        %v1347 = vunpack.c.l.b16 %v1208
        %v1348 = vunpack.c.l.b16 %v1212
        %v1349 = vpack.c.b16 %v1342, %v1341
        %v1350 = vpack.c.b16 %v1344, %v1343
        %v1351 = vpack.c.b16 %v1346, %v1345
        %v1352 = vpack.c.b16 %v1348, %v1347
        %v1357 = vld [vmem:[#allocation8] sm:$0xf]
        %v1358 = vld [vmem:[#allocation8 + $0x4] sm:$0xf]
        %v1359 = vld [vmem:[#allocation8 + $0x8] sm:$0xf]
        %v1360 = vld [vmem:[#allocation8 + $0xc] sm:$0xf]
        %v1361 = vld [vmem:[#allocation8 + $0x10] sm:$0xf]
        %v1362 = vld [vmem:[#allocation8 + $0x14] sm:$0xf]
        %v1363 = vld [vmem:[#allocation8 + $0x18] sm:$0xf]
        %v1364 = vld [vmem:[#allocation8 + $0x1c] sm:$0xf]
        %v1365 = vld [vmem:[#allocation8 + $0x20] sm:$0xf]
        %v1366 = vld [vmem:[#allocation8 + $0x24] sm:$0xf]
        %v1367 = vld [vmem:[#allocation8 + $0x28] sm:$0xf]
        %v1368 = vld [vmem:[#allocation8 + $0x2c] sm:$0xf]
        %v1369 = vld [vmem:[#allocation8 + $0x30] sm:$0xf]
        %v1370 = vld [vmem:[#allocation8 + $0x34] sm:$0xf]
        %v1371 = vld [vmem:[#allocation8 + $0x38] sm:$0xf]
        %v1372 = vld [vmem:[#allocation8 + $0x3c] sm:$0xf]
        %v1373 = vld [vmem:[#allocation8 + $0x40] sm:$0xf]
        %v1374 = vld [vmem:[#allocation8 + $0x44] sm:$0xf]
        %v1375 = vld [vmem:[#allocation8 + $0x48] sm:$0xf]
        %v1376 = vld [vmem:[#allocation8 + $0x4c] sm:$0xf]
        %v1377 = vld [vmem:[#allocation8 + $0x50] sm:$0xf]
        %v1378 = vld [vmem:[#allocation8 + $0x54] sm:$0xf]
        %v1379 = vld [vmem:[#allocation8 + $0x58] sm:$0xf]
        %v1380 = vld [vmem:[#allocation8 + $0x5c] sm:$0xf]
        %v1381 = vld [vmem:[#allocation8 + $0x60] sm:$0xf]
        %v1382 = vld [vmem:[#allocation8 + $0x64] sm:$0xf]
        %v1383 = vld [vmem:[#allocation8 + $0x68] sm:$0xf]
        %v1384 = vld [vmem:[#allocation8 + $0x6c] sm:$0xf]
        %v1385 = vld [vmem:[#allocation8 + $0x70] sm:$0xf]
        %v1386 = vld [vmem:[#allocation8 + $0x74] sm:$0xf]
        %v1387 = vld [vmem:[#allocation8 + $0x78] sm:$0xf]
        %v1388 = vld [vmem:[#allocation8 + $0x7c] sm:$0xf]
        %v1389 = vld [vmem:[#allocation8 + $0x80] sm:$0xf]
        %v1390 = vld [vmem:[#allocation8 + $0x84] sm:$0xf]
        %v1391 = vld [vmem:[#allocation8 + $0x88] sm:$0xf]
        %v1392 = vld [vmem:[#allocation8 + $0x8c] sm:$0xf]
        %v1393 = vld [vmem:[#allocation8 + $0x90] sm:$0xf]
        %v1394 = vld [vmem:[#allocation8 + $0x94] sm:$0xf]
        %v1395 = vld [vmem:[#allocation8 + $0x98] sm:$0xf]
        %v1396 = vld [vmem:[#allocation8 + $0x9c] sm:$0xf]
        %v1397 = vld [vmem:[#allocation8 + $0xa0] sm:$0xf]
        %v1398 = vld [vmem:[#allocation8 + $0xa4] sm:$0xf]
        %v1399 = vld [vmem:[#allocation8 + $0xa8] sm:$0xf]
        %v1400 = vld [vmem:[#allocation8 + $0xac] sm:$0xf]
        %v1401 = vld [vmem:[#allocation8 + $0xb0] sm:$0xf]
        %v1402 = vld [vmem:[#allocation8 + $0xb4] sm:$0xf]
        %v1403 = vld [vmem:[#allocation8 + $0xb8] sm:$0xf]
        %v1404 = vld [vmem:[#allocation8 + $0xbc] sm:$0xf]
        %v1405 = vld [vmem:[#allocation8 + $0xc0] sm:$0xf]
        %v1406 = vld [vmem:[#allocation8 + $0xc4] sm:$0xf]
        %v1407 = vld [vmem:[#allocation8 + $0xc8] sm:$0xf]
        %v1408 = vld [vmem:[#allocation8 + $0xcc] sm:$0xf]
        %v1409 = vld [vmem:[#allocation8 + $0xd0] sm:$0xf]
        %v1410 = vld [vmem:[#allocation8 + $0xd4] sm:$0xf]
        %v1411 = vld [vmem:[#allocation8 + $0xd8] sm:$0xf]
        %v1412 = vld [vmem:[#allocation8 + $0xdc] sm:$0xf]
        %v1413 = vld [vmem:[#allocation8 + $0xe0] sm:$0xf]
        %v1414 = vld [vmem:[#allocation8 + $0xe4] sm:$0xf]
        %v1415 = vld [vmem:[#allocation8 + $0xe8] sm:$0xf]
        %v1416 = vld [vmem:[#allocation8 + $0xec] sm:$0xf]
        %v1417 = vld [vmem:[#allocation8 + $0xf0] sm:$0xf]
        %v1418 = vld [vmem:[#allocation8 + $0xf4] sm:$0xf]
        %v1419 = vld [vmem:[#allocation8 + $0xf8] sm:$0xf]
        %v1420 = vld [vmem:[#allocation8 + $0xfc] sm:$0xf]
        %v1421 = vld [vmem:[#allocation8 + $0x100] sm:$0xf]
        %v1422 = vld [vmem:[#allocation8 + $0x104] sm:$0xf]
        %v1423 = vld [vmem:[#allocation8 + $0x108] sm:$0xf]
        %v1424 = vld [vmem:[#allocation8 + $0x10c] sm:$0xf]
        %v1425 = vld [vmem:[#allocation8 + $0x110] sm:$0xf]
        %v1426 = vld [vmem:[#allocation8 + $0x114] sm:$0xf]
        %v1427 = vld [vmem:[#allocation8 + $0x118] sm:$0xf]
        %v1428 = vld [vmem:[#allocation8 + $0x11c] sm:$0xf]
        %v1429 = vld [vmem:[#allocation8 + $0x120] sm:$0xf]
        %v1430 = vld [vmem:[#allocation8 + $0x124] sm:$0xf]
        %v1431 = vld [vmem:[#allocation8 + $0x128] sm:$0xf]
        %v1432 = vld [vmem:[#allocation8 + $0x12c] sm:$0xf]
        %v1433 = vld [vmem:[#allocation8 + $0x130] sm:$0xf]
        %v1434 = vld [vmem:[#allocation8 + $0x134] sm:$0xf]
        %v1435 = vld [vmem:[#allocation8 + $0x138] sm:$0xf]
        %v1436 = vld [vmem:[#allocation8 + $0x13c] sm:$0xf]
        %v1437 = vld [vmem:[#allocation8 + $0x140] sm:$0xf]
        %v1438 = vld [vmem:[#allocation8 + $0x144] sm:$0xf]
        %v1439 = vld [vmem:[#allocation8 + $0x148] sm:$0xf]
        %v1440 = vld [vmem:[#allocation8 + $0x14c] sm:$0xf]
        %v1441 = vld [vmem:[#allocation8 + $0x150] sm:$0xf]
        %v1442 = vld [vmem:[#allocation8 + $0x154] sm:$0xf]
        %v1443 = vld [vmem:[#allocation8 + $0x158] sm:$0xf]
        %v1444 = vld [vmem:[#allocation8 + $0x15c] sm:$0xf]
        %v1445 = vld [vmem:[#allocation8 + $0x160] sm:$0xf]
        %v1446 = vld [vmem:[#allocation8 + $0x164] sm:$0xf]
        %v1447 = vld [vmem:[#allocation8 + $0x168] sm:$0xf]
        %v1448 = vld [vmem:[#allocation8 + $0x16c] sm:$0xf]
        %v1449 = vld [vmem:[#allocation8 + $0x170] sm:$0xf]
        %v1450 = vld [vmem:[#allocation8 + $0x174] sm:$0xf]
        %v1451 = vld [vmem:[#allocation8 + $0x178] sm:$0xf]
        %v1452 = vld [vmem:[#allocation8 + $0x17c] sm:$0xf]
        %v1453 = vld [vmem:[#allocation8 + $0x180] sm:$0xf]
        %v1454 = vld [vmem:[#allocation8 + $0x184] sm:$0xf]
        %v1455 = vld [vmem:[#allocation8 + $0x188] sm:$0xf]
        %v1456 = vld [vmem:[#allocation8 + $0x18c] sm:$0xf]
        %v1457 = vld [vmem:[#allocation8 + $0x190] sm:$0xf]
        %v1458 = vld [vmem:[#allocation8 + $0x194] sm:$0xf]
        %v1459 = vld [vmem:[#allocation8 + $0x198] sm:$0xf]
        %v1460 = vld [vmem:[#allocation8 + $0x19c] sm:$0xf]
        %v1461 = vld [vmem:[#allocation8 + $0x1a0] sm:$0xf]
        %v1462 = vld [vmem:[#allocation8 + $0x1a4] sm:$0xf]
        %v1463 = vld [vmem:[#allocation8 + $0x1a8] sm:$0xf]
        %v1464 = vld [vmem:[#allocation8 + $0x1ac] sm:$0xf]
        %v1465 = vld [vmem:[#allocation8 + $0x1b0] sm:$0xf]
        %v1466 = vld [vmem:[#allocation8 + $0x1b4] sm:$0xf]
        %v1467 = vld [vmem:[#allocation8 + $0x1b8] sm:$0xf]
        %v1468 = vld [vmem:[#allocation8 + $0x1bc] sm:$0xf]
        %v1469 = vld [vmem:[#allocation8 + $0x1c0] sm:$0xf]
        %v1470 = vld [vmem:[#allocation8 + $0x1c4] sm:$0xf]
        %v1471 = vld [vmem:[#allocation8 + $0x1c8] sm:$0xf]
        %v1472 = vld [vmem:[#allocation8 + $0x1cc] sm:$0xf]
        %v1473 = vld [vmem:[#allocation8 + $0x1d0] sm:$0xf]
        %v1474 = vld [vmem:[#allocation8 + $0x1d4] sm:$0xf]
        %v1475 = vld [vmem:[#allocation8 + $0x1d8] sm:$0xf]
        %v1476 = vld [vmem:[#allocation8 + $0x1dc] sm:$0xf]
        %v1477 = vld [vmem:[#allocation8 + $0x1e0] sm:$0xf]
        %v1478 = vld [vmem:[#allocation8 + $0x1e4] sm:$0xf]
        %v1479 = vld [vmem:[#allocation8 + $0x1e8] sm:$0xf]
        %v1480 = vld [vmem:[#allocation8 + $0x1ec] sm:$0xf]
        %v1481 = vld [vmem:[#allocation8 + $0x1f0] sm:$0xf]
        %v1482 = vld [vmem:[#allocation8 + $0x1f4] sm:$0xf]
        %v1483 = vld [vmem:[#allocation8 + $0x1f8] sm:$0xf]
        %v1484 = vld [vmem:[#allocation8 + $0x1fc] sm:$0xf]
        %v1485 = vld [vmem:[#allocation8 + $0x200] sm:$0xf]
        %v1486 = vld [vmem:[#allocation8 + $0x204] sm:$0xf]
        %v1487 = vld [vmem:[#allocation8 + $0x208] sm:$0xf]
        %v1488 = vld [vmem:[#allocation8 + $0x20c] sm:$0xf]
        %v1489 = vld [vmem:[#allocation8 + $0x210] sm:$0xf]
        %v1490 = vld [vmem:[#allocation8 + $0x214] sm:$0xf]
        %v1491 = vld [vmem:[#allocation8 + $0x218] sm:$0xf]
        %v1492 = vld [vmem:[#allocation8 + $0x21c] sm:$0xf]
        %v1493 = vld [vmem:[#allocation8 + $0x220] sm:$0xf]
        %v1494 = vld [vmem:[#allocation8 + $0x224] sm:$0xf]
        %v1495 = vld [vmem:[#allocation8 + $0x228] sm:$0xf]
        %v1496 = vld [vmem:[#allocation8 + $0x22c] sm:$0xf]
        %v1497 = vld [vmem:[#allocation8 + $0x230] sm:$0xf]
        %v1498 = vld [vmem:[#allocation8 + $0x234] sm:$0xf]
        %v1499 = vld [vmem:[#allocation8 + $0x238] sm:$0xf]
        %v1500 = vld [vmem:[#allocation8 + $0x23c] sm:$0xf]
        %v1645 = vunpack.c.l.b16 %v1357
        %v1646 = vunpack.c.l.b16 %v1358
        %v1647 = vunpack.c.l.b16 %v1359
        %v1648 = vunpack.c.l.b16 %v1360
        %v1649 = vunpack.c.l.b16 %v1361
        %v1650 = vunpack.c.l.b16 %v1362
        %v1651 = vunpack.c.l.b16 %v1363
        %v1652 = vunpack.c.l.b16 %v1364
        %v1653 = vunpack.c.l.b16 %v1365
        %v1654 = vunpack.c.l.b16 %v1366
        %v1655 = vunpack.c.l.b16 %v1367
        %v1656 = vunpack.c.l.b16 %v1368
        %v1657 = vunpack.c.l.b16 %v1369
        %v1658 = vunpack.c.l.b16 %v1370
        %v1659 = vunpack.c.l.b16 %v1371
        %v1660 = vunpack.c.l.b16 %v1372
        %v1661 = vunpack.c.l.b16 %v1373
        %v1662 = vunpack.c.l.b16 %v1374
        %v1663 = vunpack.c.l.b16 %v1375
        %v1664 = vunpack.c.l.b16 %v1376
        %v1665 = vunpack.c.l.b16 %v1377
        %v1666 = vunpack.c.l.b16 %v1378
        %v1667 = vunpack.c.l.b16 %v1379
        %v1668 = vunpack.c.l.b16 %v1380
        %v1669 = vunpack.c.l.b16 %v1381
        %v1670 = vunpack.c.l.b16 %v1382
        %v1671 = vunpack.c.l.b16 %v1383
        %v1672 = vunpack.c.l.b16 %v1384
        %v1673 = vunpack.c.l.b16 %v1385
        %v1674 = vunpack.c.l.b16 %v1386
        %v1675 = vunpack.c.l.b16 %v1387
        %v1676 = vunpack.c.l.b16 %v1388
        %v1677 = vunpack.c.l.b16 %v1389
        %v1678 = vunpack.c.l.b16 %v1390
        %v1679 = vunpack.c.l.b16 %v1391
        %v1680 = vunpack.c.l.b16 %v1392
        %v1681 = vunpack.c.l.b16 %v1393
        %v1682 = vunpack.c.l.b16 %v1394
        %v1683 = vunpack.c.l.b16 %v1395
        %v1684 = vunpack.c.l.b16 %v1396
        %v1685 = vunpack.c.l.b16 %v1397
        %v1686 = vunpack.c.l.b16 %v1398
        %v1687 = vunpack.c.l.b16 %v1399
        %v1688 = vunpack.c.l.b16 %v1400
        %v1689 = vunpack.c.l.b16 %v1401
        %v1690 = vunpack.c.l.b16 %v1402
        %v1691 = vunpack.c.l.b16 %v1403
        %v1692 = vunpack.c.l.b16 %v1404
        %v1693 = vunpack.c.l.b16 %v1405
        %v1694 = vunpack.c.l.b16 %v1406
        %v1695 = vunpack.c.l.b16 %v1407
        %v1696 = vunpack.c.l.b16 %v1408
        %v1697 = vunpack.c.l.b16 %v1409
        %v1698 = vunpack.c.l.b16 %v1410
        %v1699 = vunpack.c.l.b16 %v1411
        %v1700 = vunpack.c.l.b16 %v1412
        %v1701 = vunpack.c.l.b16 %v1413
        %v1702 = vunpack.c.l.b16 %v1414
        %v1703 = vunpack.c.l.b16 %v1415
        %v1704 = vunpack.c.l.b16 %v1416
        %v1705 = vunpack.c.l.b16 %v1417
        %v1706 = vunpack.c.l.b16 %v1418
        %v1707 = vunpack.c.l.b16 %v1419
        %v1708 = vunpack.c.l.b16 %v1420
        %v1709 = vunpack.c.l.b16 %v1421
        %v1710 = vunpack.c.l.b16 %v1422
        %v1711 = vunpack.c.l.b16 %v1423
        %v1712 = vunpack.c.l.b16 %v1424
        %v1713 = vunpack.c.l.b16 %v1425
        %v1714 = vunpack.c.l.b16 %v1426
        %v1715 = vunpack.c.l.b16 %v1427
        %v1716 = vunpack.c.l.b16 %v1428
        %v1717 = vunpack.c.l.b16 %v1429
        %v1718 = vunpack.c.l.b16 %v1430
        %v1719 = vunpack.c.l.b16 %v1431
        %v1720 = vunpack.c.l.b16 %v1432
        %v1721 = vunpack.c.l.b16 %v1433
        %v1722 = vunpack.c.l.b16 %v1434
        %v1723 = vunpack.c.l.b16 %v1435
        %v1724 = vunpack.c.l.b16 %v1436
        %v1725 = vunpack.c.l.b16 %v1437
        %v1726 = vunpack.c.l.b16 %v1438
        %v1727 = vunpack.c.l.b16 %v1439
        %v1728 = vunpack.c.l.b16 %v1440
        %v1729 = vunpack.c.l.b16 %v1441
        %v1730 = vunpack.c.l.b16 %v1442
        %v1731 = vunpack.c.l.b16 %v1443
        %v1732 = vunpack.c.l.b16 %v1444
        %v1733 = vunpack.c.l.b16 %v1445
        %v1734 = vunpack.c.l.b16 %v1446
        %v1735 = vunpack.c.l.b16 %v1447
        %v1736 = vunpack.c.l.b16 %v1448
        %v1737 = vunpack.c.l.b16 %v1449
        %v1738 = vunpack.c.l.b16 %v1450
        %v1739 = vunpack.c.l.b16 %v1451
        %v1740 = vunpack.c.l.b16 %v1452
        %v1741 = vunpack.c.l.b16 %v1453
        %v1742 = vunpack.c.l.b16 %v1454
        %v1743 = vunpack.c.l.b16 %v1455
        %v1744 = vunpack.c.l.b16 %v1456
        %v1745 = vunpack.c.l.b16 %v1457
        %v1746 = vunpack.c.l.b16 %v1458
        %v1747 = vunpack.c.l.b16 %v1459
        %v1748 = vunpack.c.l.b16 %v1460
        %v1749 = vunpack.c.l.b16 %v1461
        %v1750 = vunpack.c.l.b16 %v1462
        %v1751 = vunpack.c.l.b16 %v1463
        %v1752 = vunpack.c.l.b16 %v1464
        %v1753 = vunpack.c.l.b16 %v1465
        %v1754 = vunpack.c.l.b16 %v1466
        %v1755 = vunpack.c.l.b16 %v1467
        %v1756 = vunpack.c.l.b16 %v1468
        %v1757 = vunpack.c.l.b16 %v1469
        %v1758 = vunpack.c.l.b16 %v1470
        %v1759 = vunpack.c.l.b16 %v1471
        %v1760 = vunpack.c.l.b16 %v1472
        %v1761 = vunpack.c.l.b16 %v1473
        %v1762 = vunpack.c.l.b16 %v1474
        %v1763 = vunpack.c.l.b16 %v1475
        %v1764 = vunpack.c.l.b16 %v1476
        %v1765 = vunpack.c.l.b16 %v1477
        %v1766 = vunpack.c.l.b16 %v1478
        %v1767 = vunpack.c.l.b16 %v1479
        %v1768 = vunpack.c.l.b16 %v1480
        %v1769 = vunpack.c.l.b16 %v1481
        %v1770 = vunpack.c.l.b16 %v1482
        %v1771 = vunpack.c.l.b16 %v1483
        %v1772 = vunpack.c.l.b16 %v1484
        %v1773 = vunpack.c.l.b16 %v1485
        %v1774 = vunpack.c.l.b16 %v1486
        %v1775 = vunpack.c.l.b16 %v1487
        %v1776 = vunpack.c.l.b16 %v1488
        %v1777 = vunpack.c.l.b16 %v1489
        %v1778 = vunpack.c.l.b16 %v1490
        %v1779 = vunpack.c.l.b16 %v1491
        %v1780 = vunpack.c.l.b16 %v1492
        %v1781 = vunpack.c.l.b16 %v1493
        %v1782 = vunpack.c.l.b16 %v1494
        %v1783 = vunpack.c.l.b16 %v1495
        %v1784 = vunpack.c.l.b16 %v1496
        %v1785 = vunpack.c.l.b16 %v1497
        %v1786 = vunpack.c.l.b16 %v1498
        %v1787 = vunpack.c.l.b16 %v1499
        %v1788 = vunpack.c.l.b16 %v1500
        %v1789 = vpack.c.b16 %v1646, %v1645
        %v1790 = vpack.c.b16 %v1648, %v1647
        %v1791 = vpack.c.b16 %v1650, %v1649
        %v1792 = vpack.c.b16 %v1652, %v1651
        %v1793 = vpack.c.b16 %v1654, %v1653
        %v1794 = vpack.c.b16 %v1656, %v1655
        %v1795 = vpack.c.b16 %v1658, %v1657
        %v1796 = vpack.c.b16 %v1660, %v1659
        %v1797 = vpack.c.b16 %v1662, %v1661
        %v1798 = vpack.c.b16 %v1664, %v1663
        %v1799 = vpack.c.b16 %v1666, %v1665
        %v1800 = vpack.c.b16 %v1668, %v1667
        %v1801 = vpack.c.b16 %v1670, %v1669
        %v1802 = vpack.c.b16 %v1672, %v1671
        %v1803 = vpack.c.b16 %v1674, %v1673
        %v1804 = vpack.c.b16 %v1676, %v1675
        %v1805 = vpack.c.b16 %v1678, %v1677
        %v1806 = vpack.c.b16 %v1680, %v1679
        %v1807 = vpack.c.b16 %v1682, %v1681
        %v1808 = vpack.c.b16 %v1684, %v1683
        %v1809 = vpack.c.b16 %v1686, %v1685
        %v1810 = vpack.c.b16 %v1688, %v1687
        %v1811 = vpack.c.b16 %v1690, %v1689
        %v1812 = vpack.c.b16 %v1692, %v1691
        %v1813 = vpack.c.b16 %v1694, %v1693
        %v1814 = vpack.c.b16 %v1696, %v1695
        %v1815 = vpack.c.b16 %v1698, %v1697
        %v1816 = vpack.c.b16 %v1700, %v1699
        %v1817 = vpack.c.b16 %v1702, %v1701
        %v1818 = vpack.c.b16 %v1704, %v1703
        %v1819 = vpack.c.b16 %v1706, %v1705
        %v1820 = vpack.c.b16 %v1708, %v1707
        %v1821 = vpack.c.b16 %v1710, %v1709
        %v1822 = vpack.c.b16 %v1712, %v1711
        %v1823 = vpack.c.b16 %v1714, %v1713
        %v1824 = vpack.c.b16 %v1716, %v1715
        %v1825 = vpack.c.b16 %v1718, %v1717
        %v1826 = vpack.c.b16 %v1720, %v1719
        %v1827 = vpack.c.b16 %v1722, %v1721
        %v1828 = vpack.c.b16 %v1724, %v1723
        %v1829 = vpack.c.b16 %v1726, %v1725
        %v1830 = vpack.c.b16 %v1728, %v1727
        %v1831 = vpack.c.b16 %v1730, %v1729
        %v1832 = vpack.c.b16 %v1732, %v1731
        %v1833 = vpack.c.b16 %v1734, %v1733
        %v1834 = vpack.c.b16 %v1736, %v1735
        %v1835 = vpack.c.b16 %v1738, %v1737
        %v1836 = vpack.c.b16 %v1740, %v1739
        %v1837 = vpack.c.b16 %v1742, %v1741
        %v1838 = vpack.c.b16 %v1744, %v1743
        %v1839 = vpack.c.b16 %v1746, %v1745
        %v1840 = vpack.c.b16 %v1748, %v1747
        %v1841 = vpack.c.b16 %v1750, %v1749
        %v1842 = vpack.c.b16 %v1752, %v1751
        %v1843 = vpack.c.b16 %v1754, %v1753
        %v1844 = vpack.c.b16 %v1756, %v1755
        %v1845 = vpack.c.b16 %v1758, %v1757
        %v1846 = vpack.c.b16 %v1760, %v1759
        %v1847 = vpack.c.b16 %v1762, %v1761
        %v1848 = vpack.c.b16 %v1764, %v1763
        %v1849 = vpack.c.b16 %v1766, %v1765
        %v1850 = vpack.c.b16 %v1768, %v1767
        %v1851 = vpack.c.b16 %v1770, %v1769
        %v1852 = vpack.c.b16 %v1772, %v1771
        %v1853 = vpack.c.b16 %v1774, %v1773
        %v1854 = vpack.c.b16 %v1776, %v1775
        %v1855 = vpack.c.b16 %v1778, %v1777
        %v1856 = vpack.c.b16 %v1780, %v1779
        %v1857 = vpack.c.b16 %v1782, %v1781
        %v1858 = vpack.c.b16 %v1784, %v1783
        %v1859 = vpack.c.b16 %v1786, %v1785
        %v1860 = vpack.c.b16 %v1788, %v1787
        %1933 = vmatpush.bf16.msra.mxu0 %v1796
        %1934 = vmatpush.bf16.msra.mxu0 %v1795
        %1935 = vmatpush.bf16.msra.mxu0 %v1794
        %1936 = vmatpush.bf16.msra.mxu0 %v1793
        %1937 = vmatpush.bf16.msra.mxu0 %v1792
        %1938 = vmatpush.bf16.msra.mxu0 %v1791
        %1939 = vmatpush.bf16.msra.mxu0 %v1790
        %1940 = vmatpush.bf16.msra.mxu0 %v1789
        %1941 = vmatmul.bf16.gmra.mxu0 %v1221
        %v1942 = vpop.f32.mrf.mxu0
        %v1943 = vadd.f32 0.0, %v1942
        %v1944 = vpop.f32.mrf.mxu0
        %v1945 = vadd.f32 0.0, %v1944
        %1946 = vmatmul.bf16.gmra.mxu0 %v1222
        %v1947 = vpop.f32.mrf.mxu0
        %v1948 = vadd.f32 0.0, %v1947
        %v1949 = vpop.f32.mrf.mxu0
        %v1950 = vadd.f32 0.0, %v1949
        %1951 = vmatmul.bf16.gmra.mxu0 %v1223
        %v1952 = vpop.f32.mrf.mxu0
        %v1953 = vadd.f32 0.0, %v1952
        %v1954 = vpop.f32.mrf.mxu0
        %v1955 = vadd.f32 0.0, %v1954
        %1956 = vmatmul.bf16.gmra.mxu0 %v1224
        %v1957 = vpop.f32.mrf.mxu0
        %v1958 = vadd.f32 0.0, %v1957
        %v1959 = vpop.f32.mrf.mxu0
        %v1960 = vadd.f32 0.0, %v1959
        %1961 = vdwg.mxu0
        %1962 = vmatpush.bf16.msra.mxu0 %v1804
        %1963 = vmatpush.bf16.msra.mxu0 %v1803
        %1964 = vmatpush.bf16.msra.mxu0 %v1802
        %1965 = vmatpush.bf16.msra.mxu0 %v1801
        %1966 = vmatpush.bf16.msra.mxu0 %v1800
        %1967 = vmatpush.bf16.msra.mxu0 %v1799
        %1968 = vmatpush.bf16.msra.mxu0 %v1798
        %1969 = vmatpush.bf16.msra.mxu0 %v1797
        %1970 = vmatmul.bf16.gmra.mxu0 %v1237
        %v1971 = vpop.f32.mrf.mxu0
        %v1972 = vadd.f32 %v1943, %v1971
        %v1973 = vpop.f32.mrf.mxu0
        %v1974 = vadd.f32 %v1945, %v1973
        %1975 = vmatmul.bf16.gmra.mxu0 %v1238
        %v1976 = vpop.f32.mrf.mxu0
        %v1977 = vadd.f32 %v1948, %v1976
        %v1978 = vpop.f32.mrf.mxu0
        %v1979 = vadd.f32 %v1950, %v1978
        %1980 = vmatmul.bf16.gmra.mxu0 %v1239
        %v1981 = vpop.f32.mrf.mxu0
        %v1982 = vadd.f32 %v1953, %v1981
        %v1983 = vpop.f32.mrf.mxu0
        %v1984 = vadd.f32 %v1955, %v1983
        %1985 = vmatmul.bf16.gmra.mxu0 %v1240
        %v1986 = vpop.f32.mrf.mxu0
        %v1987 = vadd.f32 %v1958, %v1986
        %v1988 = vpop.f32.mrf.mxu0
        %v1989 = vadd.f32 %v1960, %v1988
        %1990 = vdwg.mxu0
        %1991 = vmatpush.bf16.msra.mxu0 %v1812
        %1992 = vmatpush.bf16.msra.mxu0 %v1811
        %1993 = vmatpush.bf16.msra.mxu0 %v1810
        %1994 = vmatpush.bf16.msra.mxu0 %v1809
        %1995 = vmatpush.bf16.msra.mxu0 %v1808
        %1996 = vmatpush.bf16.msra.mxu0 %v1807
        %1997 = vmatpush.bf16.msra.mxu0 %v1806
        %1998 = vmatpush.bf16.msra.mxu0 %v1805
        %1999 = vmatmul.bf16.gmra.mxu0 %v1253
        %v2000 = vpop.f32.mrf.mxu0
        %v2001 = vadd.f32 %v1972, %v2000
        %v2002 = vpop.f32.mrf.mxu0
        %v2003 = vadd.f32 %v1974, %v2002
        %2004 = vmatmul.bf16.gmra.mxu0 %v1254
        %v2005 = vpop.f32.mrf.mxu0
        %v2006 = vadd.f32 %v1977, %v2005
        %v2007 = vpop.f32.mrf.mxu0
        %v2008 = vadd.f32 %v1979, %v2007
        %2009 = vmatmul.bf16.gmra.mxu0 %v1255
        %v2010 = vpop.f32.mrf.mxu0
        %v2011 = vadd.f32 %v1982, %v2010
        %v2012 = vpop.f32.mrf.mxu0
        %v2013 = vadd.f32 %v1984, %v2012
        %2014 = vmatmul.bf16.gmra.mxu0 %v1256
        %v2015 = vpop.f32.mrf.mxu0
        %v2016 = vadd.f32 %v1987, %v2015
        %v2017 = vpop.f32.mrf.mxu0
        %v2018 = vadd.f32 %v1989, %v2017
        %2019 = vdwg.mxu0
        %2020 = vmatpush.bf16.msra.mxu0 %v1820
        %2021 = vmatpush.bf16.msra.mxu0 %v1819
        %2022 = vmatpush.bf16.msra.mxu0 %v1818
        %2023 = vmatpush.bf16.msra.mxu0 %v1817
        %2024 = vmatpush.bf16.msra.mxu0 %v1816
        %2025 = vmatpush.bf16.msra.mxu0 %v1815
        %2026 = vmatpush.bf16.msra.mxu0 %v1814
        %2027 = vmatpush.bf16.msra.mxu0 %v1813
        %2028 = vmatmul.bf16.gmra.mxu0 %v1269
        %v2029 = vpop.f32.mrf.mxu0
        %v2030 = vadd.f32 %v2001, %v2029
        %v2031 = vpop.f32.mrf.mxu0
        %v2032 = vadd.f32 %v2003, %v2031
        %2033 = vmatmul.bf16.gmra.mxu0 %v1270
        %v2034 = vpop.f32.mrf.mxu0
        %v2035 = vadd.f32 %v2006, %v2034
        %v2036 = vpop.f32.mrf.mxu0
        %v2037 = vadd.f32 %v2008, %v2036
        %2038 = vmatmul.bf16.gmra.mxu0 %v1271
        %v2039 = vpop.f32.mrf.mxu0
        %v2040 = vadd.f32 %v2011, %v2039
        %v2041 = vpop.f32.mrf.mxu0
        %v2042 = vadd.f32 %v2013, %v2041
        %2043 = vmatmul.bf16.gmra.mxu0 %v1272
        %v2044 = vpop.f32.mrf.mxu0
        %v2045 = vadd.f32 %v2016, %v2044
        %v2046 = vpop.f32.mrf.mxu0
        %v2047 = vadd.f32 %v2018, %v2046
        %2048 = vdwg.mxu0
        %2049 = vmatpush.bf16.msra.mxu0 %v1828
        %2050 = vmatpush.bf16.msra.mxu0 %v1827
        %2051 = vmatpush.bf16.msra.mxu0 %v1826
        %2052 = vmatpush.bf16.msra.mxu0 %v1825
        %2053 = vmatpush.bf16.msra.mxu0 %v1824
        %2054 = vmatpush.bf16.msra.mxu0 %v1823
        %2055 = vmatpush.bf16.msra.mxu0 %v1822
        %2056 = vmatpush.bf16.msra.mxu0 %v1821
        %2057 = vmatmul.bf16.gmra.mxu0 %v1285
        %v2058 = vpop.f32.mrf.mxu0
        %v2059 = vadd.f32 %v2030, %v2058
        %v2060 = vpop.f32.mrf.mxu0
        %v2061 = vadd.f32 %v2032, %v2060
        %2062 = vmatmul.bf16.gmra.mxu0 %v1286
        %v2063 = vpop.f32.mrf.mxu0
        %v2064 = vadd.f32 %v2035, %v2063
        %v2065 = vpop.f32.mrf.mxu0
        %v2066 = vadd.f32 %v2037, %v2065
        %2067 = vmatmul.bf16.gmra.mxu0 %v1287
        %v2068 = vpop.f32.mrf.mxu0
        %v2069 = vadd.f32 %v2040, %v2068
        %v2070 = vpop.f32.mrf.mxu0
        %v2071 = vadd.f32 %v2042, %v2070
        %2072 = vmatmul.bf16.gmra.mxu0 %v1288
        %v2073 = vpop.f32.mrf.mxu0
        %v2074 = vadd.f32 %v2045, %v2073
        %v2075 = vpop.f32.mrf.mxu0
        %v2076 = vadd.f32 %v2047, %v2075
        %2077 = vdwg.mxu0
        %2078 = vmatpush.bf16.msra.mxu0 %v1836
        %2079 = vmatpush.bf16.msra.mxu0 %v1835
        %2080 = vmatpush.bf16.msra.mxu0 %v1834
        %2081 = vmatpush.bf16.msra.mxu0 %v1833
        %2082 = vmatpush.bf16.msra.mxu0 %v1832
        %2083 = vmatpush.bf16.msra.mxu0 %v1831
        %2084 = vmatpush.bf16.msra.mxu0 %v1830
        %2085 = vmatpush.bf16.msra.mxu0 %v1829
        %2086 = vmatmul.bf16.gmra.mxu0 %v1301
        %v2087 = vpop.f32.mrf.mxu0
        %v2088 = vadd.f32 %v2059, %v2087
        %v2089 = vpop.f32.mrf.mxu0
        %v2090 = vadd.f32 %v2061, %v2089
        %2091 = vmatmul.bf16.gmra.mxu0 %v1302
        %v2092 = vpop.f32.mrf.mxu0
        %v2093 = vadd.f32 %v2064, %v2092
        %v2094 = vpop.f32.mrf.mxu0
        %v2095 = vadd.f32 %v2066, %v2094
        %2096 = vmatmul.bf16.gmra.mxu0 %v1303
        %v2097 = vpop.f32.mrf.mxu0
        %v2098 = vadd.f32 %v2069, %v2097
        %v2099 = vpop.f32.mrf.mxu0
        %v2100 = vadd.f32 %v2071, %v2099
        %2101 = vmatmul.bf16.gmra.mxu0 %v1304
        %v2102 = vpop.f32.mrf.mxu0
        %v2103 = vadd.f32 %v2074, %v2102
        %v2104 = vpop.f32.mrf.mxu0
        %v2105 = vadd.f32 %v2076, %v2104
        %2106 = vdwg.mxu0
        %2107 = vmatpush.bf16.msra.mxu0 %v1844
        %2108 = vmatpush.bf16.msra.mxu0 %v1843
        %2109 = vmatpush.bf16.msra.mxu0 %v1842
        %2110 = vmatpush.bf16.msra.mxu0 %v1841
        %2111 = vmatpush.bf16.msra.mxu0 %v1840
        %2112 = vmatpush.bf16.msra.mxu0 %v1839
        %2113 = vmatpush.bf16.msra.mxu0 %v1838
        %2114 = vmatpush.bf16.msra.mxu0 %v1837
        %2115 = vmatmul.bf16.gmra.mxu0 %v1317
        %v2116 = vpop.f32.mrf.mxu0
        %v2117 = vadd.f32 %v2088, %v2116
        %v2118 = vpop.f32.mrf.mxu0
        %v2119 = vadd.f32 %v2090, %v2118
        %2120 = vmatmul.bf16.gmra.mxu0 %v1318
        %v2121 = vpop.f32.mrf.mxu0
        %v2122 = vadd.f32 %v2093, %v2121
        %v2123 = vpop.f32.mrf.mxu0
        %v2124 = vadd.f32 %v2095, %v2123
        %2125 = vmatmul.bf16.gmra.mxu0 %v1319
        %v2126 = vpop.f32.mrf.mxu0
        %v2127 = vadd.f32 %v2098, %v2126
        %v2128 = vpop.f32.mrf.mxu0
        %v2129 = vadd.f32 %v2100, %v2128
        %2130 = vmatmul.bf16.gmra.mxu0 %v1320
        %v2131 = vpop.f32.mrf.mxu0
        %v2132 = vadd.f32 %v2103, %v2131
        %v2133 = vpop.f32.mrf.mxu0
        %v2134 = vadd.f32 %v2105, %v2133
        %2135 = vdwg.mxu0
        %2136 = vmatpush.bf16.msra.mxu0 %v1852
        %2137 = vmatpush.bf16.msra.mxu0 %v1851
        %2138 = vmatpush.bf16.msra.mxu0 %v1850
        %2139 = vmatpush.bf16.msra.mxu0 %v1849
        %2140 = vmatpush.bf16.msra.mxu0 %v1848
        %2141 = vmatpush.bf16.msra.mxu0 %v1847
        %2142 = vmatpush.bf16.msra.mxu0 %v1846
        %2143 = vmatpush.bf16.msra.mxu0 %v1845
        %2144 = vmatmul.bf16.gmra.mxu0 %v1333
        %v2145 = vpop.f32.mrf.mxu0
        %v2146 = vadd.f32 %v2117, %v2145
        %v2147 = vpop.f32.mrf.mxu0
        %v2148 = vadd.f32 %v2119, %v2147
        %2149 = vmatmul.bf16.gmra.mxu0 %v1334
        %v2150 = vpop.f32.mrf.mxu0
        %v2151 = vadd.f32 %v2122, %v2150
        %v2152 = vpop.f32.mrf.mxu0
        %v2153 = vadd.f32 %v2124, %v2152
        %2154 = vmatmul.bf16.gmra.mxu0 %v1335
        %v2155 = vpop.f32.mrf.mxu0
        %v2156 = vadd.f32 %v2127, %v2155
        %v2157 = vpop.f32.mrf.mxu0
        %v2158 = vadd.f32 %v2129, %v2157
        %2159 = vmatmul.bf16.gmra.mxu0 %v1336
        %v2160 = vpop.f32.mrf.mxu0
        %v2161 = vadd.f32 %v2132, %v2160
        %v2162 = vpop.f32.mrf.mxu0
        %v2163 = vadd.f32 %v2134, %v2162
        %2164 = vdwg.mxu0
        %2165 = vmatpush.bf16.msra.mxu0 %v1860
        %2166 = vmatpush.bf16.msra.mxu0 %v1859
        %2167 = vmatpush.bf16.msra.mxu0 %v1858
        %2168 = vmatpush.bf16.msra.mxu0 %v1857
        %2169 = vmatpush.bf16.msra.mxu0 %v1856
        %2170 = vmatpush.bf16.msra.mxu0 %v1855
        %2171 = vmatpush.bf16.msra.mxu0 %v1854
        %2172 = vmatpush.bf16.msra.mxu0 %v1853
        %2173 = vmatmul.bf16.gmra.mxu0 %v1349
        %v2174 = vpop.f32.mrf.mxu0
        %v2175 = vadd.f32 %v2146, %v2174
        %v2176 = vpop.f32.mrf.mxu0
        %v2177 = vadd.f32 %v2148, %v2176
        %2178 = vmatmul.bf16.gmra.mxu0 %v1350
        %v2179 = vpop.f32.mrf.mxu0
        %v2180 = vadd.f32 %v2151, %v2179
        %v2181 = vpop.f32.mrf.mxu0
        %v2182 = vadd.f32 %v2153, %v2181
        %2183 = vmatmul.bf16.gmra.mxu0 %v1351
        %v2184 = vpop.f32.mrf.mxu0
        %v2185 = vadd.f32 %v2156, %v2184
        %v2186 = vpop.f32.mrf.mxu0
        %v2187 = vadd.f32 %v2158, %v2186
        %2188 = vmatmul.bf16.gmra.mxu0 %v1352
        %v2189 = vpop.f32.mrf.mxu0
        %v2190 = vadd.f32 %v2161, %v2189
        %v2191 = vpop.f32.mrf.mxu0
        %v2192 = vadd.f32 %v2163, %v2191
        %2193 = vdwg.mxu0
        %v2194 = vld [vmem:[%s5] sm:$0x1]
        %v2196 = vperm.slane %v2194, 0
        %v2198 = vmul.f32 %v2175, %v2196
        %v2199 = vmul.f32 %v2177, %v2196
        %v2200 = vmul.f32 %v2180, %v2196
        %v2201 = vmul.f32 %v2182, %v2196
        %v2202 = vmul.f32 %v2185, %v2196
        %v2203 = vmul.f32 %v2187, %v2196
        %v2204 = vmul.f32 %v2190, %v2196
        %v2205 = vmul.f32 %v2192, %v2196
        %v2206 = vld [vmem:[%s6] sm:$0x1]
        %v2208 = vperm.slane %v2206, 0
        %v2210 = vadd.f32 %v2198, %v2208
        %v2211 = vadd.f32 %v2199, %v2208
        %v2212 = vadd.f32 %v2200, %v2208
        %v2213 = vadd.f32 %v2201, %v2208
        %v2214 = vadd.f32 %v2202, %v2208
        %v2215 = vadd.f32 %v2203, %v2208
        %v2216 = vadd.f32 %v2204, %v2208
        %v2217 = vadd.f32 %v2205, %v2208
        %v2218 = vmax.f32 %v2210, 0.0
        %v2219 = vmax.f32 %v2211, 0.0
        %v2220 = vmax.f32 %v2212, 0.0
        %v2221 = vmax.f32 %v2213, 0.0
        %v2222 = vmax.f32 %v2214, 0.0
        %v2223 = vmax.f32 %v2215, 0.0
        %v2224 = vmax.f32 %v2216, 0.0
        %v2225 = vmax.f32 %v2217, 0.0
        %v2226 = vpack.c.bf16 %v2219, %v2218
        %v2227 = vpack.c.bf16 %v2221, %v2220
        %v2228 = vpack.c.bf16 %v2223, %v2222
        %v2229 = vpack.c.bf16 %v2225, %v2224
        %v2230 = vld [vmem:[#allocation9] sm:$0xf]
        %v2231 = vld [vmem:[#allocation9 + $0x4] sm:$0xf]
        %v2232 = vld [vmem:[#allocation9 + $0x8] sm:$0xf]
        %v2233 = vld [vmem:[#allocation9 + $0xc] sm:$0xf]
        %v2234 = vld [vmem:[#allocation9 + $0x10] sm:$0xf]
        %v2235 = vld [vmem:[#allocation9 + $0x14] sm:$0xf]
        %v2236 = vld [vmem:[#allocation9 + $0x18] sm:$0xf]
        %v2237 = vld [vmem:[#allocation9 + $0x1c] sm:$0xf]
        %v2238 = vld [vmem:[#allocation9 + $0x20] sm:$0xf]
        %v2239 = vld [vmem:[#allocation9 + $0x24] sm:$0xf]
        %v2240 = vld [vmem:[#allocation9 + $0x28] sm:$0xf]
        %v2241 = vld [vmem:[#allocation9 + $0x2c] sm:$0xf]
        %v2242 = vld [vmem:[#allocation9 + $0x30] sm:$0xf]
        %v2243 = vld [vmem:[#allocation9 + $0x34] sm:$0xf]
        %v2244 = vld [vmem:[#allocation9 + $0x38] sm:$0xf]
        %v2245 = vld [vmem:[#allocation9 + $0x3c] sm:$0xf]
        %v2262 = vunpack.c.l.b16 %v2230
        %v2263 = vunpack.c.l.b16 %v2231
        %v2264 = vunpack.c.l.b16 %v2232
        %v2265 = vunpack.c.l.b16 %v2233
        %v2266 = vunpack.c.l.b16 %v2234
        %v2267 = vunpack.c.l.b16 %v2235
        %v2268 = vunpack.c.l.b16 %v2236
        %v2269 = vunpack.c.l.b16 %v2237
        %v2270 = vunpack.c.l.b16 %v2238
        %v2271 = vunpack.c.l.b16 %v2239
        %v2272 = vunpack.c.l.b16 %v2240
        %v2273 = vunpack.c.l.b16 %v2241
        %v2274 = vunpack.c.l.b16 %v2242
        %v2275 = vunpack.c.l.b16 %v2243
        %v2276 = vunpack.c.l.b16 %v2244
        %v2277 = vunpack.c.l.b16 %v2245
        %v2278 = vpack.c.b16 %v2263, %v2262
        %v2279 = vpack.c.b16 %v2265, %v2264
        %v2280 = vpack.c.b16 %v2267, %v2266
        %v2281 = vpack.c.b16 %v2269, %v2268
        %v2282 = vpack.c.b16 %v2271, %v2270
        %v2283 = vpack.c.b16 %v2273, %v2272
        %v2284 = vpack.c.b16 %v2275, %v2274
        %v2285 = vpack.c.b16 %v2277, %v2276
        %2294 = vmatpush.bf16.msra.mxu0 %v2285
        %2295 = vmatpush.bf16.msra.mxu0 %v2284
        %2296 = vmatpush.bf16.msra.mxu0 %v2283
        %2297 = vmatpush.bf16.msra.mxu0 %v2282
        %2298 = vmatpush.bf16.msra.mxu0 %v2281
        %2299 = vmatpush.bf16.msra.mxu0 %v2280
        %2300 = vmatpush.bf16.msra.mxu0 %v2279
        %2301 = vmatpush.bf16.msra.mxu0 %v2278
        %2302 = vmatmul.bf16.gmra.mxu0 %v2226
        %v2303 = vpop.f32.mrf.mxu0
        %v2304 = vadd.f32 0.0, %v2303
        %v2305 = vpop.f32.mrf.mxu0
        %v2306 = vadd.f32 0.0, %v2305
        %2307 = vmatmul.bf16.gmra.mxu0 %v2227
        %v2308 = vpop.f32.mrf.mxu0
        %v2309 = vadd.f32 0.0, %v2308
        %v2310 = vpop.f32.mrf.mxu0
        %v2311 = vadd.f32 0.0, %v2310
        %2312 = vmatmul.bf16.gmra.mxu0 %v2228
        %v2313 = vpop.f32.mrf.mxu0
        %v2314 = vadd.f32 0.0, %v2313
        %v2315 = vpop.f32.mrf.mxu0
        %v2316 = vadd.f32 0.0, %v2315
        %2317 = vmatmul.bf16.gmra.mxu0 %v2229
        %v2318 = vpop.f32.mrf.mxu0
        %v2319 = vadd.f32 0.0, %v2318
        %v2320 = vpop.f32.mrf.mxu0
        %v2321 = vadd.f32 0.0, %v2320
        %2322 = vdwg.mxu0
        %v2323 = vld [vmem:[%s8] sm:$0x1]
        %v2325 = vperm.slane %v2323, 0
        %v2327 = vmul.f32 %v2304, %v2325
        %v2328 = vmul.f32 %v2306, %v2325
        %v2329 = vmul.f32 %v2309, %v2325
        %v2330 = vmul.f32 %v2311, %v2325
        %v2331 = vmul.f32 %v2314, %v2325
        %v2332 = vmul.f32 %v2316, %v2325
        %v2333 = vmul.f32 %v2319, %v2325
        %v2334 = vmul.f32 %v2321, %v2325
        %v2335 = vld [vmem:[%s9] sm:$0x1]
        %v2337 = vperm.slane %v2335, 0
        %v2339 = vadd.f32 %v2327, %v2337
        %v2340 = vadd.f32 %v2328, %v2337
        %v2341 = vadd.f32 %v2329, %v2337
        %v2342 = vadd.f32 %v2330, %v2337
        %v2343 = vadd.f32 %v2331, %v2337
        %v2344 = vadd.f32 %v2332, %v2337
        %v2345 = vadd.f32 %v2333, %v2337
        %v2346 = vadd.f32 %v2334, %v2337
        %v2347 = vadd.f32 %v430, %v2339
        %v2348 = vadd.f32 %v431, %v2340
        %v2349 = vadd.f32 %v432, %v2341
        %v2350 = vadd.f32 %v433, %v2342
        %v2351 = vadd.f32 %v434, %v2343
        %v2352 = vadd.f32 %v435, %v2344
        %v2353 = vadd.f32 %v436, %v2345
        %v2354 = vadd.f32 %v437, %v2346
        %v2355 = vmax.f32 %v2347, 0.0
        %v2356 = vmax.f32 %v2348, 0.0
        %v2357 = vmax.f32 %v2349, 0.0
        %v2358 = vmax.f32 %v2350, 0.0
        %v2359 = vmax.f32 %v2351, 0.0
        %v2360 = vmax.f32 %v2352, 0.0
        %v2361 = vmax.f32 %v2353, 0.0
        %v2362 = vmax.f32 %v2354, 0.0
        %2363 = vst [vmem:[%s429] sm:$0xff] %v2355
        %2364 = vst [vmem:[%s429 + $0x8] sm:$0xff] %v2356
        %2365 = vst [vmem:[%s429 + $0x10] sm:$0xff] %v2357
        %2366 = vst [vmem:[%s429 + $0x18] sm:$0xff] %v2358
        %2367 = vst [vmem:[%s429 + $0x20] sm:$0xff] %v2359
        %2368 = vst [vmem:[%s429 + $0x28] sm:$0xff] %v2360
        %2369 = vst [vmem:[%s429 + $0x30] sm:$0xff] %v2361
        %2370 = vst [vmem:[%s429 + $0x38] sm:$0xff] %v2362
        %s2371 = sand.u32 %s252, 1
        %s2372 = scalar_lea.sflag [#allocation5], %s2371
        %s2373 = sand.u32 %s252, 1
        %s2374 = smul.addr %s2373, 64
        %s2375 = scalar_lea.vmem [#allocation11], %s2374
        // Predicated region
        $region77: #{tpu_custom_call.1} parent=59 // pred_check
          %p2376 = pneg %p262
        $region78: #{tpu_custom_call.1} parent=59 // pred_check_branch
          %2378 = sbr.rel (%p2376) target = $region80
        $region79: #{tpu_custom_call.1} parent=59 // pred_region
          %2380 = vsyncadd %s2372, 0
          %s2381 = smul.addr %s29, 8
          %s2382 = smul.addr %s2381, 8
          %s2383 = scalar_lea.hbm %s10, %s2382
          %s2384 = sshll.u32 %s2375, 4
          %s2385 = int_to_ptr.vmem [resolvable:$true] %s2384
          %s2386 = sshll.u32 %s2383, 4
          %s2387 = int_to_ptr.hbm [resolvable:$true] %s2386
          %2392 = dma.vmem_to_hbm [thread:$0]  %s2385, 1024, %s2387, %s2372, 128, 128, 8
        $region80: #{tpu_custom_call.1} parent=59 // pred_fallthru
          _
      $region60: #{tpu_custom_call.1} parent=5 // pred_fallthru
        _
      %p2393 = scmp.le.s32.totalorder 2, %s24
      // Predicated region
      $region81: #{tpu_custom_call.1} parent=5 // pred_check
        %p2394 = pneg %p2393
      $region82: #{tpu_custom_call.1} parent=5 // pred_check_branch
        %2396 = sbr.rel (%p2394) target = $region84
      $region83: #{tpu_custom_call.1} parent=5 // pred_region
        %s2397 = ssub.s32 %s24, 2
        // Predicated region
        $region85: #{tpu_custom_call.1} parent=83 // pred_check
          %p2398 = pneg %p268
        $region86: #{tpu_custom_call.1} parent=83 // pred_check_branch
          %2400 = sbr.rel (%p2398) target = $region88
        $region87: #{tpu_custom_call.1} parent=83 // pred_region
          %s2401 = sand.u32 %s253, 1
          %s2402 = scalar_lea.sflag [#allocation5], %s2401
          %s2403 = sand.u32 %s253, 1
          %s2404 = smul.addr %s2403, 64
          %s2405 = scalar_lea.vmem [#allocation11], %s2404
          %2407 = dma.done %s2402, 1024
        $region88: #{tpu_custom_call.1} parent=83 // pred_fallthru
          _
      $region84: #{tpu_custom_call.1} parent=5 // pred_fallthru
        _
    $region6: #{tpu_custom_call.1} parent=1 // loop_footer
      %s28 = sadd.s32 1, %s24
    $region7: #{tpu_custom_call.1} parent=1 // loop_footer_branch
      %23 = sbr.rel target = $region3
    $region8: #{tpu_custom_call.1} parent=1 // loop_exit
      _
    %2408 = vsyncpa [#allocation4], 1
    %s2409 = scalar_lea.sflag [#allocation4], 1
    %2410 = vsyncpa %s2409, 1
    %2411 = vsyncpa [#allocation7], 1
    %2412 = vsyncpa [#allocation10], 1
    %2413 = vsyncpa [#allocation5], 1
    %s2414 = scalar_lea.sflag [#allocation5], 1
    %2415 = vsyncpa %s2414, 1

</llo_original>
